<compile_context>
chip_gen: v7x
topology: tpu7x:2x2x1
jax: 0.10.0
libtpu: 0.0.40
codegen_flags: <defaults>
</compile_context>

<pallas_src>
import functools
import numpy as np
import jax
import jax.numpy as jnp
from jax.experimental import pallas as pl
from jax.experimental.pallas import tpu as pltpu


# ----------------------------- window helpers (glue) -----------------------------

def _window_partition(x, ws):
    # x: (B, H, W, C) -> (num_windows*B, ws*ws, C)
    B, H, W, C = x.shape
    x = x.reshape(B, H // ws, ws, W // ws, ws, C)
    x = jnp.transpose(x, (0, 1, 3, 2, 4, 5)).reshape(-1, ws * ws, C)
    return x


def _window_reverse(windows, ws, H, W, C):
    # windows: (num_windows*B, ws*ws, C) -> (B, H, W, C)
    B = windows.shape[0] // ((H // ws) * (W // ws))
    x = windows.reshape(B, H // ws, W // ws, ws, ws, C)
    x = jnp.transpose(x, (0, 1, 3, 2, 4, 5)).reshape(B, H, W, C)
    return x


def _make_relative_position_bias(table, ws, num_heads):
    # Reproduces the PyTorch buffer computation (torch.meshgrid default = 'ij').
    coords_h = np.arange(ws)
    coords_w = np.arange(ws)
    coords = np.stack(np.meshgrid(coords_h, coords_w, indexing="ij"))   # (2, ws, ws)
    coords_flatten = coords.reshape(2, -1)                              # (2, N)
    rel = coords_flatten[:, :, None] - coords_flatten[:, None, :]       # (2, N, N)
    rel = rel.transpose(1, 2, 0).astype(np.int64)                       # (N, N, 2)
    rel[:, :, 0] += ws - 1
    rel[:, :, 1] += ws - 1
    rel[:, :, 0] *= 2 * ws - 1
    idx = rel.sum(-1)                                                   # (N, N)
    N = ws * ws
    bias = table[idx.reshape(-1)].reshape(N, N, num_heads)
    return jnp.transpose(bias, (2, 0, 1)).astype(jnp.float32)           # (nH, N, N)


# ----------------------------- Pallas kernel -----------------------------

def _attn_kernel(x_ref, w_ref, vec_ref, bias_ref, o_ref, *,
                 num_heads, head_dim, scale, eps):
    # x_ref   : (3, b, N, C)  row-stacked [xq; xk; xv] windows for this grid step
    # w_ref   : (4, C, C)     stacked wq^T, wk^T, wv^T, wproj^T
    # vec_ref : (6, C)        gamma, beta, bq, bk, bv, bproj
    # bias_ref: (nH, N, N)    relative position bias
    # o_ref   : (b, N, C)
    b, N, C = o_ref.shape
    rows = b * N

    x_all = x_ref[...].reshape(3 * rows, C)          # sublane-only reshape (N, C full dims)

    vec = vec_ref[...]
    gamma, beta = vec[0:1], vec[1:2]
    bq, bk, bv, bp = vec[2:3], vec[3:4], vec[4:5], vec[5:6]
    w = w_ref[...]
    wq, wk, wv, wp = w[0], w[1], w[2], w[3]
    bias = bias_ref[...]

    # One LayerNorm pass over the stacked (3*rows, C) slab (norm1 shared for q/k/v).
    mu = jnp.mean(x_all, axis=-1, keepdims=True)
    xc = x_all - mu
    var = jnp.mean(xc * xc, axis=-1, keepdims=True)
    ln = xc * jax.lax.rsqrt(var + eps) * gamma + beta

    xq = ln[0:rows]
    xk = ln[rows:2 * rows]
    xv = ln[2 * rows:3 * rows]

    # Full-width projections (M = rows keeps the MXU tiles dense).
    q = (jnp.dot(xq, wq, preferred_element_type=jnp.float32) + bq) * scale
    k = jnp.dot(xk, wk, preferred_element_type=jnp.float32) + bk
    v = jnp.dot(xv, wv, preferred_element_type=jnp.float32) + bv

    # Per-head attention, batched over all windows; output projection folded into the
    # accumulator (no lane-axis concatenate of head outputs).
    acc = jnp.zeros((rows, C), jnp.float32)
    for h in range(num_heads):                       # static unroll, nH is small
        sl = slice(h * head_dim, (h + 1) * head_dim)
        qh = q[:, sl].reshape(b, N, head_dim)
        kh = k[:, sl].reshape(b, N, head_dim)
        vh = v[:, sl].reshape(b, N, head_dim)
        s = jnp.einsum("bnd,bmd->bnm", qh, kh, preferred_element_type=jnp.float32)
        s = s + bias[h][None, :, :]
        s = s - jnp.max(s, axis=-1, keepdims=True)
        e = jnp.exp(s)
        p = e * pl.reciprocal(jnp.sum(e, axis=-1, keepdims=True), approx=True)
        oh = jnp.einsum("bnm,bmd->bnd", p, vh, preferred_element_type=jnp.float32)
        acc = acc + jnp.dot(oh.reshape(rows, head_dim), wp[sl, :],
                            preferred_element_type=jnp.float32)

    # proj bias + residual with pre-norm windowed xq (== shortcut, commutes with reverse).
    out = acc + bp + x_all[0:rows]
    # TODO(synk): if profiling shows masked vst (C=32 < 128 lanes), consider a lane-dense
    # flat output view; skipped here since it would force an in-kernel relayout.
    o_ref[...] = out.reshape(b, N, C).astype(o_ref.dtype)


# ----------------------------- wrapper -----------------------------

def inter_task_window_attention(x_q, x_k, x_v, params, *, window_size, num_heads, mask=None):
    # TODO(synk): the optional (0/-inf) shifted-window mask path is not implemented (mask=None only).
    assert mask is None
    B, C, H, W = x_q.shape
    ws = window_size
    N = ws * ws
    head_dim = C // num_heads
    scale = head_dim ** (-0.5)

    xq = jnp.transpose(x_q, (0, 2, 3, 1))   # NHWC
    xk = jnp.transpose(x_k, (0, 2, 3, 1))
    xv = jnp.transpose(x_v, (0, 2, 3, 1))

    xq_w = _window_partition(xq, ws)        # (B_, N, C)
    xk_w = _window_partition(xk, ws)
    xv_w = _window_partition(xv, ws)
    B_ = xq_w.shape[0]

    # Stack the three token tensors (shortcut == pre-norm xq, recovered inside the kernel).
    x_all = jnp.stack([xq_w, xk_w, xv_w], axis=0)                       # (3, B_, N, C)
    w_all = jnp.stack([params["wq_t"], params["wk_t"],
                       params["wv_t"], params["wp_t"]], axis=0)         # (4, C, C)
    vecs = jnp.concatenate([params["ln_gamma"], params["ln_beta"],
                            params["bq"], params["bk"],
                            params["bv"], params["bp"]], axis=0)        # (6, C)

    # 2 "parallel" grid steps -> both TensorCores on v7x; near-zero overhead on v5e/v6e.
    n_split = 2 if (B_ % 2 == 0 and B_ >= 2) else 1
    Bs = B_ // n_split

    kernel = functools.partial(_attn_kernel, num_heads=num_heads, head_dim=head_dim,
                               scale=scale, eps=1e-5)

    out_w = pl.pallas_call(
        kernel,
        out_shape=jax.ShapeDtypeStruct((B_, N, C), x_q.dtype),
        grid=(n_split,),
        in_specs=[
            pl.BlockSpec((3, Bs, N, C), lambda i: (0, i, 0, 0)),
            pl.BlockSpec((4, C, C), lambda i: (0, 0, 0)),
            pl.BlockSpec((6, C), lambda i: (0, 0)),
            pl.BlockSpec((num_heads, N, N), lambda i: (0, 0, 0)),
        ],
        out_specs=pl.BlockSpec((Bs, N, C), lambda i: (i, 0, 0)),
        compiler_params=pltpu.CompilerParams(dimension_semantics=("parallel",)),
    )(x_all, w_all, vecs, params["rel_bias"])

    x = _window_reverse(out_w, ws, H, W, C)       # (B, H, W, C)
    return jnp.transpose(x, (0, 3, 1, 2))         # back to NCHW


# ----------------------------- pure-JAX reference -----------------------------

def _ref_forward(x_q, x_k, x_v, params, *, window_size, num_heads):
    B, C, H, W = x_q.shape
    ws = window_size
    N = ws * ws
    hd = C // num_heads
    scale = hd ** (-0.5)

    xq = jnp.transpose(x_q, (0, 2, 3, 1))
    xk = jnp.transpose(x_k, (0, 2, 3, 1))
    xv = jnp.transpose(x_v, (0, 2, 3, 1))
    shortcut = xq

    def ln(x):
        mu = jnp.mean(x, axis=-1, keepdims=True)
        var = jnp.mean((x - mu) ** 2, axis=-1, keepdims=True)
        return (x - mu) * jax.lax.rsqrt(var + 1e-5) * params["ln_gamma"][0] + params["ln_beta"][0]

    xq_w = ln(_window_partition(xq, ws))
    xk_w = ln(_window_partition(xk, ws))
    xv_w = ln(_window_partition(xv, ws))
    B_ = xq_w.shape[0]

    def lin(x, wt, b):
        return jnp.einsum("bnc,cd->bnd", x, wt) + b[0]

    q = lin(xq_w, params["wq_t"], params["bq"]).reshape(B_, N, num_heads, hd).transpose(0, 2, 1, 3)
    k = lin(xk_w, params["wk_t"], params["bk"]).reshape(B_, N, num_heads, hd).transpose(0, 2, 1, 3)
    v = lin(xv_w, params["wv_t"], params["bv"]).reshape(B_, N, num_heads, hd).transpose(0, 2, 1, 3)

    attn = jnp.einsum("bhnd,bhmd->bhnm", q * scale, k) + params["rel_bias"][None]
    attn = jax.nn.softmax(attn, axis=-1)
    out = jnp.einsum("bhnm,bhmd->bhnd", attn, v).transpose(0, 2, 1, 3).reshape(B_, N, C)
    out = jnp.einsum("bnc,cd->bnd", out, params["wp_t"]) + params["bp"][0]
    x = _window_reverse(out, ws, H, W, C) + shortcut
    return jnp.transpose(x, (0, 3, 1, 2))


# ----------------------------- main -----------------------------

if __name__ == "__main__":
    B, C, H, W = 2, 32, 8, 8
    window_size = 4
    num_heads = 4
    N = window_size * window_size

    key = jax.random.PRNGKey(0)
    keys = jax.random.split(key, 16)

    x_q = jax.random.normal(keys[0], (B, C, H, W), jnp.float32)
    x_k = jax.random.normal(keys[1], (B, C, H, W), jnp.float32)
    x_v = jax.random.normal(keys[2], (B, C, H, W), jnp.float32)

    # Deterministic parameter init (shapes match the PyTorch module __init__).
    num_rel = (2 * window_size - 1) * (2 * window_size - 1)
    rel_table = 0.02 * jax.random.truncated_normal(keys[3], -2.0, 2.0, (num_rel, num_heads), jnp.float32)

    def linear_init(k):
        # PyTorch nn.Linear stores weight as (out, in); kernel uses x @ W^T, so store transposed.
        w = 0.05 * jax.random.normal(k, (C, C), jnp.float32)      # (out, in)
        return jnp.transpose(w), jnp.zeros((1, C), jnp.float32)   # (in, out), bias

    wq_t, _ = linear_init(keys[4])
    wk_t, _ = linear_init(keys[5])
    wv_t, _ = linear_init(keys[6])
    wp_t, _ = linear_init(keys[7])
    bq = 0.01 * jax.random.normal(keys[8], (1, C), jnp.float32)
    bk = 0.01 * jax.random.normal(keys[9], (1, C), jnp.float32)
    bv = 0.01 * jax.random.normal(keys[10], (1, C), jnp.float32)
    bp = 0.01 * jax.random.normal(keys[11], (1, C), jnp.float32)

    params = {
        "ln_gamma": jnp.ones((1, C), jnp.float32),
        "ln_beta": jnp.zeros((1, C), jnp.float32),
        "wq_t": wq_t, "bq": bq,
        "wk_t": wk_t, "bk": bk,
        "wv_t": wv_t, "bv": bv,
        "wp_t": wp_t, "bp": bp,
        "rel_bias": _make_relative_position_bias(np.asarray(rel_table), window_size, num_heads),
    }

    out = inter_task_window_attention(x_q, x_k, x_v, params,
                                      window_size=window_size, num_heads=num_heads)
    out = jax.block_until_ready(out)

    ref = jax.block_until_ready(
        _ref_forward(x_q, x_k, x_v, params, window_size=window_size, num_heads=num_heads))

    assert out.shape == (B, C, H, W)
    # Tolerance loosened slightly vs exact division: softmax denom uses the EUP
    # approximate reciprocal (pl.reciprocal(approx=True)).
    np.testing.assert_allclose(np.asarray(out), np.asarray(ref), atol=2e-3, rtol=2e-3)
    print("KERNEL_OK")
</pallas_src>

<mosaic_0001>
module attributes {stable_mosaic.version = 11 : i64} {
  func.func @_attn_kernel(%arg0: i32, %arg1: memref<3x4x16x32xf32, #tpu.memory_space<vmem>>, %arg2: memref<4x32x32xf32, #tpu.memory_space<vmem>>, %arg3: memref<6x32xf32, #tpu.memory_space<vmem>>, %arg4: memref<4x16x16xf32, #tpu.memory_space<vmem>>, %arg5: memref<4x16x32xf32, #tpu.memory_space<vmem>>) attributes {dimension_semantics = [#tpu.dimension_semantics<parallel>], iteration_bounds = array<i64: 2>, scalar_prefetch = 0 : i64, scratch_operands = 0 : i64, tpu.core_type = #tpu.core_type<tc>, window_params = [{transform_indices = @transform_0, window_bounds = array<i64: 3, 4, 16, 32>}, {pipeline_mode = #tpu.pipeline_mode<synchronous>, transform_indices = @transform_1, window_bounds = array<i64: 4, 32, 32>}, {pipeline_mode = #tpu.pipeline_mode<synchronous>, transform_indices = @transform_2, window_bounds = array<i64: 6, 32>}, {pipeline_mode = #tpu.pipeline_mode<synchronous>, transform_indices = @transform_3, window_bounds = array<i64: 4, 16, 16>}, {transform_indices = @transform_4, window_bounds = array<i64: 4, 16, 32>}]} {
    %c0 = arith.constant 0 : index
    %c0_0 = arith.constant 0 : index
    %c0_1 = arith.constant 0 : index
    %c0_2 = arith.constant 0 : index
    %0 = vector.load %arg1[%c0, %c0_0, %c0_1, %c0_2] : memref<3x4x16x32xf32, #tpu.memory_space<vmem>>, vector<3x4x16x32xf32>
    %1 = vector.shape_cast %0 : vector<3x4x16x32xf32> to vector<192x32xf32>
    %c0_3 = arith.constant 0 : index
    %c0_4 = arith.constant 0 : index
    %2 = vector.load %arg3[%c0_3, %c0_4] : memref<6x32xf32, #tpu.memory_space<vmem>>, vector<6x32xf32>
    %3 = vector.extract_strided_slice %2 {offsets = [0, 0], sizes = [1, 32], strides = [1, 1]} : vector<6x32xf32> to vector<1x32xf32>
    %4 = vector.extract_strided_slice %2 {offsets = [1, 0], sizes = [1, 32], strides = [1, 1]} : vector<6x32xf32> to vector<1x32xf32>
    %5 = vector.extract_strided_slice %2 {offsets = [2, 0], sizes = [1, 32], strides = [1, 1]} : vector<6x32xf32> to vector<1x32xf32>
    %6 = vector.extract_strided_slice %2 {offsets = [3, 0], sizes = [1, 32], strides = [1, 1]} : vector<6x32xf32> to vector<1x32xf32>
    %7 = vector.extract_strided_slice %2 {offsets = [4, 0], sizes = [1, 32], strides = [1, 1]} : vector<6x32xf32> to vector<1x32xf32>
    %8 = vector.extract_strided_slice %2 {offsets = [5, 0], sizes = [1, 32], strides = [1, 1]} : vector<6x32xf32> to vector<1x32xf32>
    %c0_5 = arith.constant 0 : index
    %c0_6 = arith.constant 0 : index
    %c0_7 = arith.constant 0 : index
    %9 = vector.load %arg2[%c0_5, %c0_6, %c0_7] : memref<4x32x32xf32, #tpu.memory_space<vmem>>, vector<4x32x32xf32>
    %10 = vector.extract_strided_slice %9 {offsets = [0, 0, 0], sizes = [1, 32, 32], strides = [1, 1, 1]} : vector<4x32x32xf32> to vector<1x32x32xf32>
    %11 = vector.shape_cast %10 : vector<1x32x32xf32> to vector<32x32xf32>
    %12 = vector.extract_strided_slice %9 {offsets = [1, 0, 0], sizes = [1, 32, 32], strides = [1, 1, 1]} : vector<4x32x32xf32> to vector<1x32x32xf32>
    %13 = vector.shape_cast %12 : vector<1x32x32xf32> to vector<32x32xf32>
    %14 = vector.extract_strided_slice %9 {offsets = [2, 0, 0], sizes = [1, 32, 32], strides = [1, 1, 1]} : vector<4x32x32xf32> to vector<1x32x32xf32>
    %15 = vector.shape_cast %14 : vector<1x32x32xf32> to vector<32x32xf32>
    %16 = vector.extract_strided_slice %9 {offsets = [3, 0, 0], sizes = [1, 32, 32], strides = [1, 1, 1]} : vector<4x32x32xf32> to vector<1x32x32xf32>
    %17 = vector.shape_cast %16 : vector<1x32x32xf32> to vector<32x32xf32>
    %c0_8 = arith.constant 0 : index
    %c0_9 = arith.constant 0 : index
    %c0_10 = arith.constant 0 : index
    %18 = vector.load %arg4[%c0_8, %c0_9, %c0_10] : memref<4x16x16xf32, #tpu.memory_space<vmem>>, vector<4x16x16xf32>
    %cst = arith.constant dense<0.000000e+00> : vector<192xf32>
    %19 = vector.multi_reduction <add>, %1, %cst [1] : vector<192x32xf32> to vector<192xf32>
    %20 = vector.shape_cast %19 : vector<192xf32> to vector<192x1xf32>
    %cst_11 = arith.constant 3.200000e+01 : f32
    %21 = vector.broadcast %cst_11 : f32 to vector<192x1xf32>
    %22 = arith.divf %20, %21 : vector<192x1xf32>
    %23 = vector.broadcast %22 : vector<192x1xf32> to vector<192x32xf32>
    %24 = arith.subf %1, %23 : vector<192x32xf32>
    %25 = arith.mulf %24, %24 : vector<192x32xf32>
    %cst_12 = arith.constant dense<0.000000e+00> : vector<192xf32>
    %26 = vector.multi_reduction <add>, %25, %cst_12 [1] : vector<192x32xf32> to vector<192xf32>
    %27 = vector.shape_cast %26 : vector<192xf32> to vector<192x1xf32>
    %cst_13 = arith.constant 3.200000e+01 : f32
    %28 = vector.broadcast %cst_13 : f32 to vector<192x1xf32>
    %29 = arith.divf %27, %28 : vector<192x1xf32>
    %cst_14 = arith.constant 9.99999974E-6 : f32
    %30 = vector.broadcast %cst_14 : f32 to vector<192x1xf32>
    %31 = arith.addf %29, %30 : vector<192x1xf32>
    %32 = math.rsqrt %31 : vector<192x1xf32>
    %33 = vector.broadcast %32 : vector<192x1xf32> to vector<192x32xf32>
    %34 = arith.mulf %24, %33 : vector<192x32xf32>
    %35 = vector.broadcast %3 : vector<1x32xf32> to vector<192x32xf32>
    %36 = arith.mulf %34, %35 : vector<192x32xf32>
    %37 = vector.broadcast %4 : vector<1x32xf32> to vector<192x32xf32>
    %38 = arith.addf %36, %37 : vector<192x32xf32>
    %39 = vector.extract_strided_slice %38 {offsets = [0, 0], sizes = [64, 32], strides = [1, 1]} : vector<192x32xf32> to vector<64x32xf32>
    %40 = vector.extract_strided_slice %38 {offsets = [64, 0], sizes = [64, 32], strides = [1, 1]} : vector<192x32xf32> to vector<64x32xf32>
    %41 = vector.extract_strided_slice %38 {offsets = [128, 0], sizes = [64, 32], strides = [1, 1]} : vector<192x32xf32> to vector<64x32xf32>
    %cst_15 = arith.constant dense<0.000000e+00> : vector<64x32xf32>
    %42 = tpu.matmul %39, %11, %cst_15 {dimension_numbers = #tpu.dot_dimension_numbers<[1], [0], [0], [1], [0, 0, 1, 1], [], []>} : vector<64x32xf32>, vector<32x32xf32>, vector<64x32xf32> -> vector<64x32xf32>
    %43 = vector.broadcast %5 : vector<1x32xf32> to vector<64x32xf32>
    %44 = arith.addf %42, %43 : vector<64x32xf32>
    %cst_16 = arith.constant 0.353553385 : f32
    %45 = vector.broadcast %cst_16 : f32 to vector<64x32xf32>
    %46 = arith.mulf %44, %45 : vector<64x32xf32>
    %cst_17 = arith.constant dense<0.000000e+00> : vector<64x32xf32>
    %47 = tpu.matmul %40, %13, %cst_17 {dimension_numbers = #tpu.dot_dimension_numbers<[1], [0], [0], [1], [0, 0, 1, 1], [], []>} : vector<64x32xf32>, vector<32x32xf32>, vector<64x32xf32> -> vector<64x32xf32>
    %48 = vector.broadcast %6 : vector<1x32xf32> to vector<64x32xf32>
    %49 = arith.addf %47, %48 : vector<64x32xf32>
    %cst_18 = arith.constant dense<0.000000e+00> : vector<64x32xf32>
    %50 = tpu.matmul %41, %15, %cst_18 {dimension_numbers = #tpu.dot_dimension_numbers<[1], [0], [0], [1], [0, 0, 1, 1], [], []>} : vector<64x32xf32>, vector<32x32xf32>, vector<64x32xf32> -> vector<64x32xf32>
    %51 = vector.broadcast %7 : vector<1x32xf32> to vector<64x32xf32>
    %52 = arith.addf %50, %51 : vector<64x32xf32>
    %cst_19 = arith.constant 0.000000e+00 : f32
    %53 = vector.broadcast %cst_19 : f32 to vector<64x32xf32>
    %54 = vector.extract_strided_slice %46 {offsets = [0, 0], sizes = [64, 8], strides = [1, 1]} : vector<64x32xf32> to vector<64x8xf32>
    %55 = vector.shape_cast %54 : vector<64x8xf32> to vector<4x16x8xf32>
    %56 = vector.extract_strided_slice %49 {offsets = [0, 0], sizes = [64, 8], strides = [1, 1]} : vector<64x32xf32> to vector<64x8xf32>
    %57 = vector.shape_cast %56 : vector<64x8xf32> to vector<4x16x8xf32>
    %58 = vector.extract_strided_slice %52 {offsets = [0, 0], sizes = [64, 8], strides = [1, 1]} : vector<64x32xf32> to vector<64x8xf32>
    %59 = vector.shape_cast %58 : vector<64x8xf32> to vector<4x16x8xf32>
    "tpu.trace_start"() <{level = 10 : i32, message = "bnd,bmd->bnm"}> : () -> ()
    %cst_20 = arith.constant dense<0.000000e+00> : vector<4x16x16xf32>
    %60 = tpu.matmul %55, %57, %cst_20 {dimension_numbers = #tpu.dot_dimension_numbers<[2], [2], [1], [1], [0, 0, 0, 1, 1, 1], [0], [0]>} : vector<4x16x8xf32>, vector<4x16x8xf32>, vector<4x16x16xf32> -> vector<4x16x16xf32>
    "tpu.trace_stop"() : () -> ()
    %61 = vector.extract_strided_slice %18 {offsets = [0, 0, 0], sizes = [1, 16, 16], strides = [1, 1, 1]} : vector<4x16x16xf32> to vector<1x16x16xf32>
    %62 = vector.shape_cast %61 : vector<1x16x16xf32> to vector<16x16xf32>
    %63 = vector.shape_cast %62 : vector<16x16xf32> to vector<1x16x16xf32>
    %64 = vector.broadcast %63 : vector<1x16x16xf32> to vector<4x16x16xf32>
    %65 = arith.addf %60, %64 : vector<4x16x16xf32>
    %cst_21 = arith.constant dense<0xFF800000> : vector<4x16xf32>
    %66 = vector.multi_reduction <maximumf>, %65, %cst_21 [2] : vector<4x16x16xf32> to vector<4x16xf32>
    %67 = vector.shape_cast %66 : vector<4x16xf32> to vector<4x16x1xf32>
    %68 = vector.broadcast %67 : vector<4x16x1xf32> to vector<4x16x16xf32>
    %69 = arith.subf %65, %68 : vector<4x16x16xf32>
    %70 = math.exp %69 : vector<4x16x16xf32>
    %cst_22 = arith.constant dense<0.000000e+00> : vector<4x16xf32>
    %71 = vector.multi_reduction <add>, %70, %cst_22 [2] : vector<4x16x16xf32> to vector<4x16xf32>
    %72 = vector.shape_cast %71 : vector<4x16xf32> to vector<4x16x1xf32>
    %73 = tpu.reciprocal %72 {approx = true} : vector<4x16x1xf32> -> vector<4x16x1xf32>
    %74 = vector.broadcast %73 : vector<4x16x1xf32> to vector<4x16x16xf32>
    %75 = arith.mulf %70, %74 : vector<4x16x16xf32>
    "tpu.trace_start"() <{level = 10 : i32, message = "bnm,bmd->bnd"}> : () -> ()
    %cst_23 = arith.constant dense<0.000000e+00> : vector<4x16x8xf32>
    %76 = tpu.matmul %75, %59, %cst_23 {dimension_numbers = #tpu.dot_dimension_numbers<[2], [1], [1], [2], [0, 0, 0, 1, 1, 2], [0], [0]>} : vector<4x16x16xf32>, vector<4x16x8xf32>, vector<4x16x8xf32> -> vector<4x16x8xf32>
    "tpu.trace_stop"() : () -> ()
    %77 = vector.shape_cast %76 : vector<4x16x8xf32> to vector<64x8xf32>
    %78 = vector.extract_strided_slice %17 {offsets = [0, 0], sizes = [8, 32], strides = [1, 1]} : vector<32x32xf32> to vector<8x32xf32>
    %cst_24 = arith.constant dense<0.000000e+00> : vector<64x32xf32>
    %79 = tpu.matmul %77, %78, %cst_24 {dimension_numbers = #tpu.dot_dimension_numbers<[1], [0], [0], [1], [0, 0, 1, 1], [], []>} : vector<64x8xf32>, vector<8x32xf32>, vector<64x32xf32> -> vector<64x32xf32>
    %80 = arith.addf %53, %79 : vector<64x32xf32>
    %81 = vector.extract_strided_slice %46 {offsets = [0, 8], sizes = [64, 8], strides = [1, 1]} : vector<64x32xf32> to vector<64x8xf32>
    %82 = vector.shape_cast %81 : vector<64x8xf32> to vector<4x16x8xf32>
    %83 = vector.extract_strided_slice %49 {offsets = [0, 8], sizes = [64, 8], strides = [1, 1]} : vector<64x32xf32> to vector<64x8xf32>
    %84 = vector.shape_cast %83 : vector<64x8xf32> to vector<4x16x8xf32>
    %85 = vector.extract_strided_slice %52 {offsets = [0, 8], sizes = [64, 8], strides = [1, 1]} : vector<64x32xf32> to vector<64x8xf32>
    %86 = vector.shape_cast %85 : vector<64x8xf32> to vector<4x16x8xf32>
    "tpu.trace_start"() <{level = 10 : i32, message = "bnd,bmd->bnm"}> : () -> ()
    %cst_25 = arith.constant dense<0.000000e+00> : vector<4x16x16xf32>
    %87 = tpu.matmul %82, %84, %cst_25 {dimension_numbers = #tpu.dot_dimension_numbers<[2], [2], [1], [1], [0, 0, 0, 1, 1, 1], [0], [0]>} : vector<4x16x8xf32>, vector<4x16x8xf32>, vector<4x16x16xf32> -> vector<4x16x16xf32>
    "tpu.trace_stop"() : () -> ()
    %88 = vector.extract_strided_slice %18 {offsets = [1, 0, 0], sizes = [1, 16, 16], strides = [1, 1, 1]} : vector<4x16x16xf32> to vector<1x16x16xf32>
    %89 = vector.shape_cast %88 : vector<1x16x16xf32> to vector<16x16xf32>
    %90 = vector.shape_cast %89 : vector<16x16xf32> to vector<1x16x16xf32>
    %91 = vector.broadcast %90 : vector<1x16x16xf32> to vector<4x16x16xf32>
    %92 = arith.addf %87, %91 : vector<4x16x16xf32>
    %cst_26 = arith.constant dense<0xFF800000> : vector<4x16xf32>
    %93 = vector.multi_reduction <maximumf>, %92, %cst_26 [2] : vector<4x16x16xf32> to vector<4x16xf32>
    %94 = vector.shape_cast %93 : vector<4x16xf32> to vector<4x16x1xf32>
    %95 = vector.broadcast %94 : vector<4x16x1xf32> to vector<4x16x16xf32>
    %96 = arith.subf %92, %95 : vector<4x16x16xf32>
    %97 = math.exp %96 : vector<4x16x16xf32>
    %cst_27 = arith.constant dense<0.000000e+00> : vector<4x16xf32>
    %98 = vector.multi_reduction <add>, %97, %cst_27 [2] : vector<4x16x16xf32> to vector<4x16xf32>
    %99 = vector.shape_cast %98 : vector<4x16xf32> to vector<4x16x1xf32>
    %100 = tpu.reciprocal %99 {approx = true} : vector<4x16x1xf32> -> vector<4x16x1xf32>
    %101 = vector.broadcast %100 : vector<4x16x1xf32> to vector<4x16x16xf32>
    %102 = arith.mulf %97, %101 : vector<4x16x16xf32>
    "tpu.trace_start"() <{level = 10 : i32, message = "bnm,bmd->bnd"}> : () -> ()
    %cst_28 = arith.constant dense<0.000000e+00> : vector<4x16x8xf32>
    %103 = tpu.matmul %102, %86, %cst_28 {dimension_numbers = #tpu.dot_dimension_numbers<[2], [1], [1], [2], [0, 0, 0, 1, 1, 2], [0], [0]>} : vector<4x16x16xf32>, vector<4x16x8xf32>, vector<4x16x8xf32> -> vector<4x16x8xf32>
    "tpu.trace_stop"() : () -> ()
    %104 = vector.shape_cast %103 : vector<4x16x8xf32> to vector<64x8xf32>
    %105 = vector.extract_strided_slice %17 {offsets = [8, 0], sizes = [8, 32], strides = [1, 1]} : vector<32x32xf32> to vector<8x32xf32>
    %cst_29 = arith.constant dense<0.000000e+00> : vector<64x32xf32>
    %106 = tpu.matmul %104, %105, %cst_29 {dimension_numbers = #tpu.dot_dimension_numbers<[1], [0], [0], [1], [0, 0, 1, 1], [], []>} : vector<64x8xf32>, vector<8x32xf32>, vector<64x32xf32> -> vector<64x32xf32>
    %107 = arith.addf %80, %106 : vector<64x32xf32>
    %108 = vector.extract_strided_slice %46 {offsets = [0, 16], sizes = [64, 8], strides = [1, 1]} : vector<64x32xf32> to vector<64x8xf32>
    %109 = vector.shape_cast %108 : vector<64x8xf32> to vector<4x16x8xf32>
    %110 = vector.extract_strided_slice %49 {offsets = [0, 16], sizes = [64, 8], strides = [1, 1]} : vector<64x32xf32> to vector<64x8xf32>
    %111 = vector.shape_cast %110 : vector<64x8xf32> to vector<4x16x8xf32>
    %112 = vector.extract_strided_slice %52 {offsets = [0, 16], sizes = [64, 8], strides = [1, 1]} : vector<64x32xf32> to vector<64x8xf32>
    %113 = vector.shape_cast %112 : vector<64x8xf32> to vector<4x16x8xf32>
    "tpu.trace_start"() <{level = 10 : i32, message = "bnd,bmd->bnm"}> : () -> ()
    %cst_30 = arith.constant dense<0.000000e+00> : vector<4x16x16xf32>
    %114 = tpu.matmul %109, %111, %cst_30 {dimension_numbers = #tpu.dot_dimension_numbers<[2], [2], [1], [1], [0, 0, 0, 1, 1, 1], [0], [0]>} : vector<4x16x8xf32>, vector<4x16x8xf32>, vector<4x16x16xf32> -> vector<4x16x16xf32>
    "tpu.trace_stop"() : () -> ()
    %115 = vector.extract_strided_slice %18 {offsets = [2, 0, 0], sizes = [1, 16, 16], strides = [1, 1, 1]} : vector<4x16x16xf32> to vector<1x16x16xf32>
    %116 = vector.shape_cast %115 : vector<1x16x16xf32> to vector<16x16xf32>
    %117 = vector.shape_cast %116 : vector<16x16xf32> to vector<1x16x16xf32>
    %118 = vector.broadcast %117 : vector<1x16x16xf32> to vector<4x16x16xf32>
    %119 = arith.addf %114, %118 : vector<4x16x16xf32>
    %cst_31 = arith.constant dense<0xFF800000> : vector<4x16xf32>
    %120 = vector.multi_reduction <maximumf>, %119, %cst_31 [2] : vector<4x16x16xf32> to vector<4x16xf32>
    %121 = vector.shape_cast %120 : vector<4x16xf32> to vector<4x16x1xf32>
    %122 = vector.broadcast %121 : vector<4x16x1xf32> to vector<4x16x16xf32>
    %123 = arith.subf %119, %122 : vector<4x16x16xf32>
    %124 = math.exp %123 : vector<4x16x16xf32>
    %cst_32 = arith.constant dense<0.000000e+00> : vector<4x16xf32>
    %125 = vector.multi_reduction <add>, %124, %cst_32 [2] : vector<4x16x16xf32> to vector<4x16xf32>
    %126 = vector.shape_cast %125 : vector<4x16xf32> to vector<4x16x1xf32>
    %127 = tpu.reciprocal %126 {approx = true} : vector<4x16x1xf32> -> vector<4x16x1xf32>
    %128 = vector.broadcast %127 : vector<4x16x1xf32> to vector<4x16x16xf32>
    %129 = arith.mulf %124, %128 : vector<4x16x16xf32>
    "tpu.trace_start"() <{level = 10 : i32, message = "bnm,bmd->bnd"}> : () -> ()
    %cst_33 = arith.constant dense<0.000000e+00> : vector<4x16x8xf32>
    %130 = tpu.matmul %129, %113, %cst_33 {dimension_numbers = #tpu.dot_dimension_numbers<[2], [1], [1], [2], [0, 0, 0, 1, 1, 2], [0], [0]>} : vector<4x16x16xf32>, vector<4x16x8xf32>, vector<4x16x8xf32> -> vector<4x16x8xf32>
    "tpu.trace_stop"() : () -> ()
    %131 = vector.shape_cast %130 : vector<4x16x8xf32> to vector<64x8xf32>
    %132 = vector.extract_strided_slice %17 {offsets = [16, 0], sizes = [8, 32], strides = [1, 1]} : vector<32x32xf32> to vector<8x32xf32>
    %cst_34 = arith.constant dense<0.000000e+00> : vector<64x32xf32>
    %133 = tpu.matmul %131, %132, %cst_34 {dimension_numbers = #tpu.dot_dimension_numbers<[1], [0], [0], [1], [0, 0, 1, 1], [], []>} : vector<64x8xf32>, vector<8x32xf32>, vector<64x32xf32> -> vector<64x32xf32>
    %134 = arith.addf %107, %133 : vector<64x32xf32>
    %135 = vector.extract_strided_slice %46 {offsets = [0, 24], sizes = [64, 8], strides = [1, 1]} : vector<64x32xf32> to vector<64x8xf32>
    %136 = vector.shape_cast %135 : vector<64x8xf32> to vector<4x16x8xf32>
    %137 = vector.extract_strided_slice %49 {offsets = [0, 24], sizes = [64, 8], strides = [1, 1]} : vector<64x32xf32> to vector<64x8xf32>
    %138 = vector.shape_cast %137 : vector<64x8xf32> to vector<4x16x8xf32>
    %139 = vector.extract_strided_slice %52 {offsets = [0, 24], sizes = [64, 8], strides = [1, 1]} : vector<64x32xf32> to vector<64x8xf32>
    %140 = vector.shape_cast %139 : vector<64x8xf32> to vector<4x16x8xf32>
    "tpu.trace_start"() <{level = 10 : i32, message = "bnd,bmd->bnm"}> : () -> ()
    %cst_35 = arith.constant dense<0.000000e+00> : vector<4x16x16xf32>
    %141 = tpu.matmul %136, %138, %cst_35 {dimension_numbers = #tpu.dot_dimension_numbers<[2], [2], [1], [1], [0, 0, 0, 1, 1, 1], [0], [0]>} : vector<4x16x8xf32>, vector<4x16x8xf32>, vector<4x16x16xf32> -> vector<4x16x16xf32>
    "tpu.trace_stop"() : () -> ()
    %142 = vector.extract_strided_slice %18 {offsets = [3, 0, 0], sizes = [1, 16, 16], strides = [1, 1, 1]} : vector<4x16x16xf32> to vector<1x16x16xf32>
    %143 = vector.shape_cast %142 : vector<1x16x16xf32> to vector<16x16xf32>
    %144 = vector.shape_cast %143 : vector<16x16xf32> to vector<1x16x16xf32>
    %145 = vector.broadcast %144 : vector<1x16x16xf32> to vector<4x16x16xf32>
    %146 = arith.addf %141, %145 : vector<4x16x16xf32>
    %cst_36 = arith.constant dense<0xFF800000> : vector<4x16xf32>
    %147 = vector.multi_reduction <maximumf>, %146, %cst_36 [2] : vector<4x16x16xf32> to vector<4x16xf32>
    %148 = vector.shape_cast %147 : vector<4x16xf32> to vector<4x16x1xf32>
    %149 = vector.broadcast %148 : vector<4x16x1xf32> to vector<4x16x16xf32>
    %150 = arith.subf %146, %149 : vector<4x16x16xf32>
    %151 = math.exp %150 : vector<4x16x16xf32>
    %cst_37 = arith.constant dense<0.000000e+00> : vector<4x16xf32>
    %152 = vector.multi_reduction <add>, %151, %cst_37 [2] : vector<4x16x16xf32> to vector<4x16xf32>
    %153 = vector.shape_cast %152 : vector<4x16xf32> to vector<4x16x1xf32>
    %154 = tpu.reciprocal %153 {approx = true} : vector<4x16x1xf32> -> vector<4x16x1xf32>
    %155 = vector.broadcast %154 : vector<4x16x1xf32> to vector<4x16x16xf32>
    %156 = arith.mulf %151, %155 : vector<4x16x16xf32>
    "tpu.trace_start"() <{level = 10 : i32, message = "bnm,bmd->bnd"}> : () -> ()
    %cst_38 = arith.constant dense<0.000000e+00> : vector<4x16x8xf32>
    %157 = tpu.matmul %156, %140, %cst_38 {dimension_numbers = #tpu.dot_dimension_numbers<[2], [1], [1], [2], [0, 0, 0, 1, 1, 2], [0], [0]>} : vector<4x16x16xf32>, vector<4x16x8xf32>, vector<4x16x8xf32> -> vector<4x16x8xf32>
    "tpu.trace_stop"() : () -> ()
    %158 = vector.shape_cast %157 : vector<4x16x8xf32> to vector<64x8xf32>
    %159 = vector.extract_strided_slice %17 {offsets = [24, 0], sizes = [8, 32], strides = [1, 1]} : vector<32x32xf32> to vector<8x32xf32>
    %cst_39 = arith.constant dense<0.000000e+00> : vector<64x32xf32>
    %160 = tpu.matmul %158, %159, %cst_39 {dimension_numbers = #tpu.dot_dimension_numbers<[1], [0], [0], [1], [0, 0, 1, 1], [], []>} : vector<64x8xf32>, vector<8x32xf32>, vector<64x32xf32> -> vector<64x32xf32>
    %161 = arith.addf %134, %160 : vector<64x32xf32>
    %162 = vector.broadcast %8 : vector<1x32xf32> to vector<64x32xf32>
    %163 = arith.addf %161, %162 : vector<64x32xf32>
    %164 = vector.extract_strided_slice %1 {offsets = [0, 0], sizes = [64, 32], strides = [1, 1]} : vector<192x32xf32> to vector<64x32xf32>
    %165 = arith.addf %163, %164 : vector<64x32xf32>
    %166 = vector.shape_cast %165 : vector<64x32xf32> to vector<4x16x32xf32>
    %c0_40 = arith.constant 0 : index
    %c0_41 = arith.constant 0 : index
    %c0_42 = arith.constant 0 : index
    %167 = vector.load %arg5[%c0_40, %c0_41, %c0_42] : memref<4x16x32xf32, #tpu.memory_space<vmem>>, vector<4x16x32xf32>
    tpu.vector_store %arg5[%c0_40, %c0_41, %c0_42], %166 {strides = array<i32>} : memref<4x16x32xf32, #tpu.memory_space<vmem>>, vector<4x16x32xf32>,
    return
  }
  func.func @transform_0(%arg0: i32) -> (i32, i32, i32, i32) {
    %c0_i32 = arith.constant 0 : i32
    %c0_i32_0 = arith.constant 0 : i32
    %c0_i32_1 = arith.constant 0 : i32
    %c0_i32_2 = arith.constant 0 : i32
    return %c0_i32, %arg0, %c0_i32_0, %c0_i32_1 : i32, i32, i32, i32
  }
  func.func @transform_1(%arg0: i32) -> (i32, i32, i32) {
    %c0_i32 = arith.constant 0 : i32
    %c0_i32_0 = arith.constant 0 : i32
    %c0_i32_1 = arith.constant 0 : i32
    %c0_i32_2 = arith.constant 0 : i32
    return %c0_i32, %c0_i32_0, %c0_i32_1 : i32, i32, i32
  }
  func.func @transform_2(%arg0: i32) -> (i32, i32) {
    %c0_i32 = arith.constant 0 : i32
    %c0_i32_0 = arith.constant 0 : i32
    %c0_i32_1 = arith.constant 0 : i32
    return %c0_i32, %c0_i32_0 : i32, i32
  }
  func.func @transform_3(%arg0: i32) -> (i32, i32, i32) {
    %c0_i32 = arith.constant 0 : i32
    %c0_i32_0 = arith.constant 0 : i32
    %c0_i32_1 = arith.constant 0 : i32
    %c0_i32_2 = arith.constant 0 : i32
    return %c0_i32, %c0_i32_0, %c0_i32_1 : i32, i32, i32
  }
  func.func @transform_4(%arg0: i32) -> (i32, i32, i32) {
    %c0_i32 = arith.constant 0 : i32
    %c0_i32_0 = arith.constant 0 : i32
    %c0_i32_1 = arith.constant 0 : i32
    return %arg0, %c0_i32, %c0_i32_0 : i32, i32, i32
  }
}

</mosaic_0001>

<llo_original>
// kernel: tpu_custom_call.1
$region0: #{tpu_custom_call.1}
  #allocation0 [shape = 'u32[]', space=smem, size = 0x4, offset = 0x4, fixed_abs, tag = 'smem constant byte address 0x4 - core index']
  #allocation1 [shape = 'u32[144,128]{1,0:T(1,128)}', space=vmem, size = 0x12000, scoped, tag = 'internal scratch']
  #allocation11 [shape = 's32[]', space=sflag, size = 0x4, offset = 0, fixed_abs, tag = 'sflag constant byte address 0x0 - dummy sync flag']
  %s0 = inlined_call_operand.hbm [shape: f32[3,8,16,32], index: 0, kind: input, shape index: {}]
  %s1 = inlined_call_operand.hbm [shape: f32[4,32,32], index: 1, kind: input, shape index: {}]
  %s2 = inlined_call_operand.hbm [shape: f32[6,32], index: 2, kind: input, shape index: {}]
  %s3 = inlined_call_operand.hbm [shape: f32[4,16,16], index: 3, kind: input, shape index: {}]
  %s4 = inlined_call_operand.hbm [shape: f32[8,16,32], index: 4, kind: output, shape index: {}]
  %s5 = sld [smem:[#allocation0]]
  $region65: #{tpu_custom_call.1} parent=0
    _
  %s7 = ssub.s32 1, %s5
  %s8 = scalar_select 0, %s7, %s5
  $region1: #{tpu_custom_call.1} parent=0
    #allocation2 [shape = 'u8[196608]{0}', space=vmem, size = 0x30000, scoped, tag = 'input window, operand 0']
    #allocation3 [shape = 's32[2]{0}', space=sflag, size = 0x8, scoped, tag = 'scoped memory for tpu_custom_call.1']
    #allocation4 [shape = 's32[2]{0}', space=sflag, size = 0x8, scoped, tag = 'scoped memory for tpu_custom_call.1']
    #allocation5 [shape = 'u8[65536]{0}', space=vmem, size = 0x10000, scoped, tag = 'input window, operand 1, single buffered']
    #allocation6 [shape = 's32[1]{0}', space=sflag, size = 0x4, scoped, tag = 'scoped memory for tpu_custom_call.1']
    #allocation7 [shape = 'u8[4096]{0}', space=vmem, size = 0x1000, scoped, tag = 'input window, operand 2, single buffered']
    #allocation8 [shape = 'u8[32768]{0}', space=vmem, size = 0x8000, scoped, tag = 'input window, operand 3, single buffered']
    #allocation9 [shape = 's32[1]{0}', space=sflag, size = 0x4, scoped, tag = 'scoped memory for tpu_custom_call.1']
    #allocation10 [shape = 'u8[65536]{0}', space=vmem, size = 0x10000, scoped, tag = 'output window, operand 0']
    %9 = vsyncpa [#allocation3], 0
    %s10 = scalar_lea.sflag [#allocation3], 1
    %11 = vsyncpa %s10, 0
    %12 = vsyncpa [#allocation6], 0
    %13 = vsyncpa [#allocation9], 0
    %14 = vsyncpa [#allocation4], 0
    %s15 = scalar_lea.sflag [#allocation4], 1
    %16 = vsyncpa %s15, 0
    loop: start=0, step=1, limit=4
    $region2: #{tpu_custom_call.1} parent=1 // loop_pre_header
      _
    $region3: #{tpu_custom_call.1} parent=1 // loop_header
      %s18 = sphi 0, %s22
      %p19 = scmp.ge.s32.totalorder %s18, 4
      %s28 = sphi 0, %s30
      %s31 = sphi 0, %s28
      %s32 = sphi 0, %s31
      %s48 = sphi 0, %s32
      %s52 = sphi 0, %s52
      %s54 = sphi 0, %s52
      %s55 = sphi 0, %s54
      %s69 = sphi 0, %s55
      %s73 = sphi 0, %s73
      %s75 = sphi 0, %s73
      %s76 = sphi 0, %s75
      %s90 = sphi 0, %s76
      %s94 = sphi 0, %s94
      %s96 = sphi 0, %s94
      %s97 = sphi 0, %s96
      %s111 = sphi 0, %s97
      %s117 = sphi 0, %s119
      %s120 = sphi 0, %s117
      %s121 = sphi 0, %s120
      %s137 = sphi 0, %s121
    $region4: #{tpu_custom_call.1} parent=1 // loop_header_branch
      %21 = sbr.rel (%p19) target = $region8
    $region5: #{tpu_custom_call.1} parent=1 // loop_body
      %s23 = ssub.s32 %s18, 1
      %s24 = ssub.s32 %s18, 2
      %s25 = sadd.s32 %s18, 1
      %s26 = ssub.s32 %s18, %s25
      %p27 = scmp.eq.s32.totalorder %s26, 0
      %s29 = sadd.s32 %s28, 1
      %s30 = scalar_select %p27, %s28, %s29
      %p33 = pneg %p27
      %p34 = scmp.eq.s32.totalorder %s18, 1
      %p35 = por %p33, %p34
      %p36 = scmp.ne.s32.totalorder %s28, %s31
      %p37 = scmp.eq.s32.totalorder %s18, 0
      %p38 = por %p36, %p37
      %p39 = scmp.ne.s32.totalorder %s28, %s31
      %p40 = scmp.eq.s32.totalorder %s23, 1
      %p41 = por %p39, %p40
      %p42 = scmp.ne.s32.totalorder %s31, %s32
      %p43 = scmp.eq.s32.totalorder %s23, 0
      %p44 = por %p42, %p43
      %p45 = scmp.ne.s32.totalorder %s31, %s32
      %p46 = scmp.eq.s32.totalorder %s24, 1
      %p47 = por %p45, %p46
      %p49 = scmp.ne.s32.totalorder %s32, %s48
      %p50 = scmp.eq.s32.totalorder %s24, 0
      %p51 = por %p49, %p50
      %s53 = sadd.s32 %s52, 1
      %p56 = scmp.eq.s32.totalorder %s18, 1
      %p57 = scmp.ne.s32.totalorder %s52, %s54
      %p58 = scmp.eq.s32.totalorder %s18, 0
      %p59 = por %p57, %p58
      %p60 = scmp.ne.s32.totalorder %s52, %s54
      %p61 = scmp.eq.s32.totalorder %s23, 1
      %p62 = por %p60, %p61
      %p63 = scmp.ne.s32.totalorder %s54, %s55
      %p64 = scmp.eq.s32.totalorder %s23, 0
      %p65 = por %p63, %p64
      %p66 = scmp.ne.s32.totalorder %s54, %s55
      %p67 = scmp.eq.s32.totalorder %s24, 1
      %p68 = por %p66, %p67
      %p70 = scmp.ne.s32.totalorder %s55, %s69
      %p71 = scmp.eq.s32.totalorder %s24, 0
      %p72 = por %p70, %p71
      %s74 = sadd.s32 %s73, 1
      %p77 = scmp.eq.s32.totalorder %s18, 1
      %p78 = scmp.ne.s32.totalorder %s73, %s75
      %p79 = scmp.eq.s32.totalorder %s18, 0
      %p80 = por %p78, %p79
      %p81 = scmp.ne.s32.totalorder %s73, %s75
      %p82 = scmp.eq.s32.totalorder %s23, 1
      %p83 = por %p81, %p82
      %p84 = scmp.ne.s32.totalorder %s75, %s76
      %p85 = scmp.eq.s32.totalorder %s23, 0
      %p86 = por %p84, %p85
      %p87 = scmp.ne.s32.totalorder %s75, %s76
      %p88 = scmp.eq.s32.totalorder %s24, 1
      %p89 = por %p87, %p88
      %p91 = scmp.ne.s32.totalorder %s76, %s90
      %p92 = scmp.eq.s32.totalorder %s24, 0
      %p93 = por %p91, %p92
      %s95 = sadd.s32 %s94, 1
      %p98 = scmp.eq.s32.totalorder %s18, 1
      %p99 = scmp.ne.s32.totalorder %s94, %s96
      %p100 = scmp.eq.s32.totalorder %s18, 0
      %p101 = por %p99, %p100
      %p102 = scmp.ne.s32.totalorder %s94, %s96
      %p103 = scmp.eq.s32.totalorder %s23, 1
      %p104 = por %p102, %p103
      %p105 = scmp.ne.s32.totalorder %s96, %s97
      %p106 = scmp.eq.s32.totalorder %s23, 0
      %p107 = por %p105, %p106
      %p108 = scmp.ne.s32.totalorder %s96, %s97
      %p109 = scmp.eq.s32.totalorder %s24, 1
      %p110 = por %p108, %p109
      %p112 = scmp.ne.s32.totalorder %s97, %s111
      %p113 = scmp.eq.s32.totalorder %s24, 0
      %p114 = por %p112, %p113
      %s115 = ssub.s32 %s18, %s25
      %p116 = scmp.eq.s32.totalorder %s115, 0
      %s118 = sadd.s32 %s117, 1
      %s119 = scalar_select %p116, %s117, %s118
      %p122 = pneg %p116
      %p123 = scmp.eq.s32.totalorder %s18, 1
      %p124 = por %p122, %p123
      %p125 = scmp.ne.s32.totalorder %s117, %s120
      %p126 = scmp.eq.s32.totalorder %s18, 0
      %p127 = por %p125, %p126
      %p128 = scmp.ne.s32.totalorder %s117, %s120
      %p129 = scmp.eq.s32.totalorder %s23, 1
      %p130 = por %p128, %p129
      %p131 = scmp.ne.s32.totalorder %s120, %s121
      %p132 = scmp.eq.s32.totalorder %s23, 0
      %p133 = por %p131, %p132
      %p134 = scmp.ne.s32.totalorder %s120, %s121
      %p135 = scmp.eq.s32.totalorder %s24, 1
      %p136 = por %p134, %p135
      %p138 = scmp.ne.s32.totalorder %s121, %s137
      %p139 = scmp.eq.s32.totalorder %s24, 0
      %p140 = por %p138, %p139
      %p141 = scmp.le.s32.totalorder 1, %s18
      %p142 = scmp.lt.s32.totalorder %s18, 3
      %p143 = pnand %p141, %p142
      %p144 = pneg %p143
      // Predicated region
      $region9: #{tpu_custom_call.1} parent=5 // pred_check
        _
      $region10: #{tpu_custom_call.1} parent=5 // pred_check_branch
        %146 = sbr.rel (%p143) target = $region12
      $region11: #{tpu_custom_call.1} parent=5 // pred_region
        %s147 = ssub.s32 %s18, 1
        // Predicated region
        $region13: #{tpu_custom_call.1} parent=11 // pred_check
          %p148 = pneg %p65
        $region14: #{tpu_custom_call.1} parent=11 // pred_check_branch
          %150 = sbr.rel (%p148) target = $region16
        $region15: #{tpu_custom_call.1} parent=11 // pred_region
          %s152 = ssub.s32 2048, 2048
          %153 = vsyncadd [#allocation6], %s152
          %s154 = sshll.u32 [#allocation5], 4
          %s155 = int_to_ptr.vmem [resolvable:$true] %s154
          %160 = dma.hbm_to_vmem [thread:$0]  %s1, 2048, %s155, [#allocation6], 128, 128, 8
        $region16: #{tpu_custom_call.1} parent=11 // pred_fallthru
          _
        // Predicated region
        $region17: #{tpu_custom_call.1} parent=11 // pred_check
          %p161 = pneg %p86
        $region18: #{tpu_custom_call.1} parent=11 // pred_check_branch
          %163 = sbr.rel (%p161) target = $region20
        $region19: #{tpu_custom_call.1} parent=11 // pred_region
          %s165 = ssub.s32 128, 128
          %166 = vsyncadd [#allocation6], %s165
          %s168 = sshll.u32 [#allocation7], 4
          %s169 = int_to_ptr.vmem [resolvable:$true] %s168
          %171 = dma.hbm_to_vmem [thread:$0]  %s2, 128, %s169, [#allocation6]
        $region20: #{tpu_custom_call.1} parent=11 // pred_fallthru
          _
        // Predicated region
        $region21: #{tpu_custom_call.1} parent=11 // pred_check
          %p172 = pneg %p107
        $region22: #{tpu_custom_call.1} parent=11 // pred_check_branch
          %174 = sbr.rel (%p172) target = $region24
        $region23: #{tpu_custom_call.1} parent=11 // pred_region
          %s176 = ssub.s32 1024, 1024
          %177 = vsyncadd [#allocation9], %s176
          %s178 = sshll.u32 [#allocation8], 4
          %s179 = int_to_ptr.vmem [resolvable:$true] %s178
          %184 = dma.hbm_to_vmem [thread:$0]  %s3, 1024, %s179, [#allocation9], 128, 128, 8
        $region24: #{tpu_custom_call.1} parent=11 // pred_fallthru
          _
      $region12: #{tpu_custom_call.1} parent=5 // pred_fallthru
        _
      %p185 = scmp.lt.s32.totalorder %s18, 2
      // Predicated region
      $region25: #{tpu_custom_call.1} parent=5 // pred_check
        %p186 = pneg %p185
      $region26: #{tpu_custom_call.1} parent=5 // pred_check_branch
        %188 = sbr.rel (%p186) target = $region28
      $region27: #{tpu_custom_call.1} parent=5 // pred_region
        // Predicated region
        $region29: #{tpu_custom_call.1} parent=27 // pred_check
          %p189 = pneg %p38
        $region30: #{tpu_custom_call.1} parent=27 // pred_check_branch
          %191 = sbr.rel (%p189) target = $region32
        $region31: #{tpu_custom_call.1} parent=27 // pred_region
          #allocation12 [shape = 'u32[6]{0}', space=smem, size = 0x18, scoped, tag = 'DMA stride descriptor']
          %s192 = sand.u32 %s28, 1
          %s193 = scalar_lea.sflag [#allocation3], %s192
          %s194 = sand.u32 %s28, 1
          %s195 = smul.addr %s194, 192
          %s196 = scalar_lea.vmem [#allocation2], %s195
          %s197 = smul.u32 4, %s18
          %s199 = ssub.s32 3072, 3072
          %200 = vsyncadd %s193, %s199
          %s201 = smul.addr %s197, 2
          %s202 = smul.addr %s201, 128
          %s203 = scalar_lea.hbm %s0, %s202
          %s205 = sshll.u32 1, 14
          %s206 = sxor.u32 4294967295, %s205
          %s208 = sld [smem:[#allocation0]]
          %s209 = sadd.s32 2, %s208
          %s211 = sshll.u32 7, 26
          %s212 = sxor.u32 4294967295, %s211
          %s213 = sand.u32 0, %s212
          %s214 = sshll.u32 %s209, 26
          %s215 = sor.u32 %s213, %s214
          %s216 = sshll.u32 %s196, 4
          %s217 = int_to_ptr.vmem [resolvable:$true] %s216
          %223 = sst [smem:[#allocation12]] 2048
          %s224 = scalar_lea.smem [#allocation12], 1
          %225 = sst [smem:[%s224]] 1024
          %s226 = scalar_lea.smem [#allocation12], 2
          %227 = sst [smem:[%s226]] 8
          %s228 = scalar_lea.smem [#allocation12], 3
          %229 = sst [smem:[%s228]] 128
          %s230 = scalar_lea.smem [#allocation12], 4
          %231 = sst [smem:[%s230]] 128
          %s232 = scalar_lea.smem [#allocation12], 5
          %233 = sst [smem:[%s232]] 8
          %235 = dma.general %s203, 3072, %s217, %s193, [#allocation11], [#allocation12], %s215, 0
        $region32: #{tpu_custom_call.1} parent=27 // pred_fallthru
          _
      $region28: #{tpu_custom_call.1} parent=5 // pred_fallthru
        _
      %p236 = scmp.le.s32.totalorder 1, %s18
      %p237 = scmp.lt.s32.totalorder %s18, 3
      %p238 = pnand %p236, %p237
      %p239 = pneg %p238
      // Predicated region
      $region33: #{tpu_custom_call.1} parent=5 // pred_check
        _
      $region34: #{tpu_custom_call.1} parent=5 // pred_check_branch
        %241 = sbr.rel (%p238) target = $region36
      $region35: #{tpu_custom_call.1} parent=5 // pred_region
        %s242 = ssub.s32 %s18, 1
        %s243 = sand.u32 %s31, 1
        %s244 = scalar_lea.sflag [#allocation3], %s243
        %s245 = sand.u32 %s31, 1
        %s246 = smul.addr %s245, 192
        %s247 = scalar_lea.vmem [#allocation2], %s246
        // Predicated region
        $region37: #{tpu_custom_call.1} parent=35 // pred_check
          %p248 = pneg %p44
        $region38: #{tpu_custom_call.1} parent=35 // pred_check_branch
          %250 = sbr.rel (%p248) target = $region40
        $region39: #{tpu_custom_call.1} parent=35 // pred_region
          %251 = dma.done %s244, 3072
        $region40: #{tpu_custom_call.1} parent=35 // pred_fallthru
          _
        // Predicated region
        $region41: #{tpu_custom_call.1} parent=35 // pred_check
          %p252 = pneg %p65
        $region42: #{tpu_custom_call.1} parent=35 // pred_check_branch
          %254 = sbr.rel (%p252) target = $region44
        $region43: #{tpu_custom_call.1} parent=35 // pred_region
          %255 = dma.done [#allocation6], 2048
        $region44: #{tpu_custom_call.1} parent=35 // pred_fallthru
          _
        // Predicated region
        $region45: #{tpu_custom_call.1} parent=35 // pred_check
          %p256 = pneg %p86
        $region46: #{tpu_custom_call.1} parent=35 // pred_check_branch
          %258 = sbr.rel (%p256) target = $region48
        $region47: #{tpu_custom_call.1} parent=35 // pred_region
          %259 = dma.done [#allocation6], 128
        $region48: #{tpu_custom_call.1} parent=35 // pred_fallthru
          _
        // Predicated region
        $region49: #{tpu_custom_call.1} parent=35 // pred_check
          %p260 = pneg %p107
        $region50: #{tpu_custom_call.1} parent=35 // pred_check_branch
          %262 = sbr.rel (%p260) target = $region52
        $region51: #{tpu_custom_call.1} parent=35 // pred_region
          %263 = dma.done [#allocation9], 1024
        $region52: #{tpu_custom_call.1} parent=35 // pred_fallthru
          _
        %s264 = sand.u32 %s31, 1
        %s265 = scalar_lea.sflag [#allocation3], %s264
        %s266 = sand.u32 %s31, 1
        %s267 = smul.addr %s266, 192
        %s268 = scalar_lea.vmem [#allocation2], %s267
        %p269 = pneg %p44
        %p270 = pneg %p41
        %p271 = pneg %p65
        %p272 = pneg %p62
        %p273 = pneg %p86
        %p274 = pneg %p83
        %p275 = pneg %p107
        %p276 = pneg %p104
        %p277 = pneg %p133
        %p278 = pneg %p130
        %s279 = sand.u32 %s120, 1
        %s280 = scalar_lea.sflag [#allocation4], %s279
        %s281 = sand.u32 %s120, 1
        %s282 = smul.addr %s281, 64
        %s283 = scalar_lea.vmem [#allocation10], %s282
        %s284 = smul.u32 4, %s23
        %s285 = smul.u32 4, %s23
        %v286 = vld [vmem:[%s247] sm:$0xff]
        %v287 = vld [vmem:[%s247 + $0x8] sm:$0xff]
        %v288 = vld [vmem:[%s247 + $0x10] sm:$0xff]
        %v289 = vld [vmem:[%s247 + $0x18] sm:$0xff]
        %v290 = vld [vmem:[%s247 + $0x20] sm:$0xff]
        %v291 = vld [vmem:[%s247 + $0x28] sm:$0xff]
        %v292 = vld [vmem:[%s247 + $0x30] sm:$0xff]
        %v293 = vld [vmem:[%s247 + $0x38] sm:$0xff]
        %v294 = vld [vmem:[%s247 + $0x40] sm:$0xff]
        %v295 = vld [vmem:[%s247 + $0x48] sm:$0xff]
        %v296 = vld [vmem:[%s247 + $0x50] sm:$0xff]
        %v297 = vld [vmem:[%s247 + $0x58] sm:$0xff]
        %v298 = vld [vmem:[%s247 + $0x60] sm:$0xff]
        %v299 = vld [vmem:[%s247 + $0x68] sm:$0xff]
        %v300 = vld [vmem:[%s247 + $0x70] sm:$0xff]
        %v301 = vld [vmem:[%s247 + $0x78] sm:$0xff]
        %v302 = vld [vmem:[%s247 + $0x80] sm:$0xff]
        %v303 = vld [vmem:[%s247 + $0x88] sm:$0xff]
        %v304 = vld [vmem:[%s247 + $0x90] sm:$0xff]
        %v305 = vld [vmem:[%s247 + $0x98] sm:$0xff]
        %v306 = vld [vmem:[%s247 + $0xa0] sm:$0xff]
        %v307 = vld [vmem:[%s247 + $0xa8] sm:$0xff]
        %v308 = vld [vmem:[%s247 + $0xb0] sm:$0xff]
        %v309 = vld [vmem:[%s247 + $0xb8] sm:$0xff]
        %v310 = vld [vmem:[#allocation7] sm:$0x3f]
        %v311 = vld [vmem:[#allocation5] sm:$0xff]
        %v312 = vld [vmem:[#allocation5 + $0x8] sm:$0xff]
        %v313 = vld [vmem:[#allocation5 + $0x10] sm:$0xff]
        %v314 = vld [vmem:[#allocation5 + $0x18] sm:$0xff]
        %v315 = vld [vmem:[#allocation5 + $0x20] sm:$0xff]
        %v316 = vld [vmem:[#allocation5 + $0x28] sm:$0xff]
        %v317 = vld [vmem:[#allocation5 + $0x30] sm:$0xff]
        %v318 = vld [vmem:[#allocation5 + $0x38] sm:$0xff]
        %v319 = vld [vmem:[#allocation5 + $0x40] sm:$0xff]
        %v320 = vld [vmem:[#allocation5 + $0x48] sm:$0xff]
        %v321 = vld [vmem:[#allocation5 + $0x50] sm:$0xff]
        %v322 = vld [vmem:[#allocation5 + $0x58] sm:$0xff]
        %v323 = vld [vmem:[#allocation5 + $0x60] sm:$0xff]
        %v324 = vld [vmem:[#allocation5 + $0x68] sm:$0xff]
        %v325 = vld [vmem:[#allocation5 + $0x70] sm:$0xff]
        %v326 = vld [vmem:[#allocation5 + $0x78] sm:$0xff]
        %v327 = vld [vmem:[#allocation8] sm:$0xff]
        %v328 = vld [vmem:[#allocation8 + $0x8] sm:$0xff]
        %v329 = vld [vmem:[#allocation8 + $0x10] sm:$0xff]
        %v330 = vld [vmem:[#allocation8 + $0x18] sm:$0xff]
        %v331 = vld [vmem:[#allocation8 + $0x20] sm:$0xff]
        %v332 = vld [vmem:[#allocation8 + $0x28] sm:$0xff]
        %v333 = vld [vmem:[#allocation8 + $0x30] sm:$0xff]
        %v334 = vld [vmem:[#allocation8 + $0x38] sm:$0xff]
        %vm335 = vcmask 261120
        %v336 = vsel %vm335, %v286, 0.0
        %337 = vadd.xlane.f32.xlu0 %v336
        %v338 = vpop.xlane.xlu0 %337
        %v339 = vsel %vm335, %v287, 0.0
        %340 = vadd.xlane.f32.xlu0 %v339
        %v341 = vpop.xlane.xlu0 %340
        %v342 = vsel %vm335, %v288, 0.0
        %343 = vadd.xlane.f32.xlu0 %v342
        %v344 = vpop.xlane.xlu0 %343
        %v345 = vsel %vm335, %v289, 0.0
        %346 = vadd.xlane.f32.xlu0 %v345
        %v347 = vpop.xlane.xlu0 %346
        %v348 = vsel %vm335, %v290, 0.0
        %349 = vadd.xlane.f32.xlu0 %v348
        %v350 = vpop.xlane.xlu0 %349
        %v351 = vsel %vm335, %v291, 0.0
        %352 = vadd.xlane.f32.xlu0 %v351
        %v353 = vpop.xlane.xlu0 %352
        %v354 = vsel %vm335, %v292, 0.0
        %355 = vadd.xlane.f32.xlu0 %v354
        %v356 = vpop.xlane.xlu0 %355
        %v357 = vsel %vm335, %v293, 0.0
        %358 = vadd.xlane.f32.xlu0 %v357
        %v359 = vpop.xlane.xlu0 %358
        %v360 = vsel %vm335, %v294, 0.0
        %361 = vadd.xlane.f32.xlu0 %v360
        %v362 = vpop.xlane.xlu0 %361
        %v363 = vsel %vm335, %v295, 0.0
        %364 = vadd.xlane.f32.xlu0 %v363
        %v365 = vpop.xlane.xlu0 %364
        %v366 = vsel %vm335, %v296, 0.0
        %367 = vadd.xlane.f32.xlu0 %v366
        %v368 = vpop.xlane.xlu0 %367
        %v369 = vsel %vm335, %v297, 0.0
        %370 = vadd.xlane.f32.xlu0 %v369
        %v371 = vpop.xlane.xlu0 %370
        %v372 = vsel %vm335, %v298, 0.0
        %373 = vadd.xlane.f32.xlu0 %v372
        %v374 = vpop.xlane.xlu0 %373
        %v375 = vsel %vm335, %v299, 0.0
        %376 = vadd.xlane.f32.xlu0 %v375
        %v377 = vpop.xlane.xlu0 %376
        %v378 = vsel %vm335, %v300, 0.0
        %379 = vadd.xlane.f32.xlu0 %v378
        %v380 = vpop.xlane.xlu0 %379
        %v381 = vsel %vm335, %v301, 0.0
        %382 = vadd.xlane.f32.xlu0 %v381
        %v383 = vpop.xlane.xlu0 %382
        %v384 = vsel %vm335, %v302, 0.0
        %385 = vadd.xlane.f32.xlu0 %v384
        %v386 = vpop.xlane.xlu0 %385
        %v387 = vsel %vm335, %v303, 0.0
        %388 = vadd.xlane.f32.xlu0 %v387
        %v389 = vpop.xlane.xlu0 %388
        %v390 = vsel %vm335, %v304, 0.0
        %391 = vadd.xlane.f32.xlu0 %v390
        %v392 = vpop.xlane.xlu0 %391
        %v393 = vsel %vm335, %v305, 0.0
        %394 = vadd.xlane.f32.xlu0 %v393
        %v395 = vpop.xlane.xlu0 %394
        %v396 = vsel %vm335, %v306, 0.0
        %397 = vadd.xlane.f32.xlu0 %v396
        %v398 = vpop.xlane.xlu0 %397
        %v399 = vsel %vm335, %v307, 0.0
        %400 = vadd.xlane.f32.xlu0 %v399
        %v401 = vpop.xlane.xlu0 %400
        %v402 = vsel %vm335, %v308, 0.0
        %403 = vadd.xlane.f32.xlu0 %v402
        %v404 = vpop.xlane.xlu0 %403
        %v405 = vsel %vm335, %v309, 0.0
        %406 = vadd.xlane.f32.xlu0 %v405
        %v407 = vpop.xlane.xlu0 %406
        %v408 = vrcp.pop 32.0
        %v409 = vmul.f32 %v338, %v408
        %v410 = vmul.f32 %v341, %v408
        %v411 = vmul.f32 %v344, %v408
        %v412 = vmul.f32 %v347, %v408
        %v413 = vmul.f32 %v350, %v408
        %v414 = vmul.f32 %v353, %v408
        %v415 = vmul.f32 %v356, %v408
        %v416 = vmul.f32 %v359, %v408
        %v417 = vmul.f32 %v362, %v408
        %v418 = vmul.f32 %v365, %v408
        %v419 = vmul.f32 %v368, %v408
        %v420 = vmul.f32 %v371, %v408
        %v421 = vmul.f32 %v374, %v408
        %v422 = vmul.f32 %v377, %v408
        %v423 = vmul.f32 %v380, %v408
        %v424 = vmul.f32 %v383, %v408
        %v425 = vmul.f32 %v386, %v408
        %v426 = vmul.f32 %v389, %v408
        %v427 = vmul.f32 %v392, %v408
        %v428 = vmul.f32 %v395, %v408
        %v429 = vmul.f32 %v398, %v408
        %v430 = vmul.f32 %v401, %v408
        %v431 = vmul.f32 %v404, %v408
        %v432 = vmul.f32 %v407, %v408
        %v433 = vsub.f32 %v286, %v409
        %v434 = vsub.f32 %v287, %v410
        %v435 = vsub.f32 %v288, %v411
        %v436 = vsub.f32 %v289, %v412
        %v437 = vsub.f32 %v290, %v413
        %v438 = vsub.f32 %v291, %v414
        %v439 = vsub.f32 %v292, %v415
        %v440 = vsub.f32 %v293, %v416
        %v441 = vsub.f32 %v294, %v417
        %v442 = vsub.f32 %v295, %v418
        %v443 = vsub.f32 %v296, %v419
        %v444 = vsub.f32 %v297, %v420
        %v445 = vsub.f32 %v298, %v421
        %v446 = vsub.f32 %v299, %v422
        %v447 = vsub.f32 %v300, %v423
        %v448 = vsub.f32 %v301, %v424
        %v449 = vsub.f32 %v302, %v425
        %v450 = vsub.f32 %v303, %v426
        %v451 = vsub.f32 %v304, %v427
        %v452 = vsub.f32 %v305, %v428
        %v453 = vsub.f32 %v306, %v429
        %v454 = vsub.f32 %v307, %v430
        %v455 = vsub.f32 %v308, %v431
        %v456 = vsub.f32 %v309, %v432
        %v457 = vmul.f32 %v433, %v433
        %v458 = vmul.f32 %v434, %v434
        %v459 = vmul.f32 %v435, %v435
        %v460 = vmul.f32 %v436, %v436
        %v461 = vmul.f32 %v437, %v437
        %v462 = vmul.f32 %v438, %v438
        %v463 = vmul.f32 %v439, %v439
        %v464 = vmul.f32 %v440, %v440
        %v465 = vmul.f32 %v441, %v441
        %v466 = vmul.f32 %v442, %v442
        %v467 = vmul.f32 %v443, %v443
        %v468 = vmul.f32 %v444, %v444
        %v469 = vmul.f32 %v445, %v445
        %v470 = vmul.f32 %v446, %v446
        %v471 = vmul.f32 %v447, %v447
        %v472 = vmul.f32 %v448, %v448
        %v473 = vmul.f32 %v449, %v449
        %v474 = vmul.f32 %v450, %v450
        %v475 = vmul.f32 %v451, %v451
        %v476 = vmul.f32 %v452, %v452
        %v477 = vmul.f32 %v453, %v453
        %v478 = vmul.f32 %v454, %v454
        %v479 = vmul.f32 %v455, %v455
        %v480 = vmul.f32 %v456, %v456
        %v481 = vsel %vm335, %v457, 0.0
        %482 = vadd.xlane.f32.xlu0 %v481
        %v483 = vpop.xlane.xlu0 %482
        %v484 = vsel %vm335, %v458, 0.0
        %485 = vadd.xlane.f32.xlu0 %v484
        %v486 = vpop.xlane.xlu0 %485
        %v487 = vsel %vm335, %v459, 0.0
        %488 = vadd.xlane.f32.xlu0 %v487
        %v489 = vpop.xlane.xlu0 %488
        %v490 = vsel %vm335, %v460, 0.0
        %491 = vadd.xlane.f32.xlu0 %v490
        %v492 = vpop.xlane.xlu0 %491
        %v493 = vsel %vm335, %v461, 0.0
        %494 = vadd.xlane.f32.xlu0 %v493
        %v495 = vpop.xlane.xlu0 %494
        %v496 = vsel %vm335, %v462, 0.0
        %497 = vadd.xlane.f32.xlu0 %v496
        %v498 = vpop.xlane.xlu0 %497
        %v499 = vsel %vm335, %v463, 0.0
        %500 = vadd.xlane.f32.xlu0 %v499
        %v501 = vpop.xlane.xlu0 %500
        %v502 = vsel %vm335, %v464, 0.0
        %503 = vadd.xlane.f32.xlu0 %v502
        %v504 = vpop.xlane.xlu0 %503
        %v505 = vsel %vm335, %v465, 0.0
        %506 = vadd.xlane.f32.xlu0 %v505
        %v507 = vpop.xlane.xlu0 %506
        %v508 = vsel %vm335, %v466, 0.0
        %509 = vadd.xlane.f32.xlu0 %v508
        %v510 = vpop.xlane.xlu0 %509
        %v511 = vsel %vm335, %v467, 0.0
        %512 = vadd.xlane.f32.xlu0 %v511
        %v513 = vpop.xlane.xlu0 %512
        %v514 = vsel %vm335, %v468, 0.0
        %515 = vadd.xlane.f32.xlu0 %v514
        %v516 = vpop.xlane.xlu0 %515
        %v517 = vsel %vm335, %v469, 0.0
        %518 = vadd.xlane.f32.xlu0 %v517
        %v519 = vpop.xlane.xlu0 %518
        %v520 = vsel %vm335, %v470, 0.0
        %521 = vadd.xlane.f32.xlu0 %v520
        %v522 = vpop.xlane.xlu0 %521
        %v523 = vsel %vm335, %v471, 0.0
        %524 = vadd.xlane.f32.xlu0 %v523
        %v525 = vpop.xlane.xlu0 %524
        %v526 = vsel %vm335, %v472, 0.0
        %527 = vadd.xlane.f32.xlu0 %v526
        %v528 = vpop.xlane.xlu0 %527
        %v529 = vsel %vm335, %v473, 0.0
        %530 = vadd.xlane.f32.xlu0 %v529
        %v531 = vpop.xlane.xlu0 %530
        %v532 = vsel %vm335, %v474, 0.0
        %533 = vadd.xlane.f32.xlu0 %v532
        %v534 = vpop.xlane.xlu0 %533
        %v535 = vsel %vm335, %v475, 0.0
        %536 = vadd.xlane.f32.xlu0 %v535
        %v537 = vpop.xlane.xlu0 %536
        %v538 = vsel %vm335, %v476, 0.0
        %539 = vadd.xlane.f32.xlu0 %v538
        %v540 = vpop.xlane.xlu0 %539
        %v541 = vsel %vm335, %v477, 0.0
        %542 = vadd.xlane.f32.xlu0 %v541
        %v543 = vpop.xlane.xlu0 %542
        %v544 = vsel %vm335, %v478, 0.0
        %545 = vadd.xlane.f32.xlu0 %v544
        %v546 = vpop.xlane.xlu0 %545
        %v547 = vsel %vm335, %v479, 0.0
        %548 = vadd.xlane.f32.xlu0 %v547
        %v549 = vpop.xlane.xlu0 %548
        %v550 = vsel %vm335, %v480, 0.0
        %551 = vadd.xlane.f32.xlu0 %v550
        %v552 = vpop.xlane.xlu0 %551
        %v553 = vmul.f32 %v483, %v408
        %v554 = vmul.f32 %v486, %v408
        %v555 = vmul.f32 %v489, %v408
        %v556 = vmul.f32 %v492, %v408
        %v557 = vmul.f32 %v495, %v408
        %v558 = vmul.f32 %v498, %v408
        %v559 = vmul.f32 %v501, %v408
        %v560 = vmul.f32 %v504, %v408
        %v561 = vmul.f32 %v507, %v408
        %v562 = vmul.f32 %v510, %v408
        %v563 = vmul.f32 %v513, %v408
        %v564 = vmul.f32 %v516, %v408
        %v565 = vmul.f32 %v519, %v408
        %v566 = vmul.f32 %v522, %v408
        %v567 = vmul.f32 %v525, %v408
        %v568 = vmul.f32 %v528, %v408
        %v569 = vmul.f32 %v531, %v408
        %v570 = vmul.f32 %v534, %v408
        %v571 = vmul.f32 %v537, %v408
        %v572 = vmul.f32 %v540, %v408
        %v573 = vmul.f32 %v543, %v408
        %v574 = vmul.f32 %v546, %v408
        %v575 = vmul.f32 %v549, %v408
        %v576 = vmul.f32 %v552, %v408
        %v577 = vadd.f32 %v553, 1e-05
        %v578 = vadd.f32 %v554, 1e-05
        %v579 = vadd.f32 %v555, 1e-05
        %v580 = vadd.f32 %v556, 1e-05
        %v581 = vadd.f32 %v557, 1e-05
        %v582 = vadd.f32 %v558, 1e-05
        %v583 = vadd.f32 %v559, 1e-05
        %v584 = vadd.f32 %v560, 1e-05
        %v585 = vadd.f32 %v561, 1e-05
        %v586 = vadd.f32 %v562, 1e-05
        %v587 = vadd.f32 %v563, 1e-05
        %v588 = vadd.f32 %v564, 1e-05
        %v589 = vadd.f32 %v565, 1e-05
        %v590 = vadd.f32 %v566, 1e-05
        %v591 = vadd.f32 %v567, 1e-05
        %v592 = vadd.f32 %v568, 1e-05
        %v593 = vadd.f32 %v569, 1e-05
        %v594 = vadd.f32 %v570, 1e-05
        %v595 = vadd.f32 %v571, 1e-05
        %v596 = vadd.f32 %v572, 1e-05
        %v597 = vadd.f32 %v573, 1e-05
        %v598 = vadd.f32 %v574, 1e-05
        %v599 = vadd.f32 %v575, 1e-05
        %v600 = vadd.f32 %v576, 1e-05
        %v601 = vrsqrt.pop %v577
        %v602 = vrsqrt.pop %v578
        %v603 = vrsqrt.pop %v579
        %v604 = vrsqrt.pop %v580
        %v605 = vrsqrt.pop %v581
        %v606 = vrsqrt.pop %v582
        %v607 = vrsqrt.pop %v583
        %v608 = vrsqrt.pop %v584
        %v609 = vrsqrt.pop %v585
        %v610 = vrsqrt.pop %v586
        %v611 = vrsqrt.pop %v587
        %v612 = vrsqrt.pop %v588
        %v613 = vrsqrt.pop %v589
        %v614 = vrsqrt.pop %v590
        %v615 = vrsqrt.pop %v591
        %v616 = vrsqrt.pop %v592
        %v617 = vrsqrt.pop %v593
        %v618 = vrsqrt.pop %v594
        %v619 = vrsqrt.pop %v595
        %v620 = vrsqrt.pop %v596
        %v621 = vrsqrt.pop %v597
        %v622 = vrsqrt.pop %v598
        %v623 = vrsqrt.pop %v599
        %v624 = vrsqrt.pop %v600
        %v625 = vmul.f32 %v433, %v601
        %v626 = vmul.f32 %v434, %v602
        %v627 = vmul.f32 %v435, %v603
        %v628 = vmul.f32 %v436, %v604
        %v629 = vmul.f32 %v437, %v605
        %v630 = vmul.f32 %v438, %v606
        %v631 = vmul.f32 %v439, %v607
        %v632 = vmul.f32 %v440, %v608
        %v633 = vmul.f32 %v441, %v609
        %v634 = vmul.f32 %v442, %v610
        %v635 = vmul.f32 %v443, %v611
        %v636 = vmul.f32 %v444, %v612
        %v637 = vmul.f32 %v445, %v613
        %v638 = vmul.f32 %v446, %v614
        %v639 = vmul.f32 %v447, %v615
        %v640 = vmul.f32 %v448, %v616
        %v641 = vmul.f32 %v449, %v617
        %v642 = vmul.f32 %v450, %v618
        %v643 = vmul.f32 %v451, %v619
        %v644 = vmul.f32 %v452, %v620
        %v645 = vmul.f32 %v453, %v621
        %v646 = vmul.f32 %v454, %v622
        %v647 = vmul.f32 %v455, %v623
        %v648 = vmul.f32 %v456, %v624
        %v649 = vlaneseq
        %v650 = vshrl.u32 %v649, 7
        %v651 = vsub.s32 0, %v650
        %v652 = vrot.slane %v310, %v651
        %v653 = vmul.f32 %v625, %v652
        %v654 = vmul.f32 %v626, %v652
        %v655 = vmul.f32 %v627, %v652
        %v656 = vmul.f32 %v628, %v652
        %v657 = vmul.f32 %v629, %v652
        %v658 = vmul.f32 %v630, %v652
        %v659 = vmul.f32 %v631, %v652
        %v660 = vmul.f32 %v632, %v652
        %v661 = vmul.f32 %v633, %v652
        %v662 = vmul.f32 %v634, %v652
        %v663 = vmul.f32 %v635, %v652
        %v664 = vmul.f32 %v636, %v652
        %v665 = vmul.f32 %v637, %v652
        %v666 = vmul.f32 %v638, %v652
        %v667 = vmul.f32 %v639, %v652
        %v668 = vmul.f32 %v640, %v652
        %v669 = vmul.f32 %v641, %v652
        %v670 = vmul.f32 %v642, %v652
        %v671 = vmul.f32 %v643, %v652
        %v672 = vmul.f32 %v644, %v652
        %v673 = vmul.f32 %v645, %v652
        %v674 = vmul.f32 %v646, %v652
        %v675 = vmul.f32 %v647, %v652
        %v676 = vmul.f32 %v648, %v652
        %v677 = vlaneseq
        %v678 = vshrl.u32 %v677, 7
        %v679 = vsub.s32 1, %v678
        %v680 = vrot.slane %v310, %v679
        %v681 = vadd.f32 %v653, %v680
        %v682 = vadd.f32 %v654, %v680
        %v683 = vadd.f32 %v655, %v680
        %v684 = vadd.f32 %v656, %v680
        %v685 = vadd.f32 %v657, %v680
        %v686 = vadd.f32 %v658, %v680
        %v687 = vadd.f32 %v659, %v680
        %v688 = vadd.f32 %v660, %v680
        %v689 = vadd.f32 %v661, %v680
        %v690 = vadd.f32 %v662, %v680
        %v691 = vadd.f32 %v663, %v680
        %v692 = vadd.f32 %v664, %v680
        %v693 = vadd.f32 %v665, %v680
        %v694 = vadd.f32 %v666, %v680
        %v695 = vadd.f32 %v667, %v680
        %v696 = vadd.f32 %v668, %v680
        %v697 = vadd.f32 %v669, %v680
        %v698 = vadd.f32 %v670, %v680
        %v699 = vadd.f32 %v671, %v680
        %v700 = vadd.f32 %v672, %v680
        %v701 = vadd.f32 %v673, %v680
        %v702 = vadd.f32 %v674, %v680
        %v703 = vadd.f32 %v675, %v680
        %v704 = vadd.f32 %v676, %v680
        %v705 = vlaneseq
        %v706 = vshrl.u32 %v705, 7
        %v707 = vsub.s32 2, %v706
        %v708 = vrot.slane %v310, %v707
        %v710 = vsel %vm335, %v681, 0
        %v713 = vsel %vm335, %v682, 0
        %v716 = vsel %vm335, %v683, 0
        %v719 = vsel %vm335, %v684, 0
        %v722 = vsel %vm335, %v685, 0
        %v725 = vsel %vm335, %v686, 0
        %v728 = vsel %vm335, %v687, 0
        %v731 = vsel %vm335, %v688, 0
        %733 = vmatprep.subr.mxu0 0.0
        %734 = vmatpush1.msra.mxu0 %v311
        %735 = vmatprep.subr.mxu0 0.0
        %736 = vmatpush1.msra.mxu0 %v312
        %737 = vmatprep.subr.mxu0 0.0
        %738 = vmatpush1.msra.mxu0 %v313
        %739 = vmatprep.subr.mxu0 0.0
        %740 = vmatpush1.msra.mxu0 %v314
        %741 = vmatprep.subr.mxu0 0.0
        %742 = vmatpush1.msra.mxu0 0.0
        %743 = vmatprep.subr.mxu0 0.0
        %744 = vmatpush1.msra.mxu0 0.0
        %745 = vmatprep.subr.mxu0 0.0
        %746 = vmatpush1.msra.mxu0 0.0
        %747 = vmatprep.subr.mxu0 0.0
        %748 = vmatpush1.msra.mxu0 0.0
        %749 = vmatprep.subr.mxu0 0.0
        %750 = vmatpush1.msra.mxu0 0.0
        %751 = vmatprep.subr.mxu0 0.0
        %752 = vmatpush1.msra.mxu0 0.0
        %753 = vmatprep.subr.mxu0 0.0
        %754 = vmatpush1.msra.mxu0 0.0
        %755 = vmatprep.subr.mxu0 0.0
        %756 = vmatpush1.msra.mxu0 0.0
        %757 = vmatprep.subr.mxu0 0.0
        %758 = vmatpush1.msra.mxu0 0.0
        %759 = vmatprep.subr.mxu0 0.0
        %760 = vmatpush1.msra.mxu0 0.0
        %761 = vmatprep.subr.mxu0 0.0
        %762 = vmatpush1.msra.mxu0 0.0
        %763 = vmatprep.subr.mxu0 0.0
        %764 = vmatpush1.msra.mxu0 0.0
        %765 = vmatprep.subr.mxu0 0.0
        %766 = vmatpush1.msra.mxu0 0.0
        %767 = vmatprep.subr.mxu0 0.0
        %768 = vmatpush1.msra.mxu0 0.0
        %769 = vmatprep.subr.mxu0 0.0
        %770 = vmatpush1.msra.mxu0 0.0
        %771 = vmatprep.subr.mxu0 0.0
        %772 = vmatpush1.msra.mxu0 0.0
        %773 = vmatprep.subr.mxu0 0.0
        %774 = vmatpush1.msra.mxu0 0.0
        %775 = vmatprep.subr.mxu0 0.0
        %776 = vmatpush1.msra.mxu0 0.0
        %777 = vmatprep.subr.mxu0 0.0
        %778 = vmatpush1.msra.mxu0 0.0
        %779 = vmatprep.subr.mxu0 0.0
        %780 = vmatpush1.msra.mxu0 0.0
        %781 = vmatprep.subr.mxu0 0.0
        %782 = vmatpush1.msra.mxu0 0.0
        %783 = vmatprep.subr.mxu0 0.0
        %784 = vmatpush1.msra.mxu0 0.0
        %785 = vmatprep.subr.mxu0 0.0
        %786 = vmatpush1.msra.mxu0 0.0
        %787 = vmatprep.subr.mxu0 0.0
        %788 = vmatpush1.msra.mxu0 0.0
        %789 = vmatprep.subr.mxu0 0.0
        %790 = vmatpush1.msra.mxu0 0.0
        %791 = vmatprep.subr.mxu0 0.0
        %792 = vmatpush1.msra.mxu0 0.0
        %793 = vmatprep.subr.mxu0 0.0
        %794 = vmatpush1.msra.mxu0 0.0
        %795 = vmatprep.subr.mxu0 0.0
        %796 = vmatpush1.msra.mxu0 0.0
        %797 = vmatprep.mubr.f32.mxu0 0.0
        %798 = vmatmul.mubr.f32.gmra.mrb[0].mxu0 %v710
        %v799 = vpop.f32.mrb[0].mxu0
        %v800 = vadd.f32 %v708, %v799
        %v801 = vpop.f32.mrb[0].mxu0
        %802 = vmatprep.mubr.f32.mxu0 0.0
        %803 = vmatmul.mubr.f32.gmra.mrb[0].mxu0 %v713
        %v804 = vpop.f32.mrb[0].mxu0
        %v805 = vadd.f32 %v708, %v804
        %v806 = vpop.f32.mrb[0].mxu0
        %807 = vmatprep.mubr.f32.mxu0 0.0
        %808 = vmatmul.mubr.f32.gmra.mrb[0].mxu0 %v716
        %v809 = vpop.f32.mrb[0].mxu0
        %v810 = vadd.f32 %v708, %v809
        %v811 = vpop.f32.mrb[0].mxu0
        %812 = vmatprep.mubr.f32.mxu0 0.0
        %813 = vmatmul.mubr.f32.gmra.mrb[0].mxu0 %v719
        %v814 = vpop.f32.mrb[0].mxu0
        %v815 = vadd.f32 %v708, %v814
        %v816 = vpop.f32.mrb[0].mxu0
        %817 = vmatprep.mubr.f32.mxu0 0.0
        %818 = vmatmul.mubr.f32.gmra.mrb[0].mxu0 %v722
        %v819 = vpop.f32.mrb[0].mxu0
        %v820 = vadd.f32 %v708, %v819
        %v821 = vpop.f32.mrb[0].mxu0
        %822 = vmatprep.mubr.f32.mxu0 0.0
        %823 = vmatmul.mubr.f32.gmra.mrb[0].mxu0 %v725
        %v824 = vpop.f32.mrb[0].mxu0
        %v825 = vadd.f32 %v708, %v824
        %v826 = vpop.f32.mrb[0].mxu0
        %827 = vmatprep.mubr.f32.mxu0 0.0
        %828 = vmatmul.mubr.f32.gmra.mrb[0].mxu0 %v728
        %v829 = vpop.f32.mrb[0].mxu0
        %v830 = vadd.f32 %v708, %v829
        %v831 = vpop.f32.mrb[0].mxu0
        %832 = vmatprep.mubr.f32.mxu0 0.0
        %833 = vmatmul.mubr.f32.gmra.mrb[0].mxu0 %v731
        %v834 = vpop.f32.mrb[0].mxu0
        %v835 = vadd.f32 %v708, %v834
        %v836 = vpop.f32.mrb[0].mxu0
        %837 = vdwg.mxu0
        %v838 = vmul.f32 %v800, 0.35355338
        %v839 = vmul.f32 %v805, 0.35355338
        %v840 = vmul.f32 %v810, 0.35355338
        %v841 = vmul.f32 %v815, 0.35355338
        %v842 = vmul.f32 %v820, 0.35355338
        %v843 = vmul.f32 %v825, 0.35355338
        %v844 = vmul.f32 %v830, 0.35355338
        %v845 = vmul.f32 %v835, 0.35355338
        %v846 = vlaneseq
        %v847 = vshrl.u32 %v846, 7
        %v848 = vsub.s32 3, %v847
        %v849 = vrot.slane %v310, %v848
        %v851 = vsel %vm335, %v689, 0
        %v854 = vsel %vm335, %v690, 0
        %v857 = vsel %vm335, %v691, 0
        %v860 = vsel %vm335, %v692, 0
        %v863 = vsel %vm335, %v693, 0
        %v866 = vsel %vm335, %v694, 0
        %v869 = vsel %vm335, %v695, 0
        %v872 = vsel %vm335, %v696, 0
        %874 = vmatprep.subr.mxu0 0.0
        %875 = vmatpush1.msra.mxu0 %v315
        %876 = vmatprep.subr.mxu0 0.0
        %877 = vmatpush1.msra.mxu0 %v316
        %878 = vmatprep.subr.mxu0 0.0
        %879 = vmatpush1.msra.mxu0 %v317
        %880 = vmatprep.subr.mxu0 0.0
        %881 = vmatpush1.msra.mxu0 %v318
        %882 = vmatprep.subr.mxu0 0.0
        %883 = vmatpush1.msra.mxu0 0.0
        %884 = vmatprep.subr.mxu0 0.0
        %885 = vmatpush1.msra.mxu0 0.0
        %886 = vmatprep.subr.mxu0 0.0
        %887 = vmatpush1.msra.mxu0 0.0
        %888 = vmatprep.subr.mxu0 0.0
        %889 = vmatpush1.msra.mxu0 0.0
        %890 = vmatprep.subr.mxu0 0.0
        %891 = vmatpush1.msra.mxu0 0.0
        %892 = vmatprep.subr.mxu0 0.0
        %893 = vmatpush1.msra.mxu0 0.0
        %894 = vmatprep.subr.mxu0 0.0
        %895 = vmatpush1.msra.mxu0 0.0
        %896 = vmatprep.subr.mxu0 0.0
        %897 = vmatpush1.msra.mxu0 0.0
        %898 = vmatprep.subr.mxu0 0.0
        %899 = vmatpush1.msra.mxu0 0.0
        %900 = vmatprep.subr.mxu0 0.0
        %901 = vmatpush1.msra.mxu0 0.0
        %902 = vmatprep.subr.mxu0 0.0
        %903 = vmatpush1.msra.mxu0 0.0
        %904 = vmatprep.subr.mxu0 0.0
        %905 = vmatpush1.msra.mxu0 0.0
        %906 = vmatprep.subr.mxu0 0.0
        %907 = vmatpush1.msra.mxu0 0.0
        %908 = vmatprep.subr.mxu0 0.0
        %909 = vmatpush1.msra.mxu0 0.0
        %910 = vmatprep.subr.mxu0 0.0
        %911 = vmatpush1.msra.mxu0 0.0
        %912 = vmatprep.subr.mxu0 0.0
        %913 = vmatpush1.msra.mxu0 0.0
        %914 = vmatprep.subr.mxu0 0.0
        %915 = vmatpush1.msra.mxu0 0.0
        %916 = vmatprep.subr.mxu0 0.0
        %917 = vmatpush1.msra.mxu0 0.0
        %918 = vmatprep.subr.mxu0 0.0
        %919 = vmatpush1.msra.mxu0 0.0
        %920 = vmatprep.subr.mxu0 0.0
        %921 = vmatpush1.msra.mxu0 0.0
        %922 = vmatprep.subr.mxu0 0.0
        %923 = vmatpush1.msra.mxu0 0.0
        %924 = vmatprep.subr.mxu0 0.0
        %925 = vmatpush1.msra.mxu0 0.0
        %926 = vmatprep.subr.mxu0 0.0
        %927 = vmatpush1.msra.mxu0 0.0
        %928 = vmatprep.subr.mxu0 0.0
        %929 = vmatpush1.msra.mxu0 0.0
        %930 = vmatprep.subr.mxu0 0.0
        %931 = vmatpush1.msra.mxu0 0.0
        %932 = vmatprep.subr.mxu0 0.0
        %933 = vmatpush1.msra.mxu0 0.0
        %934 = vmatprep.subr.mxu0 0.0
        %935 = vmatpush1.msra.mxu0 0.0
        %936 = vmatprep.subr.mxu0 0.0
        %937 = vmatpush1.msra.mxu0 0.0
        %938 = vmatprep.mubr.f32.mxu0 0.0
        %939 = vmatmul.mubr.f32.gmra.mrb[0].mxu0 %v851
        %v940 = vpop.f32.mrb[0].mxu0
        %v941 = vadd.f32 %v849, %v940
        %v942 = vpop.f32.mrb[0].mxu0
        %943 = vmatprep.mubr.f32.mxu0 0.0
        %944 = vmatmul.mubr.f32.gmra.mrb[0].mxu0 %v854
        %v945 = vpop.f32.mrb[0].mxu0
        %v946 = vadd.f32 %v849, %v945
        %v947 = vpop.f32.mrb[0].mxu0
        %948 = vmatprep.mubr.f32.mxu0 0.0
        %949 = vmatmul.mubr.f32.gmra.mrb[0].mxu0 %v857
        %v950 = vpop.f32.mrb[0].mxu0
        %v951 = vadd.f32 %v849, %v950
        %v952 = vpop.f32.mrb[0].mxu0
        %953 = vmatprep.mubr.f32.mxu0 0.0
        %954 = vmatmul.mubr.f32.gmra.mrb[0].mxu0 %v860
        %v955 = vpop.f32.mrb[0].mxu0
        %v956 = vadd.f32 %v849, %v955
        %v957 = vpop.f32.mrb[0].mxu0
        %958 = vmatprep.mubr.f32.mxu0 0.0
        %959 = vmatmul.mubr.f32.gmra.mrb[0].mxu0 %v863
        %v960 = vpop.f32.mrb[0].mxu0
        %v961 = vadd.f32 %v849, %v960
        %v962 = vpop.f32.mrb[0].mxu0
        %963 = vmatprep.mubr.f32.mxu0 0.0
        %964 = vmatmul.mubr.f32.gmra.mrb[0].mxu0 %v866
        %v965 = vpop.f32.mrb[0].mxu0
        %v966 = vadd.f32 %v849, %v965
        %v967 = vpop.f32.mrb[0].mxu0
        %968 = vmatprep.mubr.f32.mxu0 0.0
        %969 = vmatmul.mubr.f32.gmra.mrb[0].mxu0 %v869
        %v970 = vpop.f32.mrb[0].mxu0
        %v971 = vadd.f32 %v849, %v970
        %v972 = vpop.f32.mrb[0].mxu0
        %973 = vmatprep.mubr.f32.mxu0 0.0
        %974 = vmatmul.mubr.f32.gmra.mrb[0].mxu0 %v872
        %v975 = vpop.f32.mrb[0].mxu0
        %v976 = vadd.f32 %v849, %v975
        %v977 = vpop.f32.mrb[0].mxu0
        %978 = vdwg.mxu0
        %v979 = vlaneseq
        %v980 = vshrl.u32 %v979, 7
        %v981 = vsub.s32 4, %v980
        %v982 = vrot.slane %v310, %v981
        %v984 = vsel %vm335, %v697, 0
        %v987 = vsel %vm335, %v698, 0
        %v990 = vsel %vm335, %v699, 0
        %v993 = vsel %vm335, %v700, 0
        %v996 = vsel %vm335, %v701, 0
        %v999 = vsel %vm335, %v702, 0
        %v1002 = vsel %vm335, %v703, 0
        %v1005 = vsel %vm335, %v704, 0
        %1007 = vmatprep.subr.mxu0 0.0
        %1008 = vmatpush1.msra.mxu0 %v319
        %1009 = vmatprep.subr.mxu0 0.0
        %1010 = vmatpush1.msra.mxu0 %v320
        %1011 = vmatprep.subr.mxu0 0.0
        %1012 = vmatpush1.msra.mxu0 %v321
        %1013 = vmatprep.subr.mxu0 0.0
        %1014 = vmatpush1.msra.mxu0 %v322
        %1015 = vmatprep.subr.mxu0 0.0
        %1016 = vmatpush1.msra.mxu0 0.0
        %1017 = vmatprep.subr.mxu0 0.0
        %1018 = vmatpush1.msra.mxu0 0.0
        %1019 = vmatprep.subr.mxu0 0.0
        %1020 = vmatpush1.msra.mxu0 0.0
        %1021 = vmatprep.subr.mxu0 0.0
        %1022 = vmatpush1.msra.mxu0 0.0
        %1023 = vmatprep.subr.mxu0 0.0
        %1024 = vmatpush1.msra.mxu0 0.0
        %1025 = vmatprep.subr.mxu0 0.0
        %1026 = vmatpush1.msra.mxu0 0.0
        %1027 = vmatprep.subr.mxu0 0.0
        %1028 = vmatpush1.msra.mxu0 0.0
        %1029 = vmatprep.subr.mxu0 0.0
        %1030 = vmatpush1.msra.mxu0 0.0
        %1031 = vmatprep.subr.mxu0 0.0
        %1032 = vmatpush1.msra.mxu0 0.0
        %1033 = vmatprep.subr.mxu0 0.0
        %1034 = vmatpush1.msra.mxu0 0.0
        %1035 = vmatprep.subr.mxu0 0.0
        %1036 = vmatpush1.msra.mxu0 0.0
        %1037 = vmatprep.subr.mxu0 0.0
        %1038 = vmatpush1.msra.mxu0 0.0
        %1039 = vmatprep.subr.mxu0 0.0
        %1040 = vmatpush1.msra.mxu0 0.0
        %1041 = vmatprep.subr.mxu0 0.0
        %1042 = vmatpush1.msra.mxu0 0.0
        %1043 = vmatprep.subr.mxu0 0.0
        %1044 = vmatpush1.msra.mxu0 0.0
        %1045 = vmatprep.subr.mxu0 0.0
        %1046 = vmatpush1.msra.mxu0 0.0
        %1047 = vmatprep.subr.mxu0 0.0
        %1048 = vmatpush1.msra.mxu0 0.0
        %1049 = vmatprep.subr.mxu0 0.0
        %1050 = vmatpush1.msra.mxu0 0.0
        %1051 = vmatprep.subr.mxu0 0.0
        %1052 = vmatpush1.msra.mxu0 0.0
        %1053 = vmatprep.subr.mxu0 0.0
        %1054 = vmatpush1.msra.mxu0 0.0
        %1055 = vmatprep.subr.mxu0 0.0
        %1056 = vmatpush1.msra.mxu0 0.0
        %1057 = vmatprep.subr.mxu0 0.0
        %1058 = vmatpush1.msra.mxu0 0.0
        %1059 = vmatprep.subr.mxu0 0.0
        %1060 = vmatpush1.msra.mxu0 0.0
        %1061 = vmatprep.subr.mxu0 0.0
        %1062 = vmatpush1.msra.mxu0 0.0
        %1063 = vmatprep.subr.mxu0 0.0
        %1064 = vmatpush1.msra.mxu0 0.0
        %1065 = vmatprep.subr.mxu0 0.0
        %1066 = vmatpush1.msra.mxu0 0.0
        %1067 = vmatprep.subr.mxu0 0.0
        %1068 = vmatpush1.msra.mxu0 0.0
        %1069 = vmatprep.subr.mxu0 0.0
        %1070 = vmatpush1.msra.mxu0 0.0
        %1071 = vmatprep.mubr.f32.mxu0 0.0
        %1072 = vmatmul.mubr.f32.gmra.mrb[0].mxu0 %v984
        %v1073 = vpop.f32.mrb[0].mxu0
        %v1074 = vadd.f32 %v982, %v1073
        %v1075 = vpop.f32.mrb[0].mxu0
        %1076 = vmatprep.mubr.f32.mxu0 0.0
        %1077 = vmatmul.mubr.f32.gmra.mrb[0].mxu0 %v987
        %v1078 = vpop.f32.mrb[0].mxu0
        %v1079 = vadd.f32 %v982, %v1078
        %v1080 = vpop.f32.mrb[0].mxu0
        %1081 = vmatprep.mubr.f32.mxu0 0.0
        %1082 = vmatmul.mubr.f32.gmra.mrb[0].mxu0 %v990
        %v1083 = vpop.f32.mrb[0].mxu0
        %v1084 = vadd.f32 %v982, %v1083
        %v1085 = vpop.f32.mrb[0].mxu0
        %1086 = vmatprep.mubr.f32.mxu0 0.0
        %1087 = vmatmul.mubr.f32.gmra.mrb[0].mxu0 %v993
        %v1088 = vpop.f32.mrb[0].mxu0
        %v1089 = vadd.f32 %v982, %v1088
        %v1090 = vpop.f32.mrb[0].mxu0
        %1091 = vmatprep.mubr.f32.mxu0 0.0
        %1092 = vmatmul.mubr.f32.gmra.mrb[0].mxu0 %v996
        %v1093 = vpop.f32.mrb[0].mxu0
        %v1094 = vadd.f32 %v982, %v1093
        %v1095 = vpop.f32.mrb[0].mxu0
        %1096 = vmatprep.mubr.f32.mxu0 0.0
        %1097 = vmatmul.mubr.f32.gmra.mrb[0].mxu0 %v999
        %v1098 = vpop.f32.mrb[0].mxu0
        %v1099 = vadd.f32 %v982, %v1098
        %v1100 = vpop.f32.mrb[0].mxu0
        %1101 = vmatprep.mubr.f32.mxu0 0.0
        %1102 = vmatmul.mubr.f32.gmra.mrb[0].mxu0 %v1002
        %v1103 = vpop.f32.mrb[0].mxu0
        %v1104 = vadd.f32 %v982, %v1103
        %v1105 = vpop.f32.mrb[0].mxu0
        %1106 = vmatprep.mubr.f32.mxu0 0.0
        %1107 = vmatmul.mubr.f32.gmra.mrb[0].mxu0 %v1005
        %v1108 = vpop.f32.mrb[0].mxu0
        %v1109 = vadd.f32 %v982, %v1108
        %v1110 = vpop.f32.mrb[0].mxu0
        %1111 = vdwg.mxu0
        %vm1112 = vcmask 64512
        %v1114 = vsel %vm1112, %v838, 0
        %v1117 = vsel %vm1112, %v839, 0
        %v1120 = vsel %vm1112, %v941, 0
        %v1123 = vsel %vm1112, %v946, 0
        %1125 = vmatprep.subr.mxu0 0.0
        %1126 = vmatpush1.xpose.msra.mxu0 %v1120
        %1127 = vmatprep.subr.mxu0 0.0
        %1128 = vmatpush1.xpose.msra.mxu0 %v1123
        %1129 = vmatprep.subr.mxu0 0.0
        %1130 = vmatpush1.xpose.msra.mxu0 0.0
        %1131 = vmatprep.subr.mxu0 0.0
        %1132 = vmatpush1.xpose.msra.mxu0 0.0
        %1133 = vmatprep.subr.mxu0 0.0
        %1134 = vmatpush1.xpose.msra.mxu0 0.0
        %1135 = vmatprep.subr.mxu0 0.0
        %1136 = vmatpush1.xpose.msra.mxu0 0.0
        %1137 = vmatprep.subr.mxu0 0.0
        %1138 = vmatpush1.xpose.msra.mxu0 0.0
        %1139 = vmatprep.subr.mxu0 0.0
        %1140 = vmatpush1.xpose.msra.mxu0 0.0
        %1141 = vmatprep.subr.mxu0 0.0
        %1142 = vmatpush1.xpose.msra.mxu0 0.0
        %1143 = vmatprep.subr.mxu0 0.0
        %1144 = vmatpush1.xpose.msra.mxu0 0.0
        %1145 = vmatprep.subr.mxu0 0.0
        %1146 = vmatpush1.xpose.msra.mxu0 0.0
        %1147 = vmatprep.subr.mxu0 0.0
        %1148 = vmatpush1.xpose.msra.mxu0 0.0
        %1149 = vmatprep.subr.mxu0 0.0
        %1150 = vmatpush1.xpose.msra.mxu0 0.0
        %1151 = vmatprep.subr.mxu0 0.0
        %1152 = vmatpush1.xpose.msra.mxu0 0.0
        %1153 = vmatprep.subr.mxu0 0.0
        %1154 = vmatpush1.xpose.msra.mxu0 0.0
        %1155 = vmatprep.subr.mxu0 0.0
        %1156 = vmatpush1.xpose.msra.mxu0 0.0
        %1157 = vmatprep.subr.mxu0 0.0
        %1158 = vmatpush1.xpose.msra.mxu0 0.0
        %1159 = vmatprep.subr.mxu0 0.0
        %1160 = vmatpush1.xpose.msra.mxu0 0.0
        %1161 = vmatprep.subr.mxu0 0.0
        %1162 = vmatpush1.xpose.msra.mxu0 0.0
        %1163 = vmatprep.subr.mxu0 0.0
        %1164 = vmatpush1.xpose.msra.mxu0 0.0
        %1165 = vmatprep.subr.mxu0 0.0
        %1166 = vmatpush1.xpose.msra.mxu0 0.0
        %1167 = vmatprep.subr.mxu0 0.0
        %1168 = vmatpush1.xpose.msra.mxu0 0.0
        %1169 = vmatprep.subr.mxu0 0.0
        %1170 = vmatpush1.xpose.msra.mxu0 0.0
        %1171 = vmatprep.subr.mxu0 0.0
        %1172 = vmatpush1.xpose.msra.mxu0 0.0
        %1173 = vmatprep.subr.mxu0 0.0
        %1174 = vmatpush1.xpose.msra.mxu0 0.0
        %1175 = vmatprep.subr.mxu0 0.0
        %1176 = vmatpush1.xpose.msra.mxu0 0.0
        %1177 = vmatprep.subr.mxu0 0.0
        %1178 = vmatpush1.xpose.msra.mxu0 0.0
        %1179 = vmatprep.subr.mxu0 0.0
        %1180 = vmatpush1.xpose.msra.mxu0 0.0
        %1181 = vmatprep.subr.mxu0 0.0
        %1182 = vmatpush1.xpose.msra.mxu0 0.0
        %1183 = vmatprep.subr.mxu0 0.0
        %1184 = vmatpush1.xpose.msra.mxu0 0.0
        %1185 = vmatprep.subr.mxu0 0.0
        %1186 = vmatpush1.xpose.msra.mxu0 0.0
        %1187 = vmatprep.subr.mxu0 0.0
        %1188 = vmatpush1.xpose.msra.mxu0 0.0
        %1189 = vmatprep.mubr.f32.mxu0 0.0
        %1190 = vmatmul.mubr.f32.gmra.mrb[0].mxu0 %v1114
        %v1191 = vpop.f32.mrb[0].mxu0
        %v1192 = vadd.f32 %v327, %v1191
        %v1193 = vpop.f32.mrb[0].mxu0
        %1194 = vmatprep.mubr.f32.mxu0 0.0
        %1195 = vmatmul.mubr.f32.gmra.mrb[0].mxu0 %v1117
        %v1196 = vpop.f32.mrb[0].mxu0
        %v1197 = vadd.f32 %v328, %v1196
        %v1198 = vpop.f32.mrb[0].mxu0
        %1199 = vdwg.mxu0
        %v1201 = vsel %vm1112, %v840, 0
        %v1204 = vsel %vm1112, %v841, 0
        %v1207 = vsel %vm1112, %v951, 0
        %v1210 = vsel %vm1112, %v956, 0
        %1212 = vmatprep.subr.mxu0 0.0
        %1213 = vmatpush1.xpose.msra.mxu0 %v1207
        %1214 = vmatprep.subr.mxu0 0.0
        %1215 = vmatpush1.xpose.msra.mxu0 %v1210
        %1216 = vmatprep.subr.mxu0 0.0
        %1217 = vmatpush1.xpose.msra.mxu0 0.0
        %1218 = vmatprep.subr.mxu0 0.0
        %1219 = vmatpush1.xpose.msra.mxu0 0.0
        %1220 = vmatprep.subr.mxu0 0.0
        %1221 = vmatpush1.xpose.msra.mxu0 0.0
        %1222 = vmatprep.subr.mxu0 0.0
        %1223 = vmatpush1.xpose.msra.mxu0 0.0
        %1224 = vmatprep.subr.mxu0 0.0
        %1225 = vmatpush1.xpose.msra.mxu0 0.0
        %1226 = vmatprep.subr.mxu0 0.0
        %1227 = vmatpush1.xpose.msra.mxu0 0.0
        %1228 = vmatprep.subr.mxu0 0.0
        %1229 = vmatpush1.xpose.msra.mxu0 0.0
        %1230 = vmatprep.subr.mxu0 0.0
        %1231 = vmatpush1.xpose.msra.mxu0 0.0
        %1232 = vmatprep.subr.mxu0 0.0
        %1233 = vmatpush1.xpose.msra.mxu0 0.0
        %1234 = vmatprep.subr.mxu0 0.0
        %1235 = vmatpush1.xpose.msra.mxu0 0.0
        %1236 = vmatprep.subr.mxu0 0.0
        %1237 = vmatpush1.xpose.msra.mxu0 0.0
        %1238 = vmatprep.subr.mxu0 0.0
        %1239 = vmatpush1.xpose.msra.mxu0 0.0
        %1240 = vmatprep.subr.mxu0 0.0
        %1241 = vmatpush1.xpose.msra.mxu0 0.0
        %1242 = vmatprep.subr.mxu0 0.0
        %1243 = vmatpush1.xpose.msra.mxu0 0.0
        %1244 = vmatprep.subr.mxu0 0.0
        %1245 = vmatpush1.xpose.msra.mxu0 0.0
        %1246 = vmatprep.subr.mxu0 0.0
        %1247 = vmatpush1.xpose.msra.mxu0 0.0
        %1248 = vmatprep.subr.mxu0 0.0
        %1249 = vmatpush1.xpose.msra.mxu0 0.0
        %1250 = vmatprep.subr.mxu0 0.0
        %1251 = vmatpush1.xpose.msra.mxu0 0.0
        %1252 = vmatprep.subr.mxu0 0.0
        %1253 = vmatpush1.xpose.msra.mxu0 0.0
        %1254 = vmatprep.subr.mxu0 0.0
        %1255 = vmatpush1.xpose.msra.mxu0 0.0
        %1256 = vmatprep.subr.mxu0 0.0
        %1257 = vmatpush1.xpose.msra.mxu0 0.0
        %1258 = vmatprep.subr.mxu0 0.0
        %1259 = vmatpush1.xpose.msra.mxu0 0.0
        %1260 = vmatprep.subr.mxu0 0.0
        %1261 = vmatpush1.xpose.msra.mxu0 0.0
        %1262 = vmatprep.subr.mxu0 0.0
        %1263 = vmatpush1.xpose.msra.mxu0 0.0
        %1264 = vmatprep.subr.mxu0 0.0
        %1265 = vmatpush1.xpose.msra.mxu0 0.0
        %1266 = vmatprep.subr.mxu0 0.0
        %1267 = vmatpush1.xpose.msra.mxu0 0.0
        %1268 = vmatprep.subr.mxu0 0.0
        %1269 = vmatpush1.xpose.msra.mxu0 0.0
        %1270 = vmatprep.subr.mxu0 0.0
        %1271 = vmatpush1.xpose.msra.mxu0 0.0
        %1272 = vmatprep.subr.mxu0 0.0
        %1273 = vmatpush1.xpose.msra.mxu0 0.0
        %1274 = vmatprep.subr.mxu0 0.0
        %1275 = vmatpush1.xpose.msra.mxu0 0.0
        %1276 = vmatprep.mubr.f32.mxu0 0.0
        %1277 = vmatmul.mubr.f32.gmra.mrb[0].mxu0 %v1201
        %v1278 = vpop.f32.mrb[0].mxu0
        %v1279 = vadd.f32 %v327, %v1278
        %v1280 = vpop.f32.mrb[0].mxu0
        %1281 = vmatprep.mubr.f32.mxu0 0.0
        %1282 = vmatmul.mubr.f32.gmra.mrb[0].mxu0 %v1204
        %v1283 = vpop.f32.mrb[0].mxu0
        %v1284 = vadd.f32 %v328, %v1283
        %v1285 = vpop.f32.mrb[0].mxu0
        %1286 = vdwg.mxu0
        %v1288 = vsel %vm1112, %v842, 0
        %v1291 = vsel %vm1112, %v843, 0
        %v1294 = vsel %vm1112, %v961, 0
        %v1297 = vsel %vm1112, %v966, 0
        %1299 = vmatprep.subr.mxu0 0.0
        %1300 = vmatpush1.xpose.msra.mxu0 %v1294
        %1301 = vmatprep.subr.mxu0 0.0
        %1302 = vmatpush1.xpose.msra.mxu0 %v1297
        %1303 = vmatprep.subr.mxu0 0.0
        %1304 = vmatpush1.xpose.msra.mxu0 0.0
        %1305 = vmatprep.subr.mxu0 0.0
        %1306 = vmatpush1.xpose.msra.mxu0 0.0
        %1307 = vmatprep.subr.mxu0 0.0
        %1308 = vmatpush1.xpose.msra.mxu0 0.0
        %1309 = vmatprep.subr.mxu0 0.0
        %1310 = vmatpush1.xpose.msra.mxu0 0.0
        %1311 = vmatprep.subr.mxu0 0.0
        %1312 = vmatpush1.xpose.msra.mxu0 0.0
        %1313 = vmatprep.subr.mxu0 0.0
        %1314 = vmatpush1.xpose.msra.mxu0 0.0
        %1315 = vmatprep.subr.mxu0 0.0
        %1316 = vmatpush1.xpose.msra.mxu0 0.0
        %1317 = vmatprep.subr.mxu0 0.0
        %1318 = vmatpush1.xpose.msra.mxu0 0.0
        %1319 = vmatprep.subr.mxu0 0.0
        %1320 = vmatpush1.xpose.msra.mxu0 0.0
        %1321 = vmatprep.subr.mxu0 0.0
        %1322 = vmatpush1.xpose.msra.mxu0 0.0
        %1323 = vmatprep.subr.mxu0 0.0
        %1324 = vmatpush1.xpose.msra.mxu0 0.0
        %1325 = vmatprep.subr.mxu0 0.0
        %1326 = vmatpush1.xpose.msra.mxu0 0.0
        %1327 = vmatprep.subr.mxu0 0.0
        %1328 = vmatpush1.xpose.msra.mxu0 0.0
        %1329 = vmatprep.subr.mxu0 0.0
        %1330 = vmatpush1.xpose.msra.mxu0 0.0
        %1331 = vmatprep.subr.mxu0 0.0
        %1332 = vmatpush1.xpose.msra.mxu0 0.0
        %1333 = vmatprep.subr.mxu0 0.0
        %1334 = vmatpush1.xpose.msra.mxu0 0.0
        %1335 = vmatprep.subr.mxu0 0.0
        %1336 = vmatpush1.xpose.msra.mxu0 0.0
        %1337 = vmatprep.subr.mxu0 0.0
        %1338 = vmatpush1.xpose.msra.mxu0 0.0
        %1339 = vmatprep.subr.mxu0 0.0
        %1340 = vmatpush1.xpose.msra.mxu0 0.0
        %1341 = vmatprep.subr.mxu0 0.0
        %1342 = vmatpush1.xpose.msra.mxu0 0.0
        %1343 = vmatprep.subr.mxu0 0.0
        %1344 = vmatpush1.xpose.msra.mxu0 0.0
        %1345 = vmatprep.subr.mxu0 0.0
        %1346 = vmatpush1.xpose.msra.mxu0 0.0
        %1347 = vmatprep.subr.mxu0 0.0
        %1348 = vmatpush1.xpose.msra.mxu0 0.0
        %1349 = vmatprep.subr.mxu0 0.0
        %1350 = vmatpush1.xpose.msra.mxu0 0.0
        %1351 = vmatprep.subr.mxu0 0.0
        %1352 = vmatpush1.xpose.msra.mxu0 0.0
        %1353 = vmatprep.subr.mxu0 0.0
        %1354 = vmatpush1.xpose.msra.mxu0 0.0
        %1355 = vmatprep.subr.mxu0 0.0
        %1356 = vmatpush1.xpose.msra.mxu0 0.0
        %1357 = vmatprep.subr.mxu0 0.0
        %1358 = vmatpush1.xpose.msra.mxu0 0.0
        %1359 = vmatprep.subr.mxu0 0.0
        %1360 = vmatpush1.xpose.msra.mxu0 0.0
        %1361 = vmatprep.subr.mxu0 0.0
        %1362 = vmatpush1.xpose.msra.mxu0 0.0
        %1363 = vmatprep.mubr.f32.mxu0 0.0
        %1364 = vmatmul.mubr.f32.gmra.mrb[0].mxu0 %v1288
        %v1365 = vpop.f32.mrb[0].mxu0
        %v1366 = vadd.f32 %v327, %v1365
        %v1367 = vpop.f32.mrb[0].mxu0
        %1368 = vmatprep.mubr.f32.mxu0 0.0
        %1369 = vmatmul.mubr.f32.gmra.mrb[0].mxu0 %v1291
        %v1370 = vpop.f32.mrb[0].mxu0
        %v1371 = vadd.f32 %v328, %v1370
        %v1372 = vpop.f32.mrb[0].mxu0
        %1373 = vdwg.mxu0
        %v1375 = vsel %vm1112, %v844, 0
        %v1378 = vsel %vm1112, %v845, 0
        %v1381 = vsel %vm1112, %v971, 0
        %v1384 = vsel %vm1112, %v976, 0
        %1386 = vmatprep.subr.mxu0 0.0
        %1387 = vmatpush1.xpose.msra.mxu0 %v1381
        %1388 = vmatprep.subr.mxu0 0.0
        %1389 = vmatpush1.xpose.msra.mxu0 %v1384
        %1390 = vmatprep.subr.mxu0 0.0
        %1391 = vmatpush1.xpose.msra.mxu0 0.0
        %1392 = vmatprep.subr.mxu0 0.0
        %1393 = vmatpush1.xpose.msra.mxu0 0.0
        %1394 = vmatprep.subr.mxu0 0.0
        %1395 = vmatpush1.xpose.msra.mxu0 0.0
        %1396 = vmatprep.subr.mxu0 0.0
        %1397 = vmatpush1.xpose.msra.mxu0 0.0
        %1398 = vmatprep.subr.mxu0 0.0
        %1399 = vmatpush1.xpose.msra.mxu0 0.0
        %1400 = vmatprep.subr.mxu0 0.0
        %1401 = vmatpush1.xpose.msra.mxu0 0.0
        %1402 = vmatprep.subr.mxu0 0.0
        %1403 = vmatpush1.xpose.msra.mxu0 0.0
        %1404 = vmatprep.subr.mxu0 0.0
        %1405 = vmatpush1.xpose.msra.mxu0 0.0
        %1406 = vmatprep.subr.mxu0 0.0
        %1407 = vmatpush1.xpose.msra.mxu0 0.0
        %1408 = vmatprep.subr.mxu0 0.0
        %1409 = vmatpush1.xpose.msra.mxu0 0.0
        %1410 = vmatprep.subr.mxu0 0.0
        %1411 = vmatpush1.xpose.msra.mxu0 0.0
        %1412 = vmatprep.subr.mxu0 0.0
        %1413 = vmatpush1.xpose.msra.mxu0 0.0
        %1414 = vmatprep.subr.mxu0 0.0
        %1415 = vmatpush1.xpose.msra.mxu0 0.0
        %1416 = vmatprep.subr.mxu0 0.0
        %1417 = vmatpush1.xpose.msra.mxu0 0.0
        %1418 = vmatprep.subr.mxu0 0.0
        %1419 = vmatpush1.xpose.msra.mxu0 0.0
        %1420 = vmatprep.subr.mxu0 0.0
        %1421 = vmatpush1.xpose.msra.mxu0 0.0
        %1422 = vmatprep.subr.mxu0 0.0
        %1423 = vmatpush1.xpose.msra.mxu0 0.0
        %1424 = vmatprep.subr.mxu0 0.0
        %1425 = vmatpush1.xpose.msra.mxu0 0.0
        %1426 = vmatprep.subr.mxu0 0.0
        %1427 = vmatpush1.xpose.msra.mxu0 0.0
        %1428 = vmatprep.subr.mxu0 0.0
        %1429 = vmatpush1.xpose.msra.mxu0 0.0
        %1430 = vmatprep.subr.mxu0 0.0
        %1431 = vmatpush1.xpose.msra.mxu0 0.0
        %1432 = vmatprep.subr.mxu0 0.0
        %1433 = vmatpush1.xpose.msra.mxu0 0.0
        %1434 = vmatprep.subr.mxu0 0.0
        %1435 = vmatpush1.xpose.msra.mxu0 0.0
        %1436 = vmatprep.subr.mxu0 0.0
        %1437 = vmatpush1.xpose.msra.mxu0 0.0
        %1438 = vmatprep.subr.mxu0 0.0
        %1439 = vmatpush1.xpose.msra.mxu0 0.0
        %1440 = vmatprep.subr.mxu0 0.0
        %1441 = vmatpush1.xpose.msra.mxu0 0.0
        %1442 = vmatprep.subr.mxu0 0.0
        %1443 = vmatpush1.xpose.msra.mxu0 0.0
        %1444 = vmatprep.subr.mxu0 0.0
        %1445 = vmatpush1.xpose.msra.mxu0 0.0
        %1446 = vmatprep.subr.mxu0 0.0
        %1447 = vmatpush1.xpose.msra.mxu0 0.0
        %1448 = vmatprep.subr.mxu0 0.0
        %1449 = vmatpush1.xpose.msra.mxu0 0.0
        %1450 = vmatprep.mubr.f32.mxu0 0.0
        %1451 = vmatmul.mubr.f32.gmra.mrb[0].mxu0 %v1375
        %v1452 = vpop.f32.mrb[0].mxu0
        %v1453 = vadd.f32 %v327, %v1452
        %v1454 = vpop.f32.mrb[0].mxu0
        %1455 = vmatprep.mubr.f32.mxu0 0.0
        %1456 = vmatmul.mubr.f32.gmra.mrb[0].mxu0 %v1378
        %v1457 = vpop.f32.mrb[0].mxu0
        %v1458 = vadd.f32 %v328, %v1457
        %v1459 = vpop.f32.mrb[0].mxu0
        %1460 = vdwg.mxu0
        %vm1461 = vcmask 130048
        %v1462 = vsel %vm1461, %v1192, -inf
        %1463 = vmax.xlane.f32.xlu0 %v1462
        %v1464 = vpop.xlane.xlu0 %1463
        %v1465 = vsel %vm1461, %v1197, -inf
        %1466 = vmax.xlane.f32.xlu0 %v1465
        %v1467 = vpop.xlane.xlu0 %1466
        %v1468 = vsel %vm1461, %v1279, -inf
        %1469 = vmax.xlane.f32.xlu0 %v1468
        %v1470 = vpop.xlane.xlu0 %1469
        %v1471 = vsel %vm1461, %v1284, -inf
        %1472 = vmax.xlane.f32.xlu0 %v1471
        %v1473 = vpop.xlane.xlu0 %1472
        %v1474 = vsel %vm1461, %v1366, -inf
        %1475 = vmax.xlane.f32.xlu0 %v1474
        %v1476 = vpop.xlane.xlu0 %1475
        %v1477 = vsel %vm1461, %v1371, -inf
        %1478 = vmax.xlane.f32.xlu0 %v1477
        %v1479 = vpop.xlane.xlu0 %1478
        %v1480 = vsel %vm1461, %v1453, -inf
        %1481 = vmax.xlane.f32.xlu0 %v1480
        %v1482 = vpop.xlane.xlu0 %1481
        %v1483 = vsel %vm1461, %v1458, -inf
        %1484 = vmax.xlane.f32.xlu0 %v1483
        %v1485 = vpop.xlane.xlu0 %1484
        %v1486 = vsub.f32 %v1192, %v1464
        %v1487 = vsub.f32 %v1197, %v1467
        %v1488 = vsub.f32 %v1279, %v1470
        %v1489 = vsub.f32 %v1284, %v1473
        %v1490 = vsub.f32 %v1366, %v1476
        %v1491 = vsub.f32 %v1371, %v1479
        %v1492 = vsub.f32 %v1453, %v1482
        %v1493 = vsub.f32 %v1458, %v1485
        %v1494 = vmul.f32 %v1486, 1.442695
        %v1495 = vpow.pop %v1494
        %v1496 = vmul.f32 %v1487, 1.442695
        %v1497 = vpow.pop %v1496
        %v1498 = vmul.f32 %v1488, 1.442695
        %v1499 = vpow.pop %v1498
        %v1500 = vmul.f32 %v1489, 1.442695
        %v1501 = vpow.pop %v1500
        %v1502 = vmul.f32 %v1490, 1.442695
        %v1503 = vpow.pop %v1502
        %v1504 = vmul.f32 %v1491, 1.442695
        %v1505 = vpow.pop %v1504
        %v1506 = vmul.f32 %v1492, 1.442695
        %v1507 = vpow.pop %v1506
        %v1508 = vmul.f32 %v1493, 1.442695
        %v1509 = vpow.pop %v1508
        %v1510 = vsel %vm1461, %v1495, 0.0
        %1511 = vadd.xlane.f32.xlu0 %v1510
        %v1512 = vpop.xlane.xlu0 %1511
        %v1513 = vsel %vm1461, %v1497, 0.0
        %1514 = vadd.xlane.f32.xlu0 %v1513
        %v1515 = vpop.xlane.xlu0 %1514
        %v1516 = vsel %vm1461, %v1499, 0.0
        %1517 = vadd.xlane.f32.xlu0 %v1516
        %v1518 = vpop.xlane.xlu0 %1517
        %v1519 = vsel %vm1461, %v1501, 0.0
        %1520 = vadd.xlane.f32.xlu0 %v1519
        %v1521 = vpop.xlane.xlu0 %1520
        %v1522 = vsel %vm1461, %v1503, 0.0
        %1523 = vadd.xlane.f32.xlu0 %v1522
        %v1524 = vpop.xlane.xlu0 %1523
        %v1525 = vsel %vm1461, %v1505, 0.0
        %1526 = vadd.xlane.f32.xlu0 %v1525
        %v1527 = vpop.xlane.xlu0 %1526
        %v1528 = vsel %vm1461, %v1507, 0.0
        %1529 = vadd.xlane.f32.xlu0 %v1528
        %v1530 = vpop.xlane.xlu0 %1529
        %v1531 = vsel %vm1461, %v1509, 0.0
        %1532 = vadd.xlane.f32.xlu0 %v1531
        %v1533 = vpop.xlane.xlu0 %1532
        %v1534 = vrcp.pop %v1512
        %v1535 = vrcp.pop %v1515
        %v1536 = vrcp.pop %v1518
        %v1537 = vrcp.pop %v1521
        %v1538 = vrcp.pop %v1524
        %v1539 = vrcp.pop %v1527
        %v1540 = vrcp.pop %v1530
        %v1541 = vrcp.pop %v1533
        %v1542 = vmul.f32 %v1495, %v1534
        %v1543 = vmul.f32 %v1497, %v1535
        %v1544 = vmul.f32 %v1499, %v1536
        %v1545 = vmul.f32 %v1501, %v1537
        %v1546 = vmul.f32 %v1503, %v1538
        %v1547 = vmul.f32 %v1505, %v1539
        %v1548 = vmul.f32 %v1507, %v1540
        %v1549 = vmul.f32 %v1509, %v1541
        %v1551 = vsel %vm1461, %v1542, 0
        %v1554 = vsel %vm1461, %v1543, 0
        %1556 = vmatprep.subr.mxu0 0.0
        %1557 = vmatpush1.msra.mxu0 %v1074
        %1558 = vmatprep.subr.mxu0 0.0
        %1559 = vmatpush1.msra.mxu0 %v1079
        %1560 = vmatprep.subr.mxu0 0.0
        %1561 = vmatpush1.msra.mxu0 0.0
        %1562 = vmatprep.subr.mxu0 0.0
        %1563 = vmatpush1.msra.mxu0 0.0
        %1564 = vmatprep.subr.mxu0 0.0
        %1565 = vmatpush1.msra.mxu0 0.0
        %1566 = vmatprep.subr.mxu0 0.0
        %1567 = vmatpush1.msra.mxu0 0.0
        %1568 = vmatprep.subr.mxu0 0.0
        %1569 = vmatpush1.msra.mxu0 0.0
        %1570 = vmatprep.subr.mxu0 0.0
        %1571 = vmatpush1.msra.mxu0 0.0
        %1572 = vmatprep.subr.mxu0 0.0
        %1573 = vmatpush1.msra.mxu0 0.0
        %1574 = vmatprep.subr.mxu0 0.0
        %1575 = vmatpush1.msra.mxu0 0.0
        %1576 = vmatprep.subr.mxu0 0.0
        %1577 = vmatpush1.msra.mxu0 0.0
        %1578 = vmatprep.subr.mxu0 0.0
        %1579 = vmatpush1.msra.mxu0 0.0
        %1580 = vmatprep.subr.mxu0 0.0
        %1581 = vmatpush1.msra.mxu0 0.0
        %1582 = vmatprep.subr.mxu0 0.0
        %1583 = vmatpush1.msra.mxu0 0.0
        %1584 = vmatprep.subr.mxu0 0.0
        %1585 = vmatpush1.msra.mxu0 0.0
        %1586 = vmatprep.subr.mxu0 0.0
        %1587 = vmatpush1.msra.mxu0 0.0
        %1588 = vmatprep.subr.mxu0 0.0
        %1589 = vmatpush1.msra.mxu0 0.0
        %1590 = vmatprep.subr.mxu0 0.0
        %1591 = vmatpush1.msra.mxu0 0.0
        %1592 = vmatprep.subr.mxu0 0.0
        %1593 = vmatpush1.msra.mxu0 0.0
        %1594 = vmatprep.subr.mxu0 0.0
        %1595 = vmatpush1.msra.mxu0 0.0
        %1596 = vmatprep.subr.mxu0 0.0
        %1597 = vmatpush1.msra.mxu0 0.0
        %1598 = vmatprep.subr.mxu0 0.0
        %1599 = vmatpush1.msra.mxu0 0.0
        %1600 = vmatprep.subr.mxu0 0.0
        %1601 = vmatpush1.msra.mxu0 0.0
        %1602 = vmatprep.subr.mxu0 0.0
        %1603 = vmatpush1.msra.mxu0 0.0
        %1604 = vmatprep.subr.mxu0 0.0
        %1605 = vmatpush1.msra.mxu0 0.0
        %1606 = vmatprep.subr.mxu0 0.0
        %1607 = vmatpush1.msra.mxu0 0.0
        %1608 = vmatprep.subr.mxu0 0.0
        %1609 = vmatpush1.msra.mxu0 0.0
        %1610 = vmatprep.subr.mxu0 0.0
        %1611 = vmatpush1.msra.mxu0 0.0
        %1612 = vmatprep.subr.mxu0 0.0
        %1613 = vmatpush1.msra.mxu0 0.0
        %1614 = vmatprep.subr.mxu0 0.0
        %1615 = vmatpush1.msra.mxu0 0.0
        %1616 = vmatprep.subr.mxu0 0.0
        %1617 = vmatpush1.msra.mxu0 0.0
        %1618 = vmatprep.subr.mxu0 0.0
        %1619 = vmatpush1.msra.mxu0 0.0
        %1620 = vmatprep.mubr.f32.mxu0 0.0
        %1621 = vmatmul.mubr.f32.gmra.mrb[0].mxu0 %v1551
        %v1622 = vpop.f32.mrb[0].mxu0
        %v1623 = vadd.f32 0.0, %v1622
        %v1624 = vpop.f32.mrb[0].mxu0
        %1625 = vmatprep.mubr.f32.mxu0 0.0
        %1626 = vmatmul.mubr.f32.gmra.mrb[0].mxu0 %v1554
        %v1627 = vpop.f32.mrb[0].mxu0
        %v1628 = vadd.f32 0.0, %v1627
        %v1629 = vpop.f32.mrb[0].mxu0
        %1630 = vdwg.mxu0
        %v1632 = vsel %vm1461, %v1544, 0
        %v1635 = vsel %vm1461, %v1545, 0
        %1637 = vmatprep.subr.mxu0 0.0
        %1638 = vmatpush1.msra.mxu0 %v1084
        %1639 = vmatprep.subr.mxu0 0.0
        %1640 = vmatpush1.msra.mxu0 %v1089
        %1641 = vmatprep.subr.mxu0 0.0
        %1642 = vmatpush1.msra.mxu0 0.0
        %1643 = vmatprep.subr.mxu0 0.0
        %1644 = vmatpush1.msra.mxu0 0.0
        %1645 = vmatprep.subr.mxu0 0.0
        %1646 = vmatpush1.msra.mxu0 0.0
        %1647 = vmatprep.subr.mxu0 0.0
        %1648 = vmatpush1.msra.mxu0 0.0
        %1649 = vmatprep.subr.mxu0 0.0
        %1650 = vmatpush1.msra.mxu0 0.0
        %1651 = vmatprep.subr.mxu0 0.0
        %1652 = vmatpush1.msra.mxu0 0.0
        %1653 = vmatprep.subr.mxu0 0.0
        %1654 = vmatpush1.msra.mxu0 0.0
        %1655 = vmatprep.subr.mxu0 0.0
        %1656 = vmatpush1.msra.mxu0 0.0
        %1657 = vmatprep.subr.mxu0 0.0
        %1658 = vmatpush1.msra.mxu0 0.0
        %1659 = vmatprep.subr.mxu0 0.0
        %1660 = vmatpush1.msra.mxu0 0.0
        %1661 = vmatprep.subr.mxu0 0.0
        %1662 = vmatpush1.msra.mxu0 0.0
        %1663 = vmatprep.subr.mxu0 0.0
        %1664 = vmatpush1.msra.mxu0 0.0
        %1665 = vmatprep.subr.mxu0 0.0
        %1666 = vmatpush1.msra.mxu0 0.0
        %1667 = vmatprep.subr.mxu0 0.0
        %1668 = vmatpush1.msra.mxu0 0.0
        %1669 = vmatprep.subr.mxu0 0.0
        %1670 = vmatpush1.msra.mxu0 0.0
        %1671 = vmatprep.subr.mxu0 0.0
        %1672 = vmatpush1.msra.mxu0 0.0
        %1673 = vmatprep.subr.mxu0 0.0
        %1674 = vmatpush1.msra.mxu0 0.0
        %1675 = vmatprep.subr.mxu0 0.0
        %1676 = vmatpush1.msra.mxu0 0.0
        %1677 = vmatprep.subr.mxu0 0.0
        %1678 = vmatpush1.msra.mxu0 0.0
        %1679 = vmatprep.subr.mxu0 0.0
        %1680 = vmatpush1.msra.mxu0 0.0
        %1681 = vmatprep.subr.mxu0 0.0
        %1682 = vmatpush1.msra.mxu0 0.0
        %1683 = vmatprep.subr.mxu0 0.0
        %1684 = vmatpush1.msra.mxu0 0.0
        %1685 = vmatprep.subr.mxu0 0.0
        %1686 = vmatpush1.msra.mxu0 0.0
        %1687 = vmatprep.subr.mxu0 0.0
        %1688 = vmatpush1.msra.mxu0 0.0
        %1689 = vmatprep.subr.mxu0 0.0
        %1690 = vmatpush1.msra.mxu0 0.0
        %1691 = vmatprep.subr.mxu0 0.0
        %1692 = vmatpush1.msra.mxu0 0.0
        %1693 = vmatprep.subr.mxu0 0.0
        %1694 = vmatpush1.msra.mxu0 0.0
        %1695 = vmatprep.subr.mxu0 0.0
        %1696 = vmatpush1.msra.mxu0 0.0
        %1697 = vmatprep.subr.mxu0 0.0
        %1698 = vmatpush1.msra.mxu0 0.0
        %1699 = vmatprep.subr.mxu0 0.0
        %1700 = vmatpush1.msra.mxu0 0.0
        %1701 = vmatprep.mubr.f32.mxu0 0.0
        %1702 = vmatmul.mubr.f32.gmra.mrb[0].mxu0 %v1632
        %v1703 = vpop.f32.mrb[0].mxu0
        %v1704 = vadd.f32 0.0, %v1703
        %v1705 = vpop.f32.mrb[0].mxu0
        %1706 = vmatprep.mubr.f32.mxu0 0.0
        %1707 = vmatmul.mubr.f32.gmra.mrb[0].mxu0 %v1635
        %v1708 = vpop.f32.mrb[0].mxu0
        %v1709 = vadd.f32 0.0, %v1708
        %v1710 = vpop.f32.mrb[0].mxu0
        %1711 = vdwg.mxu0
        %v1713 = vsel %vm1461, %v1546, 0
        %v1716 = vsel %vm1461, %v1547, 0
        %1718 = vmatprep.subr.mxu0 0.0
        %1719 = vmatpush1.msra.mxu0 %v1094
        %1720 = vmatprep.subr.mxu0 0.0
        %1721 = vmatpush1.msra.mxu0 %v1099
        %1722 = vmatprep.subr.mxu0 0.0
        %1723 = vmatpush1.msra.mxu0 0.0
        %1724 = vmatprep.subr.mxu0 0.0
        %1725 = vmatpush1.msra.mxu0 0.0
        %1726 = vmatprep.subr.mxu0 0.0
        %1727 = vmatpush1.msra.mxu0 0.0
        %1728 = vmatprep.subr.mxu0 0.0
        %1729 = vmatpush1.msra.mxu0 0.0
        %1730 = vmatprep.subr.mxu0 0.0
        %1731 = vmatpush1.msra.mxu0 0.0
        %1732 = vmatprep.subr.mxu0 0.0
        %1733 = vmatpush1.msra.mxu0 0.0
        %1734 = vmatprep.subr.mxu0 0.0
        %1735 = vmatpush1.msra.mxu0 0.0
        %1736 = vmatprep.subr.mxu0 0.0
        %1737 = vmatpush1.msra.mxu0 0.0
        %1738 = vmatprep.subr.mxu0 0.0
        %1739 = vmatpush1.msra.mxu0 0.0
        %1740 = vmatprep.subr.mxu0 0.0
        %1741 = vmatpush1.msra.mxu0 0.0
        %1742 = vmatprep.subr.mxu0 0.0
        %1743 = vmatpush1.msra.mxu0 0.0
        %1744 = vmatprep.subr.mxu0 0.0
        %1745 = vmatpush1.msra.mxu0 0.0
        %1746 = vmatprep.subr.mxu0 0.0
        %1747 = vmatpush1.msra.mxu0 0.0
        %1748 = vmatprep.subr.mxu0 0.0
        %1749 = vmatpush1.msra.mxu0 0.0
        %1750 = vmatprep.subr.mxu0 0.0
        %1751 = vmatpush1.msra.mxu0 0.0
        %1752 = vmatprep.subr.mxu0 0.0
        %1753 = vmatpush1.msra.mxu0 0.0
        %1754 = vmatprep.subr.mxu0 0.0
        %1755 = vmatpush1.msra.mxu0 0.0
        %1756 = vmatprep.subr.mxu0 0.0
        %1757 = vmatpush1.msra.mxu0 0.0
        %1758 = vmatprep.subr.mxu0 0.0
        %1759 = vmatpush1.msra.mxu0 0.0
        %1760 = vmatprep.subr.mxu0 0.0
        %1761 = vmatpush1.msra.mxu0 0.0
        %1762 = vmatprep.subr.mxu0 0.0
        %1763 = vmatpush1.msra.mxu0 0.0
        %1764 = vmatprep.subr.mxu0 0.0
        %1765 = vmatpush1.msra.mxu0 0.0
        %1766 = vmatprep.subr.mxu0 0.0
        %1767 = vmatpush1.msra.mxu0 0.0
        %1768 = vmatprep.subr.mxu0 0.0
        %1769 = vmatpush1.msra.mxu0 0.0
        %1770 = vmatprep.subr.mxu0 0.0
        %1771 = vmatpush1.msra.mxu0 0.0
        %1772 = vmatprep.subr.mxu0 0.0
        %1773 = vmatpush1.msra.mxu0 0.0
        %1774 = vmatprep.subr.mxu0 0.0
        %1775 = vmatpush1.msra.mxu0 0.0
        %1776 = vmatprep.subr.mxu0 0.0
        %1777 = vmatpush1.msra.mxu0 0.0
        %1778 = vmatprep.subr.mxu0 0.0
        %1779 = vmatpush1.msra.mxu0 0.0
        %1780 = vmatprep.subr.mxu0 0.0
        %1781 = vmatpush1.msra.mxu0 0.0
        %1782 = vmatprep.mubr.f32.mxu0 0.0
        %1783 = vmatmul.mubr.f32.gmra.mrb[0].mxu0 %v1713
        %v1784 = vpop.f32.mrb[0].mxu0
        %v1785 = vadd.f32 0.0, %v1784
        %v1786 = vpop.f32.mrb[0].mxu0
        %1787 = vmatprep.mubr.f32.mxu0 0.0
        %1788 = vmatmul.mubr.f32.gmra.mrb[0].mxu0 %v1716
        %v1789 = vpop.f32.mrb[0].mxu0
        %v1790 = vadd.f32 0.0, %v1789
        %v1791 = vpop.f32.mrb[0].mxu0
        %1792 = vdwg.mxu0
        %v1794 = vsel %vm1461, %v1548, 0
        %v1797 = vsel %vm1461, %v1549, 0
        %1799 = vmatprep.subr.mxu0 0.0
        %1800 = vmatpush1.msra.mxu0 %v1104
        %1801 = vmatprep.subr.mxu0 0.0
        %1802 = vmatpush1.msra.mxu0 %v1109
        %1803 = vmatprep.subr.mxu0 0.0
        %1804 = vmatpush1.msra.mxu0 0.0
        %1805 = vmatprep.subr.mxu0 0.0
        %1806 = vmatpush1.msra.mxu0 0.0
        %1807 = vmatprep.subr.mxu0 0.0
        %1808 = vmatpush1.msra.mxu0 0.0
        %1809 = vmatprep.subr.mxu0 0.0
        %1810 = vmatpush1.msra.mxu0 0.0
        %1811 = vmatprep.subr.mxu0 0.0
        %1812 = vmatpush1.msra.mxu0 0.0
        %1813 = vmatprep.subr.mxu0 0.0
        %1814 = vmatpush1.msra.mxu0 0.0
        %1815 = vmatprep.subr.mxu0 0.0
        %1816 = vmatpush1.msra.mxu0 0.0
        %1817 = vmatprep.subr.mxu0 0.0
        %1818 = vmatpush1.msra.mxu0 0.0
        %1819 = vmatprep.subr.mxu0 0.0
        %1820 = vmatpush1.msra.mxu0 0.0
        %1821 = vmatprep.subr.mxu0 0.0
        %1822 = vmatpush1.msra.mxu0 0.0
        %1823 = vmatprep.subr.mxu0 0.0
        %1824 = vmatpush1.msra.mxu0 0.0
        %1825 = vmatprep.subr.mxu0 0.0
        %1826 = vmatpush1.msra.mxu0 0.0
        %1827 = vmatprep.subr.mxu0 0.0
        %1828 = vmatpush1.msra.mxu0 0.0
        %1829 = vmatprep.subr.mxu0 0.0
        %1830 = vmatpush1.msra.mxu0 0.0
        %1831 = vmatprep.subr.mxu0 0.0
        %1832 = vmatpush1.msra.mxu0 0.0
        %1833 = vmatprep.subr.mxu0 0.0
        %1834 = vmatpush1.msra.mxu0 0.0
        %1835 = vmatprep.subr.mxu0 0.0
        %1836 = vmatpush1.msra.mxu0 0.0
        %1837 = vmatprep.subr.mxu0 0.0
        %1838 = vmatpush1.msra.mxu0 0.0
        %1839 = vmatprep.subr.mxu0 0.0
        %1840 = vmatpush1.msra.mxu0 0.0
        %1841 = vmatprep.subr.mxu0 0.0
        %1842 = vmatpush1.msra.mxu0 0.0
        %1843 = vmatprep.subr.mxu0 0.0
        %1844 = vmatpush1.msra.mxu0 0.0
        %1845 = vmatprep.subr.mxu0 0.0
        %1846 = vmatpush1.msra.mxu0 0.0
        %1847 = vmatprep.subr.mxu0 0.0
        %1848 = vmatpush1.msra.mxu0 0.0
        %1849 = vmatprep.subr.mxu0 0.0
        %1850 = vmatpush1.msra.mxu0 0.0
        %1851 = vmatprep.subr.mxu0 0.0
        %1852 = vmatpush1.msra.mxu0 0.0
        %1853 = vmatprep.subr.mxu0 0.0
        %1854 = vmatpush1.msra.mxu0 0.0
        %1855 = vmatprep.subr.mxu0 0.0
        %1856 = vmatpush1.msra.mxu0 0.0
        %1857 = vmatprep.subr.mxu0 0.0
        %1858 = vmatpush1.msra.mxu0 0.0
        %1859 = vmatprep.subr.mxu0 0.0
        %1860 = vmatpush1.msra.mxu0 0.0
        %1861 = vmatprep.subr.mxu0 0.0
        %1862 = vmatpush1.msra.mxu0 0.0
        %1863 = vmatprep.mubr.f32.mxu0 0.0
        %1864 = vmatmul.mubr.f32.gmra.mrb[0].mxu0 %v1794
        %v1865 = vpop.f32.mrb[0].mxu0
        %v1866 = vadd.f32 0.0, %v1865
        %v1867 = vpop.f32.mrb[0].mxu0
        %1868 = vmatprep.mubr.f32.mxu0 0.0
        %1869 = vmatmul.mubr.f32.gmra.mrb[0].mxu0 %v1797
        %v1870 = vpop.f32.mrb[0].mxu0
        %v1871 = vadd.f32 0.0, %v1870
        %v1872 = vpop.f32.mrb[0].mxu0
        %1873 = vdwg.mxu0
        %1874 = vrot.lane.b32.xlu0 %v838, 120
        %v1875 = vpop.permute.xlu0 %1874
        %1876 = vrot.lane.b32.xlu0 %v839, 120
        %v1877 = vpop.permute.xlu0 %1876
        %1878 = vrot.lane.b32.xlu0 %v941, 120
        %v1879 = vpop.permute.xlu0 %1878
        %1880 = vrot.lane.b32.xlu0 %v946, 120
        %v1881 = vpop.permute.xlu0 %1880
        %v1882 = vsel %vm1112, %v1875, 0
        %v1884 = vsel %vm1112, %v1877, 0
        %v1886 = vsel %vm1112, %v1879, 0
        %v1888 = vsel %vm1112, %v1881, 0
        %1890 = vmatprep.subr.mxu0 0.0
        %1891 = vmatpush1.xpose.msra.mxu0 %v1886
        %1892 = vmatprep.subr.mxu0 0.0
        %1893 = vmatpush1.xpose.msra.mxu0 %v1888
        %1894 = vmatprep.subr.mxu0 0.0
        %1895 = vmatpush1.xpose.msra.mxu0 0.0
        %1896 = vmatprep.subr.mxu0 0.0
        %1897 = vmatpush1.xpose.msra.mxu0 0.0
        %1898 = vmatprep.subr.mxu0 0.0
        %1899 = vmatpush1.xpose.msra.mxu0 0.0
        %1900 = vmatprep.subr.mxu0 0.0
        %1901 = vmatpush1.xpose.msra.mxu0 0.0
        %1902 = vmatprep.subr.mxu0 0.0
        %1903 = vmatpush1.xpose.msra.mxu0 0.0
        %1904 = vmatprep.subr.mxu0 0.0
        %1905 = vmatpush1.xpose.msra.mxu0 0.0
        %1906 = vmatprep.subr.mxu0 0.0
        %1907 = vmatpush1.xpose.msra.mxu0 0.0
        %1908 = vmatprep.subr.mxu0 0.0
        %1909 = vmatpush1.xpose.msra.mxu0 0.0
        %1910 = vmatprep.subr.mxu0 0.0
        %1911 = vmatpush1.xpose.msra.mxu0 0.0
        %1912 = vmatprep.subr.mxu0 0.0
        %1913 = vmatpush1.xpose.msra.mxu0 0.0
        %1914 = vmatprep.subr.mxu0 0.0
        %1915 = vmatpush1.xpose.msra.mxu0 0.0
        %1916 = vmatprep.subr.mxu0 0.0
        %1917 = vmatpush1.xpose.msra.mxu0 0.0
        %1918 = vmatprep.subr.mxu0 0.0
        %1919 = vmatpush1.xpose.msra.mxu0 0.0
        %1920 = vmatprep.subr.mxu0 0.0
        %1921 = vmatpush1.xpose.msra.mxu0 0.0
        %1922 = vmatprep.subr.mxu0 0.0
        %1923 = vmatpush1.xpose.msra.mxu0 0.0
        %1924 = vmatprep.subr.mxu0 0.0
        %1925 = vmatpush1.xpose.msra.mxu0 0.0
        %1926 = vmatprep.subr.mxu0 0.0
        %1927 = vmatpush1.xpose.msra.mxu0 0.0
        %1928 = vmatprep.subr.mxu0 0.0
        %1929 = vmatpush1.xpose.msra.mxu0 0.0
        %1930 = vmatprep.subr.mxu0 0.0
        %1931 = vmatpush1.xpose.msra.mxu0 0.0
        %1932 = vmatprep.subr.mxu0 0.0
        %1933 = vmatpush1.xpose.msra.mxu0 0.0
        %1934 = vmatprep.subr.mxu0 0.0
        %1935 = vmatpush1.xpose.msra.mxu0 0.0
        %1936 = vmatprep.subr.mxu0 0.0
        %1937 = vmatpush1.xpose.msra.mxu0 0.0
        %1938 = vmatprep.subr.mxu0 0.0
        %1939 = vmatpush1.xpose.msra.mxu0 0.0
        %1940 = vmatprep.subr.mxu0 0.0
        %1941 = vmatpush1.xpose.msra.mxu0 0.0
        %1942 = vmatprep.subr.mxu0 0.0
        %1943 = vmatpush1.xpose.msra.mxu0 0.0
        %1944 = vmatprep.subr.mxu0 0.0
        %1945 = vmatpush1.xpose.msra.mxu0 0.0
        %1946 = vmatprep.subr.mxu0 0.0
        %1947 = vmatpush1.xpose.msra.mxu0 0.0
        %1948 = vmatprep.subr.mxu0 0.0
        %1949 = vmatpush1.xpose.msra.mxu0 0.0
        %1950 = vmatprep.subr.mxu0 0.0
        %1951 = vmatpush1.xpose.msra.mxu0 0.0
        %1952 = vmatprep.subr.mxu0 0.0
        %1953 = vmatpush1.xpose.msra.mxu0 0.0
        %1954 = vmatprep.mubr.f32.mxu0 0.0
        %1955 = vmatmul.mubr.f32.gmra.mrb[0].mxu0 %v1882
        %v1956 = vpop.f32.mrb[0].mxu0
        %v1957 = vadd.f32 %v329, %v1956
        %v1958 = vpop.f32.mrb[0].mxu0
        %1959 = vmatprep.mubr.f32.mxu0 0.0
        %1960 = vmatmul.mubr.f32.gmra.mrb[0].mxu0 %v1884
        %v1961 = vpop.f32.mrb[0].mxu0
        %v1962 = vadd.f32 %v330, %v1961
        %v1963 = vpop.f32.mrb[0].mxu0
        %1964 = vdwg.mxu0
        %1965 = vrot.lane.b32.xlu0 %v840, 120
        %v1966 = vpop.permute.xlu0 %1965
        %1967 = vrot.lane.b32.xlu0 %v841, 120
        %v1968 = vpop.permute.xlu0 %1967
        %1969 = vrot.lane.b32.xlu0 %v951, 120
        %v1970 = vpop.permute.xlu0 %1969
        %1971 = vrot.lane.b32.xlu0 %v956, 120
        %v1972 = vpop.permute.xlu0 %1971
        %v1973 = vsel %vm1112, %v1966, 0
        %v1975 = vsel %vm1112, %v1968, 0
        %v1977 = vsel %vm1112, %v1970, 0
        %v1979 = vsel %vm1112, %v1972, 0
        %1981 = vmatprep.subr.mxu0 0.0
        %1982 = vmatpush1.xpose.msra.mxu0 %v1977
        %1983 = vmatprep.subr.mxu0 0.0
        %1984 = vmatpush1.xpose.msra.mxu0 %v1979
        %1985 = vmatprep.subr.mxu0 0.0
        %1986 = vmatpush1.xpose.msra.mxu0 0.0
        %1987 = vmatprep.subr.mxu0 0.0
        %1988 = vmatpush1.xpose.msra.mxu0 0.0
        %1989 = vmatprep.subr.mxu0 0.0
        %1990 = vmatpush1.xpose.msra.mxu0 0.0
        %1991 = vmatprep.subr.mxu0 0.0
        %1992 = vmatpush1.xpose.msra.mxu0 0.0
        %1993 = vmatprep.subr.mxu0 0.0
        %1994 = vmatpush1.xpose.msra.mxu0 0.0
        %1995 = vmatprep.subr.mxu0 0.0
        %1996 = vmatpush1.xpose.msra.mxu0 0.0
        %1997 = vmatprep.subr.mxu0 0.0
        %1998 = vmatpush1.xpose.msra.mxu0 0.0
        %1999 = vmatprep.subr.mxu0 0.0
        %2000 = vmatpush1.xpose.msra.mxu0 0.0
        %2001 = vmatprep.subr.mxu0 0.0
        %2002 = vmatpush1.xpose.msra.mxu0 0.0
        %2003 = vmatprep.subr.mxu0 0.0
        %2004 = vmatpush1.xpose.msra.mxu0 0.0
        %2005 = vmatprep.subr.mxu0 0.0
        %2006 = vmatpush1.xpose.msra.mxu0 0.0
        %2007 = vmatprep.subr.mxu0 0.0
        %2008 = vmatpush1.xpose.msra.mxu0 0.0
        %2009 = vmatprep.subr.mxu0 0.0
        %2010 = vmatpush1.xpose.msra.mxu0 0.0
        %2011 = vmatprep.subr.mxu0 0.0
        %2012 = vmatpush1.xpose.msra.mxu0 0.0
        %2013 = vmatprep.subr.mxu0 0.0
        %2014 = vmatpush1.xpose.msra.mxu0 0.0
        %2015 = vmatprep.subr.mxu0 0.0
        %2016 = vmatpush1.xpose.msra.mxu0 0.0
        %2017 = vmatprep.subr.mxu0 0.0
        %2018 = vmatpush1.xpose.msra.mxu0 0.0
        %2019 = vmatprep.subr.mxu0 0.0
        %2020 = vmatpush1.xpose.msra.mxu0 0.0
        %2021 = vmatprep.subr.mxu0 0.0
        %2022 = vmatpush1.xpose.msra.mxu0 0.0
        %2023 = vmatprep.subr.mxu0 0.0
        %2024 = vmatpush1.xpose.msra.mxu0 0.0
        %2025 = vmatprep.subr.mxu0 0.0
        %2026 = vmatpush1.xpose.msra.mxu0 0.0
        %2027 = vmatprep.subr.mxu0 0.0
        %2028 = vmatpush1.xpose.msra.mxu0 0.0
        %2029 = vmatprep.subr.mxu0 0.0
        %2030 = vmatpush1.xpose.msra.mxu0 0.0
        %2031 = vmatprep.subr.mxu0 0.0
        %2032 = vmatpush1.xpose.msra.mxu0 0.0
        %2033 = vmatprep.subr.mxu0 0.0
        %2034 = vmatpush1.xpose.msra.mxu0 0.0
        %2035 = vmatprep.subr.mxu0 0.0
        %2036 = vmatpush1.xpose.msra.mxu0 0.0
        %2037 = vmatprep.subr.mxu0 0.0
        %2038 = vmatpush1.xpose.msra.mxu0 0.0
        %2039 = vmatprep.subr.mxu0 0.0
        %2040 = vmatpush1.xpose.msra.mxu0 0.0
        %2041 = vmatprep.subr.mxu0 0.0
        %2042 = vmatpush1.xpose.msra.mxu0 0.0
        %2043 = vmatprep.subr.mxu0 0.0
        %2044 = vmatpush1.xpose.msra.mxu0 0.0
        %2045 = vmatprep.mubr.f32.mxu0 0.0
        %2046 = vmatmul.mubr.f32.gmra.mrb[0].mxu0 %v1973
        %v2047 = vpop.f32.mrb[0].mxu0
        %v2048 = vadd.f32 %v329, %v2047
        %v2049 = vpop.f32.mrb[0].mxu0
        %2050 = vmatprep.mubr.f32.mxu0 0.0
        %2051 = vmatmul.mubr.f32.gmra.mrb[0].mxu0 %v1975
        %v2052 = vpop.f32.mrb[0].mxu0
        %v2053 = vadd.f32 %v330, %v2052
        %v2054 = vpop.f32.mrb[0].mxu0
        %2055 = vdwg.mxu0
        %2056 = vrot.lane.b32.xlu0 %v842, 120
        %v2057 = vpop.permute.xlu0 %2056
        %2058 = vrot.lane.b32.xlu0 %v843, 120
        %v2059 = vpop.permute.xlu0 %2058
        %2060 = vrot.lane.b32.xlu0 %v961, 120
        %v2061 = vpop.permute.xlu0 %2060
        %2062 = vrot.lane.b32.xlu0 %v966, 120
        %v2063 = vpop.permute.xlu0 %2062
        %v2064 = vsel %vm1112, %v2057, 0
        %v2066 = vsel %vm1112, %v2059, 0
        %v2068 = vsel %vm1112, %v2061, 0
        %v2070 = vsel %vm1112, %v2063, 0
        %2072 = vmatprep.subr.mxu0 0.0
        %2073 = vmatpush1.xpose.msra.mxu0 %v2068
        %2074 = vmatprep.subr.mxu0 0.0
        %2075 = vmatpush1.xpose.msra.mxu0 %v2070
        %2076 = vmatprep.subr.mxu0 0.0
        %2077 = vmatpush1.xpose.msra.mxu0 0.0
        %2078 = vmatprep.subr.mxu0 0.0
        %2079 = vmatpush1.xpose.msra.mxu0 0.0
        %2080 = vmatprep.subr.mxu0 0.0
        %2081 = vmatpush1.xpose.msra.mxu0 0.0
        %2082 = vmatprep.subr.mxu0 0.0
        %2083 = vmatpush1.xpose.msra.mxu0 0.0
        %2084 = vmatprep.subr.mxu0 0.0
        %2085 = vmatpush1.xpose.msra.mxu0 0.0
        %2086 = vmatprep.subr.mxu0 0.0
        %2087 = vmatpush1.xpose.msra.mxu0 0.0
        %2088 = vmatprep.subr.mxu0 0.0
        %2089 = vmatpush1.xpose.msra.mxu0 0.0
        %2090 = vmatprep.subr.mxu0 0.0
        %2091 = vmatpush1.xpose.msra.mxu0 0.0
        %2092 = vmatprep.subr.mxu0 0.0
        %2093 = vmatpush1.xpose.msra.mxu0 0.0
        %2094 = vmatprep.subr.mxu0 0.0
        %2095 = vmatpush1.xpose.msra.mxu0 0.0
        %2096 = vmatprep.subr.mxu0 0.0
        %2097 = vmatpush1.xpose.msra.mxu0 0.0
        %2098 = vmatprep.subr.mxu0 0.0
        %2099 = vmatpush1.xpose.msra.mxu0 0.0
        %2100 = vmatprep.subr.mxu0 0.0
        %2101 = vmatpush1.xpose.msra.mxu0 0.0
        %2102 = vmatprep.subr.mxu0 0.0
        %2103 = vmatpush1.xpose.msra.mxu0 0.0
        %2104 = vmatprep.subr.mxu0 0.0
        %2105 = vmatpush1.xpose.msra.mxu0 0.0
        %2106 = vmatprep.subr.mxu0 0.0
        %2107 = vmatpush1.xpose.msra.mxu0 0.0
        %2108 = vmatprep.subr.mxu0 0.0
        %2109 = vmatpush1.xpose.msra.mxu0 0.0
        %2110 = vmatprep.subr.mxu0 0.0
        %2111 = vmatpush1.xpose.msra.mxu0 0.0
        %2112 = vmatprep.subr.mxu0 0.0
        %2113 = vmatpush1.xpose.msra.mxu0 0.0
        %2114 = vmatprep.subr.mxu0 0.0
        %2115 = vmatpush1.xpose.msra.mxu0 0.0
        %2116 = vmatprep.subr.mxu0 0.0
        %2117 = vmatpush1.xpose.msra.mxu0 0.0
        %2118 = vmatprep.subr.mxu0 0.0
        %2119 = vmatpush1.xpose.msra.mxu0 0.0
        %2120 = vmatprep.subr.mxu0 0.0
        %2121 = vmatpush1.xpose.msra.mxu0 0.0
        %2122 = vmatprep.subr.mxu0 0.0
        %2123 = vmatpush1.xpose.msra.mxu0 0.0
        %2124 = vmatprep.subr.mxu0 0.0
        %2125 = vmatpush1.xpose.msra.mxu0 0.0
        %2126 = vmatprep.subr.mxu0 0.0
        %2127 = vmatpush1.xpose.msra.mxu0 0.0
        %2128 = vmatprep.subr.mxu0 0.0
        %2129 = vmatpush1.xpose.msra.mxu0 0.0
        %2130 = vmatprep.subr.mxu0 0.0
        %2131 = vmatpush1.xpose.msra.mxu0 0.0
        %2132 = vmatprep.subr.mxu0 0.0
        %2133 = vmatpush1.xpose.msra.mxu0 0.0
        %2134 = vmatprep.subr.mxu0 0.0
        %2135 = vmatpush1.xpose.msra.mxu0 0.0
        %2136 = vmatprep.mubr.f32.mxu0 0.0
        %2137 = vmatmul.mubr.f32.gmra.mrb[0].mxu0 %v2064
        %v2138 = vpop.f32.mrb[0].mxu0
        %v2139 = vadd.f32 %v329, %v2138
        %v2140 = vpop.f32.mrb[0].mxu0
        %2141 = vmatprep.mubr.f32.mxu0 0.0
        %2142 = vmatmul.mubr.f32.gmra.mrb[0].mxu0 %v2066
        %v2143 = vpop.f32.mrb[0].mxu0
        %v2144 = vadd.f32 %v330, %v2143
        %v2145 = vpop.f32.mrb[0].mxu0
        %2146 = vdwg.mxu0
        %2147 = vrot.lane.b32.xlu0 %v844, 120
        %v2148 = vpop.permute.xlu0 %2147
        %2149 = vrot.lane.b32.xlu0 %v845, 120
        %v2150 = vpop.permute.xlu0 %2149
        %2151 = vrot.lane.b32.xlu0 %v971, 120
        %v2152 = vpop.permute.xlu0 %2151
        %2153 = vrot.lane.b32.xlu0 %v976, 120
        %v2154 = vpop.permute.xlu0 %2153
        %v2155 = vsel %vm1112, %v2148, 0
        %v2157 = vsel %vm1112, %v2150, 0
        %v2159 = vsel %vm1112, %v2152, 0
        %v2161 = vsel %vm1112, %v2154, 0
        %2163 = vmatprep.subr.mxu0 0.0
        %2164 = vmatpush1.xpose.msra.mxu0 %v2159
        %2165 = vmatprep.subr.mxu0 0.0
        %2166 = vmatpush1.xpose.msra.mxu0 %v2161
        %2167 = vmatprep.subr.mxu0 0.0
        %2168 = vmatpush1.xpose.msra.mxu0 0.0
        %2169 = vmatprep.subr.mxu0 0.0
        %2170 = vmatpush1.xpose.msra.mxu0 0.0
        %2171 = vmatprep.subr.mxu0 0.0
        %2172 = vmatpush1.xpose.msra.mxu0 0.0
        %2173 = vmatprep.subr.mxu0 0.0
        %2174 = vmatpush1.xpose.msra.mxu0 0.0
        %2175 = vmatprep.subr.mxu0 0.0
        %2176 = vmatpush1.xpose.msra.mxu0 0.0
        %2177 = vmatprep.subr.mxu0 0.0
        %2178 = vmatpush1.xpose.msra.mxu0 0.0
        %2179 = vmatprep.subr.mxu0 0.0
        %2180 = vmatpush1.xpose.msra.mxu0 0.0
        %2181 = vmatprep.subr.mxu0 0.0
        %2182 = vmatpush1.xpose.msra.mxu0 0.0
        %2183 = vmatprep.subr.mxu0 0.0
        %2184 = vmatpush1.xpose.msra.mxu0 0.0
        %2185 = vmatprep.subr.mxu0 0.0
        %2186 = vmatpush1.xpose.msra.mxu0 0.0
        %2187 = vmatprep.subr.mxu0 0.0
        %2188 = vmatpush1.xpose.msra.mxu0 0.0
        %2189 = vmatprep.subr.mxu0 0.0
        %2190 = vmatpush1.xpose.msra.mxu0 0.0
        %2191 = vmatprep.subr.mxu0 0.0
        %2192 = vmatpush1.xpose.msra.mxu0 0.0
        %2193 = vmatprep.subr.mxu0 0.0
        %2194 = vmatpush1.xpose.msra.mxu0 0.0
        %2195 = vmatprep.subr.mxu0 0.0
        %2196 = vmatpush1.xpose.msra.mxu0 0.0
        %2197 = vmatprep.subr.mxu0 0.0
        %2198 = vmatpush1.xpose.msra.mxu0 0.0
        %2199 = vmatprep.subr.mxu0 0.0
        %2200 = vmatpush1.xpose.msra.mxu0 0.0
        %2201 = vmatprep.subr.mxu0 0.0
        %2202 = vmatpush1.xpose.msra.mxu0 0.0
        %2203 = vmatprep.subr.mxu0 0.0
        %2204 = vmatpush1.xpose.msra.mxu0 0.0
        %2205 = vmatprep.subr.mxu0 0.0
        %2206 = vmatpush1.xpose.msra.mxu0 0.0
        %2207 = vmatprep.subr.mxu0 0.0
        %2208 = vmatpush1.xpose.msra.mxu0 0.0
        %2209 = vmatprep.subr.mxu0 0.0
        %2210 = vmatpush1.xpose.msra.mxu0 0.0
        %2211 = vmatprep.subr.mxu0 0.0
        %2212 = vmatpush1.xpose.msra.mxu0 0.0
        %2213 = vmatprep.subr.mxu0 0.0
        %2214 = vmatpush1.xpose.msra.mxu0 0.0
        %2215 = vmatprep.subr.mxu0 0.0
        %2216 = vmatpush1.xpose.msra.mxu0 0.0
        %2217 = vmatprep.subr.mxu0 0.0
        %2218 = vmatpush1.xpose.msra.mxu0 0.0
        %2219 = vmatprep.subr.mxu0 0.0
        %2220 = vmatpush1.xpose.msra.mxu0 0.0
        %2221 = vmatprep.subr.mxu0 0.0
        %2222 = vmatpush1.xpose.msra.mxu0 0.0
        %2223 = vmatprep.subr.mxu0 0.0
        %2224 = vmatpush1.xpose.msra.mxu0 0.0
        %2225 = vmatprep.subr.mxu0 0.0
        %2226 = vmatpush1.xpose.msra.mxu0 0.0
        %2227 = vmatprep.mubr.f32.mxu0 0.0
        %2228 = vmatmul.mubr.f32.gmra.mrb[0].mxu0 %v2155
        %v2229 = vpop.f32.mrb[0].mxu0
        %v2230 = vadd.f32 %v329, %v2229
        %v2231 = vpop.f32.mrb[0].mxu0
        %2232 = vmatprep.mubr.f32.mxu0 0.0
        %2233 = vmatmul.mubr.f32.gmra.mrb[0].mxu0 %v2157
        %v2234 = vpop.f32.mrb[0].mxu0
        %v2235 = vadd.f32 %v330, %v2234
        %v2236 = vpop.f32.mrb[0].mxu0
        %2237 = vdwg.mxu0
        %v2238 = vsel %vm1461, %v1957, -inf
        %2239 = vmax.xlane.f32.xlu0 %v2238
        %v2240 = vpop.xlane.xlu0 %2239
        %v2241 = vsel %vm1461, %v1962, -inf
        %2242 = vmax.xlane.f32.xlu0 %v2241
        %v2243 = vpop.xlane.xlu0 %2242
        %v2244 = vsel %vm1461, %v2048, -inf
        %2245 = vmax.xlane.f32.xlu0 %v2244
        %v2246 = vpop.xlane.xlu0 %2245
        %v2247 = vsel %vm1461, %v2053, -inf
        %2248 = vmax.xlane.f32.xlu0 %v2247
        %v2249 = vpop.xlane.xlu0 %2248
        %v2250 = vsel %vm1461, %v2139, -inf
        %2251 = vmax.xlane.f32.xlu0 %v2250
        %v2252 = vpop.xlane.xlu0 %2251
        %v2253 = vsel %vm1461, %v2144, -inf
        %2254 = vmax.xlane.f32.xlu0 %v2253
        %v2255 = vpop.xlane.xlu0 %2254
        %v2256 = vsel %vm1461, %v2230, -inf
        %2257 = vmax.xlane.f32.xlu0 %v2256
        %v2258 = vpop.xlane.xlu0 %2257
        %v2259 = vsel %vm1461, %v2235, -inf
        %2260 = vmax.xlane.f32.xlu0 %v2259
        %v2261 = vpop.xlane.xlu0 %2260
        %v2262 = vsub.f32 %v1957, %v2240
        %v2263 = vsub.f32 %v1962, %v2243
        %v2264 = vsub.f32 %v2048, %v2246
        %v2265 = vsub.f32 %v2053, %v2249
        %v2266 = vsub.f32 %v2139, %v2252
        %v2267 = vsub.f32 %v2144, %v2255
        %v2268 = vsub.f32 %v2230, %v2258
        %v2269 = vsub.f32 %v2235, %v2261
        %v2270 = vmul.f32 %v2262, 1.442695
        %v2271 = vpow.pop %v2270
        %v2272 = vmul.f32 %v2263, 1.442695
        %v2273 = vpow.pop %v2272
        %v2274 = vmul.f32 %v2264, 1.442695
        %v2275 = vpow.pop %v2274
        %v2276 = vmul.f32 %v2265, 1.442695
        %v2277 = vpow.pop %v2276
        %v2278 = vmul.f32 %v2266, 1.442695
        %v2279 = vpow.pop %v2278
        %v2280 = vmul.f32 %v2267, 1.442695
        %v2281 = vpow.pop %v2280
        %v2282 = vmul.f32 %v2268, 1.442695
        %v2283 = vpow.pop %v2282
        %v2284 = vmul.f32 %v2269, 1.442695
        %v2285 = vpow.pop %v2284
        %v2286 = vsel %vm1461, %v2271, 0.0
        %2287 = vadd.xlane.f32.xlu0 %v2286
        %v2288 = vpop.xlane.xlu0 %2287
        %v2289 = vsel %vm1461, %v2273, 0.0
        %2290 = vadd.xlane.f32.xlu0 %v2289
        %v2291 = vpop.xlane.xlu0 %2290
        %v2292 = vsel %vm1461, %v2275, 0.0
        %2293 = vadd.xlane.f32.xlu0 %v2292
        %v2294 = vpop.xlane.xlu0 %2293
        %v2295 = vsel %vm1461, %v2277, 0.0
        %2296 = vadd.xlane.f32.xlu0 %v2295
        %v2297 = vpop.xlane.xlu0 %2296
        %v2298 = vsel %vm1461, %v2279, 0.0
        %2299 = vadd.xlane.f32.xlu0 %v2298
        %v2300 = vpop.xlane.xlu0 %2299
        %v2301 = vsel %vm1461, %v2281, 0.0
        %2302 = vadd.xlane.f32.xlu0 %v2301
        %v2303 = vpop.xlane.xlu0 %2302
        %v2304 = vsel %vm1461, %v2283, 0.0
        %2305 = vadd.xlane.f32.xlu0 %v2304
        %v2306 = vpop.xlane.xlu0 %2305
        %v2307 = vsel %vm1461, %v2285, 0.0
        %2308 = vadd.xlane.f32.xlu0 %v2307
        %v2309 = vpop.xlane.xlu0 %2308
        %v2310 = vrcp.pop %v2288
        %v2311 = vrcp.pop %v2291
        %v2312 = vrcp.pop %v2294
        %v2313 = vrcp.pop %v2297
        %v2314 = vrcp.pop %v2300
        %v2315 = vrcp.pop %v2303
        %v2316 = vrcp.pop %v2306
        %v2317 = vrcp.pop %v2309
        %v2318 = vmul.f32 %v2271, %v2310
        %v2319 = vmul.f32 %v2273, %v2311
        %v2320 = vmul.f32 %v2275, %v2312
        %v2321 = vmul.f32 %v2277, %v2313
        %v2322 = vmul.f32 %v2279, %v2314
        %v2323 = vmul.f32 %v2281, %v2315
        %v2324 = vmul.f32 %v2283, %v2316
        %v2325 = vmul.f32 %v2285, %v2317
        %2328 = vrot.lane.b32.xlu0 %v1074, 120
        %v2329 = vpop.permute.xlu0 %2328
        %2330 = vrot.lane.b32.xlu0 %v1079, 120
        %v2331 = vpop.permute.xlu0 %2330
        %v2335 = vsel %vm1461, %v2318, 0
        %v2338 = vsel %vm1461, %v2319, 0
        %2340 = vmatprep.subr.mxu0 0.0
        %2341 = vmatpush1.msra.mxu0 %v2329
        %2342 = vmatprep.subr.mxu0 0.0
        %2343 = vmatpush1.msra.mxu0 %v2331
        %2344 = vmatprep.subr.mxu0 0.0
        %2345 = vmatpush1.msra.mxu0 0.0
        %2346 = vmatprep.subr.mxu0 0.0
        %2347 = vmatpush1.msra.mxu0 0.0
        %2348 = vmatprep.subr.mxu0 0.0
        %2349 = vmatpush1.msra.mxu0 0.0
        %2350 = vmatprep.subr.mxu0 0.0
        %2351 = vmatpush1.msra.mxu0 0.0
        %2352 = vmatprep.subr.mxu0 0.0
        %2353 = vmatpush1.msra.mxu0 0.0
        %2354 = vmatprep.subr.mxu0 0.0
        %2355 = vmatpush1.msra.mxu0 0.0
        %2356 = vmatprep.subr.mxu0 0.0
        %2357 = vmatpush1.msra.mxu0 0.0
        %2358 = vmatprep.subr.mxu0 0.0
        %2359 = vmatpush1.msra.mxu0 0.0
        %2360 = vmatprep.subr.mxu0 0.0
        %2361 = vmatpush1.msra.mxu0 0.0
        %2362 = vmatprep.subr.mxu0 0.0
        %2363 = vmatpush1.msra.mxu0 0.0
        %2364 = vmatprep.subr.mxu0 0.0
        %2365 = vmatpush1.msra.mxu0 0.0
        %2366 = vmatprep.subr.mxu0 0.0
        %2367 = vmatpush1.msra.mxu0 0.0
        %2368 = vmatprep.subr.mxu0 0.0
        %2369 = vmatpush1.msra.mxu0 0.0
        %2370 = vmatprep.subr.mxu0 0.0
        %2371 = vmatpush1.msra.mxu0 0.0
        %2372 = vmatprep.subr.mxu0 0.0
        %2373 = vmatpush1.msra.mxu0 0.0
        %2374 = vmatprep.subr.mxu0 0.0
        %2375 = vmatpush1.msra.mxu0 0.0
        %2376 = vmatprep.subr.mxu0 0.0
        %2377 = vmatpush1.msra.mxu0 0.0
        %2378 = vmatprep.subr.mxu0 0.0
        %2379 = vmatpush1.msra.mxu0 0.0
        %2380 = vmatprep.subr.mxu0 0.0
        %2381 = vmatpush1.msra.mxu0 0.0
        %2382 = vmatprep.subr.mxu0 0.0
        %2383 = vmatpush1.msra.mxu0 0.0
        %2384 = vmatprep.subr.mxu0 0.0
        %2385 = vmatpush1.msra.mxu0 0.0
        %2386 = vmatprep.subr.mxu0 0.0
        %2387 = vmatpush1.msra.mxu0 0.0
        %2388 = vmatprep.subr.mxu0 0.0
        %2389 = vmatpush1.msra.mxu0 0.0
        %2390 = vmatprep.subr.mxu0 0.0
        %2391 = vmatpush1.msra.mxu0 0.0
        %2392 = vmatprep.subr.mxu0 0.0
        %2393 = vmatpush1.msra.mxu0 0.0
        %2394 = vmatprep.subr.mxu0 0.0
        %2395 = vmatpush1.msra.mxu0 0.0
        %2396 = vmatprep.subr.mxu0 0.0
        %2397 = vmatpush1.msra.mxu0 0.0
        %2398 = vmatprep.subr.mxu0 0.0
        %2399 = vmatpush1.msra.mxu0 0.0
        %2400 = vmatprep.subr.mxu0 0.0
        %2401 = vmatpush1.msra.mxu0 0.0
        %2402 = vmatprep.subr.mxu0 0.0
        %2403 = vmatpush1.msra.mxu0 0.0
        %2404 = vmatprep.mubr.f32.mxu0 0.0
        %2405 = vmatmul.mubr.f32.gmra.mrb[0].mxu0 %v2335
        %v2406 = vpop.f32.mrb[0].mxu0
        %v2407 = vadd.f32 0.0, %v2406
        %v2408 = vpop.f32.mrb[0].mxu0
        %2409 = vmatprep.mubr.f32.mxu0 0.0
        %2410 = vmatmul.mubr.f32.gmra.mrb[0].mxu0 %v2338
        %v2411 = vpop.f32.mrb[0].mxu0
        %v2412 = vadd.f32 0.0, %v2411
        %v2413 = vpop.f32.mrb[0].mxu0
        %2414 = vdwg.mxu0
        %2417 = vrot.lane.b32.xlu0 %v1084, 120
        %v2418 = vpop.permute.xlu0 %2417
        %2419 = vrot.lane.b32.xlu0 %v1089, 120
        %v2420 = vpop.permute.xlu0 %2419
        %v2424 = vsel %vm1461, %v2320, 0
        %v2427 = vsel %vm1461, %v2321, 0
        %2429 = vmatprep.subr.mxu0 0.0
        %2430 = vmatpush1.msra.mxu0 %v2418
        %2431 = vmatprep.subr.mxu0 0.0
        %2432 = vmatpush1.msra.mxu0 %v2420
        %2433 = vmatprep.subr.mxu0 0.0
        %2434 = vmatpush1.msra.mxu0 0.0
        %2435 = vmatprep.subr.mxu0 0.0
        %2436 = vmatpush1.msra.mxu0 0.0
        %2437 = vmatprep.subr.mxu0 0.0
        %2438 = vmatpush1.msra.mxu0 0.0
        %2439 = vmatprep.subr.mxu0 0.0
        %2440 = vmatpush1.msra.mxu0 0.0
        %2441 = vmatprep.subr.mxu0 0.0
        %2442 = vmatpush1.msra.mxu0 0.0
        %2443 = vmatprep.subr.mxu0 0.0
        %2444 = vmatpush1.msra.mxu0 0.0
        %2445 = vmatprep.subr.mxu0 0.0
        %2446 = vmatpush1.msra.mxu0 0.0
        %2447 = vmatprep.subr.mxu0 0.0
        %2448 = vmatpush1.msra.mxu0 0.0
        %2449 = vmatprep.subr.mxu0 0.0
        %2450 = vmatpush1.msra.mxu0 0.0
        %2451 = vmatprep.subr.mxu0 0.0
        %2452 = vmatpush1.msra.mxu0 0.0
        %2453 = vmatprep.subr.mxu0 0.0
        %2454 = vmatpush1.msra.mxu0 0.0
        %2455 = vmatprep.subr.mxu0 0.0
        %2456 = vmatpush1.msra.mxu0 0.0
        %2457 = vmatprep.subr.mxu0 0.0
        %2458 = vmatpush1.msra.mxu0 0.0
        %2459 = vmatprep.subr.mxu0 0.0
        %2460 = vmatpush1.msra.mxu0 0.0
        %2461 = vmatprep.subr.mxu0 0.0
        %2462 = vmatpush1.msra.mxu0 0.0
        %2463 = vmatprep.subr.mxu0 0.0
        %2464 = vmatpush1.msra.mxu0 0.0
        %2465 = vmatprep.subr.mxu0 0.0
        %2466 = vmatpush1.msra.mxu0 0.0
        %2467 = vmatprep.subr.mxu0 0.0
        %2468 = vmatpush1.msra.mxu0 0.0
        %2469 = vmatprep.subr.mxu0 0.0
        %2470 = vmatpush1.msra.mxu0 0.0
        %2471 = vmatprep.subr.mxu0 0.0
        %2472 = vmatpush1.msra.mxu0 0.0
        %2473 = vmatprep.subr.mxu0 0.0
        %2474 = vmatpush1.msra.mxu0 0.0
        %2475 = vmatprep.subr.mxu0 0.0
        %2476 = vmatpush1.msra.mxu0 0.0
        %2477 = vmatprep.subr.mxu0 0.0
        %2478 = vmatpush1.msra.mxu0 0.0
        %2479 = vmatprep.subr.mxu0 0.0
        %2480 = vmatpush1.msra.mxu0 0.0
        %2481 = vmatprep.subr.mxu0 0.0
        %2482 = vmatpush1.msra.mxu0 0.0
        %2483 = vmatprep.subr.mxu0 0.0
        %2484 = vmatpush1.msra.mxu0 0.0
        %2485 = vmatprep.subr.mxu0 0.0
        %2486 = vmatpush1.msra.mxu0 0.0
        %2487 = vmatprep.subr.mxu0 0.0
        %2488 = vmatpush1.msra.mxu0 0.0
        %2489 = vmatprep.subr.mxu0 0.0
        %2490 = vmatpush1.msra.mxu0 0.0
        %2491 = vmatprep.subr.mxu0 0.0
        %2492 = vmatpush1.msra.mxu0 0.0
        %2493 = vmatprep.mubr.f32.mxu0 0.0
        %2494 = vmatmul.mubr.f32.gmra.mrb[0].mxu0 %v2424
        %v2495 = vpop.f32.mrb[0].mxu0
        %v2496 = vadd.f32 0.0, %v2495
        %v2497 = vpop.f32.mrb[0].mxu0
        %2498 = vmatprep.mubr.f32.mxu0 0.0
        %2499 = vmatmul.mubr.f32.gmra.mrb[0].mxu0 %v2427
        %v2500 = vpop.f32.mrb[0].mxu0
        %v2501 = vadd.f32 0.0, %v2500
        %v2502 = vpop.f32.mrb[0].mxu0
        %2503 = vdwg.mxu0
        %2506 = vrot.lane.b32.xlu0 %v1094, 120
        %v2507 = vpop.permute.xlu0 %2506
        %2508 = vrot.lane.b32.xlu0 %v1099, 120
        %v2509 = vpop.permute.xlu0 %2508
        %v2513 = vsel %vm1461, %v2322, 0
        %v2516 = vsel %vm1461, %v2323, 0
        %2518 = vmatprep.subr.mxu0 0.0
        %2519 = vmatpush1.msra.mxu0 %v2507
        %2520 = vmatprep.subr.mxu0 0.0
        %2521 = vmatpush1.msra.mxu0 %v2509
        %2522 = vmatprep.subr.mxu0 0.0
        %2523 = vmatpush1.msra.mxu0 0.0
        %2524 = vmatprep.subr.mxu0 0.0
        %2525 = vmatpush1.msra.mxu0 0.0
        %2526 = vmatprep.subr.mxu0 0.0
        %2527 = vmatpush1.msra.mxu0 0.0
        %2528 = vmatprep.subr.mxu0 0.0
        %2529 = vmatpush1.msra.mxu0 0.0
        %2530 = vmatprep.subr.mxu0 0.0
        %2531 = vmatpush1.msra.mxu0 0.0
        %2532 = vmatprep.subr.mxu0 0.0
        %2533 = vmatpush1.msra.mxu0 0.0
        %2534 = vmatprep.subr.mxu0 0.0
        %2535 = vmatpush1.msra.mxu0 0.0
        %2536 = vmatprep.subr.mxu0 0.0
        %2537 = vmatpush1.msra.mxu0 0.0
        %2538 = vmatprep.subr.mxu0 0.0
        %2539 = vmatpush1.msra.mxu0 0.0
        %2540 = vmatprep.subr.mxu0 0.0
        %2541 = vmatpush1.msra.mxu0 0.0
        %2542 = vmatprep.subr.mxu0 0.0
        %2543 = vmatpush1.msra.mxu0 0.0
        %2544 = vmatprep.subr.mxu0 0.0
        %2545 = vmatpush1.msra.mxu0 0.0
        %2546 = vmatprep.subr.mxu0 0.0
        %2547 = vmatpush1.msra.mxu0 0.0
        %2548 = vmatprep.subr.mxu0 0.0
        %2549 = vmatpush1.msra.mxu0 0.0
        %2550 = vmatprep.subr.mxu0 0.0
        %2551 = vmatpush1.msra.mxu0 0.0
        %2552 = vmatprep.subr.mxu0 0.0
        %2553 = vmatpush1.msra.mxu0 0.0
        %2554 = vmatprep.subr.mxu0 0.0
        %2555 = vmatpush1.msra.mxu0 0.0
        %2556 = vmatprep.subr.mxu0 0.0
        %2557 = vmatpush1.msra.mxu0 0.0
        %2558 = vmatprep.subr.mxu0 0.0
        %2559 = vmatpush1.msra.mxu0 0.0
        %2560 = vmatprep.subr.mxu0 0.0
        %2561 = vmatpush1.msra.mxu0 0.0
        %2562 = vmatprep.subr.mxu0 0.0
        %2563 = vmatpush1.msra.mxu0 0.0
        %2564 = vmatprep.subr.mxu0 0.0
        %2565 = vmatpush1.msra.mxu0 0.0
        %2566 = vmatprep.subr.mxu0 0.0
        %2567 = vmatpush1.msra.mxu0 0.0
        %2568 = vmatprep.subr.mxu0 0.0
        %2569 = vmatpush1.msra.mxu0 0.0
        %2570 = vmatprep.subr.mxu0 0.0
        %2571 = vmatpush1.msra.mxu0 0.0
        %2572 = vmatprep.subr.mxu0 0.0
        %2573 = vmatpush1.msra.mxu0 0.0
        %2574 = vmatprep.subr.mxu0 0.0
        %2575 = vmatpush1.msra.mxu0 0.0
        %2576 = vmatprep.subr.mxu0 0.0
        %2577 = vmatpush1.msra.mxu0 0.0
        %2578 = vmatprep.subr.mxu0 0.0
        %2579 = vmatpush1.msra.mxu0 0.0
        %2580 = vmatprep.subr.mxu0 0.0
        %2581 = vmatpush1.msra.mxu0 0.0
        %2582 = vmatprep.mubr.f32.mxu0 0.0
        %2583 = vmatmul.mubr.f32.gmra.mrb[0].mxu0 %v2513
        %v2584 = vpop.f32.mrb[0].mxu0
        %v2585 = vadd.f32 0.0, %v2584
        %v2586 = vpop.f32.mrb[0].mxu0
        %2587 = vmatprep.mubr.f32.mxu0 0.0
        %2588 = vmatmul.mubr.f32.gmra.mrb[0].mxu0 %v2516
        %v2589 = vpop.f32.mrb[0].mxu0
        %v2590 = vadd.f32 0.0, %v2589
        %v2591 = vpop.f32.mrb[0].mxu0
        %2592 = vdwg.mxu0
        %2595 = vrot.lane.b32.xlu0 %v1104, 120
        %v2596 = vpop.permute.xlu0 %2595
        %2597 = vrot.lane.b32.xlu0 %v1109, 120
        %v2598 = vpop.permute.xlu0 %2597
        %v2602 = vsel %vm1461, %v2324, 0
        %v2605 = vsel %vm1461, %v2325, 0
        %2607 = vmatprep.subr.mxu0 0.0
        %2608 = vmatpush1.msra.mxu0 %v2596
        %2609 = vmatprep.subr.mxu0 0.0
        %2610 = vmatpush1.msra.mxu0 %v2598
        %2611 = vmatprep.subr.mxu0 0.0
        %2612 = vmatpush1.msra.mxu0 0.0
        %2613 = vmatprep.subr.mxu0 0.0
        %2614 = vmatpush1.msra.mxu0 0.0
        %2615 = vmatprep.subr.mxu0 0.0
        %2616 = vmatpush1.msra.mxu0 0.0
        %2617 = vmatprep.subr.mxu0 0.0
        %2618 = vmatpush1.msra.mxu0 0.0
        %2619 = vmatprep.subr.mxu0 0.0
        %2620 = vmatpush1.msra.mxu0 0.0
        %2621 = vmatprep.subr.mxu0 0.0
        %2622 = vmatpush1.msra.mxu0 0.0
        %2623 = vmatprep.subr.mxu0 0.0
        %2624 = vmatpush1.msra.mxu0 0.0
        %2625 = vmatprep.subr.mxu0 0.0
        %2626 = vmatpush1.msra.mxu0 0.0
        %2627 = vmatprep.subr.mxu0 0.0
        %2628 = vmatpush1.msra.mxu0 0.0
        %2629 = vmatprep.subr.mxu0 0.0
        %2630 = vmatpush1.msra.mxu0 0.0
        %2631 = vmatprep.subr.mxu0 0.0
        %2632 = vmatpush1.msra.mxu0 0.0
        %2633 = vmatprep.subr.mxu0 0.0
        %2634 = vmatpush1.msra.mxu0 0.0
        %2635 = vmatprep.subr.mxu0 0.0
        %2636 = vmatpush1.msra.mxu0 0.0
        %2637 = vmatprep.subr.mxu0 0.0
        %2638 = vmatpush1.msra.mxu0 0.0
        %2639 = vmatprep.subr.mxu0 0.0
        %2640 = vmatpush1.msra.mxu0 0.0
        %2641 = vmatprep.subr.mxu0 0.0
        %2642 = vmatpush1.msra.mxu0 0.0
        %2643 = vmatprep.subr.mxu0 0.0
        %2644 = vmatpush1.msra.mxu0 0.0
        %2645 = vmatprep.subr.mxu0 0.0
        %2646 = vmatpush1.msra.mxu0 0.0
        %2647 = vmatprep.subr.mxu0 0.0
        %2648 = vmatpush1.msra.mxu0 0.0
        %2649 = vmatprep.subr.mxu0 0.0
        %2650 = vmatpush1.msra.mxu0 0.0
        %2651 = vmatprep.subr.mxu0 0.0
        %2652 = vmatpush1.msra.mxu0 0.0
        %2653 = vmatprep.subr.mxu0 0.0
        %2654 = vmatpush1.msra.mxu0 0.0
        %2655 = vmatprep.subr.mxu0 0.0
        %2656 = vmatpush1.msra.mxu0 0.0
        %2657 = vmatprep.subr.mxu0 0.0
        %2658 = vmatpush1.msra.mxu0 0.0
        %2659 = vmatprep.subr.mxu0 0.0
        %2660 = vmatpush1.msra.mxu0 0.0
        %2661 = vmatprep.subr.mxu0 0.0
        %2662 = vmatpush1.msra.mxu0 0.0
        %2663 = vmatprep.subr.mxu0 0.0
        %2664 = vmatpush1.msra.mxu0 0.0
        %2665 = vmatprep.subr.mxu0 0.0
        %2666 = vmatpush1.msra.mxu0 0.0
        %2667 = vmatprep.subr.mxu0 0.0
        %2668 = vmatpush1.msra.mxu0 0.0
        %2669 = vmatprep.subr.mxu0 0.0
        %2670 = vmatpush1.msra.mxu0 0.0
        %2671 = vmatprep.mubr.f32.mxu0 0.0
        %2672 = vmatmul.mubr.f32.gmra.mrb[0].mxu0 %v2602
        %v2673 = vpop.f32.mrb[0].mxu0
        %v2674 = vadd.f32 0.0, %v2673
        %v2675 = vpop.f32.mrb[0].mxu0
        %2676 = vmatprep.mubr.f32.mxu0 0.0
        %2677 = vmatmul.mubr.f32.gmra.mrb[0].mxu0 %v2605
        %v2678 = vpop.f32.mrb[0].mxu0
        %v2679 = vadd.f32 0.0, %v2678
        %v2680 = vpop.f32.mrb[0].mxu0
        %2681 = vdwg.mxu0
        %v2683 = vsel %vm1112, %v2407, 0
        %v2686 = vsel %vm1112, %v2412, 0
        %v2689 = vsel %vm1112, %v2496, 0
        %v2692 = vsel %vm1112, %v2501, 0
        %v2695 = vsel %vm1112, %v2585, 0
        %v2698 = vsel %vm1112, %v2590, 0
        %v2701 = vsel %vm1112, %v2674, 0
        %v2704 = vsel %vm1112, %v2679, 0
        %2706 = vmatprep.subr.mxu0 0.0
        %2707 = vmatpush1.msra.mxu0 %v324
        %2708 = vmatprep.subr.mxu0 0.0
        %2709 = vmatpush1.msra.mxu0 0.0
        %2710 = vmatprep.subr.mxu0 0.0
        %2711 = vmatpush1.msra.mxu0 0.0
        %2712 = vmatprep.subr.mxu0 0.0
        %2713 = vmatpush1.msra.mxu0 0.0
        %2714 = vmatprep.subr.mxu0 0.0
        %2715 = vmatpush1.msra.mxu0 0.0
        %2716 = vmatprep.subr.mxu0 0.0
        %2717 = vmatpush1.msra.mxu0 0.0
        %2718 = vmatprep.subr.mxu0 0.0
        %2719 = vmatpush1.msra.mxu0 0.0
        %2720 = vmatprep.subr.mxu0 0.0
        %2721 = vmatpush1.msra.mxu0 0.0
        %2722 = vmatprep.subr.mxu0 0.0
        %2723 = vmatpush1.msra.mxu0 0.0
        %2724 = vmatprep.subr.mxu0 0.0
        %2725 = vmatpush1.msra.mxu0 0.0
        %2726 = vmatprep.subr.mxu0 0.0
        %2727 = vmatpush1.msra.mxu0 0.0
        %2728 = vmatprep.subr.mxu0 0.0
        %2729 = vmatpush1.msra.mxu0 0.0
        %2730 = vmatprep.subr.mxu0 0.0
        %2731 = vmatpush1.msra.mxu0 0.0
        %2732 = vmatprep.subr.mxu0 0.0
        %2733 = vmatpush1.msra.mxu0 0.0
        %2734 = vmatprep.subr.mxu0 0.0
        %2735 = vmatpush1.msra.mxu0 0.0
        %2736 = vmatprep.subr.mxu0 0.0
        %2737 = vmatpush1.msra.mxu0 0.0
        %2738 = vmatprep.subr.mxu0 0.0
        %2739 = vmatpush1.msra.mxu0 0.0
        %2740 = vmatprep.subr.mxu0 0.0
        %2741 = vmatpush1.msra.mxu0 0.0
        %2742 = vmatprep.subr.mxu0 0.0
        %2743 = vmatpush1.msra.mxu0 0.0
        %2744 = vmatprep.subr.mxu0 0.0
        %2745 = vmatpush1.msra.mxu0 0.0
        %2746 = vmatprep.subr.mxu0 0.0
        %2747 = vmatpush1.msra.mxu0 0.0
        %2748 = vmatprep.subr.mxu0 0.0
        %2749 = vmatpush1.msra.mxu0 0.0
        %2750 = vmatprep.subr.mxu0 0.0
        %2751 = vmatpush1.msra.mxu0 0.0
        %2752 = vmatprep.subr.mxu0 0.0
        %2753 = vmatpush1.msra.mxu0 0.0
        %2754 = vmatprep.subr.mxu0 0.0
        %2755 = vmatpush1.msra.mxu0 0.0
        %2756 = vmatprep.subr.mxu0 0.0
        %2757 = vmatpush1.msra.mxu0 0.0
        %2758 = vmatprep.subr.mxu0 0.0
        %2759 = vmatpush1.msra.mxu0 0.0
        %2760 = vmatprep.subr.mxu0 0.0
        %2761 = vmatpush1.msra.mxu0 0.0
        %2762 = vmatprep.subr.mxu0 0.0
        %2763 = vmatpush1.msra.mxu0 0.0
        %2764 = vmatprep.subr.mxu0 0.0
        %2765 = vmatpush1.msra.mxu0 0.0
        %2766 = vmatprep.subr.mxu0 0.0
        %2767 = vmatpush1.msra.mxu0 0.0
        %2768 = vmatprep.subr.mxu0 0.0
        %2769 = vmatpush1.msra.mxu0 0.0
        %2770 = vmatprep.mubr.f32.mxu0 0.0
        %2771 = vmatmul.mubr.f32.gmra.mrb[0].mxu0 %v2683
        %v2772 = vpop.f32.mrb[0].mxu0
        %v2773 = vadd.f32 0.0, %v2772
        %v2774 = vpop.f32.mrb[0].mxu0
        %2775 = vmatprep.mubr.f32.mxu0 0.0
        %2776 = vmatmul.mubr.f32.gmra.mrb[0].mxu0 %v2686
        %v2777 = vpop.f32.mrb[0].mxu0
        %v2778 = vadd.f32 0.0, %v2777
        %v2779 = vpop.f32.mrb[0].mxu0
        %2780 = vmatprep.mubr.f32.mxu0 0.0
        %2781 = vmatmul.mubr.f32.gmra.mrb[0].mxu0 %v2689
        %v2782 = vpop.f32.mrb[0].mxu0
        %v2783 = vadd.f32 0.0, %v2782
        %v2784 = vpop.f32.mrb[0].mxu0
        %2785 = vmatprep.mubr.f32.mxu0 0.0
        %2786 = vmatmul.mubr.f32.gmra.mrb[0].mxu0 %v2692
        %v2787 = vpop.f32.mrb[0].mxu0
        %v2788 = vadd.f32 0.0, %v2787
        %v2789 = vpop.f32.mrb[0].mxu0
        %2790 = vmatprep.mubr.f32.mxu0 0.0
        %2791 = vmatmul.mubr.f32.gmra.mrb[0].mxu0 %v2695
        %v2792 = vpop.f32.mrb[0].mxu0
        %v2793 = vadd.f32 0.0, %v2792
        %v2794 = vpop.f32.mrb[0].mxu0
        %2795 = vmatprep.mubr.f32.mxu0 0.0
        %2796 = vmatmul.mubr.f32.gmra.mrb[0].mxu0 %v2698
        %v2797 = vpop.f32.mrb[0].mxu0
        %v2798 = vadd.f32 0.0, %v2797
        %v2799 = vpop.f32.mrb[0].mxu0
        %2800 = vmatprep.mubr.f32.mxu0 0.0
        %2801 = vmatmul.mubr.f32.gmra.mrb[0].mxu0 %v2701
        %v2802 = vpop.f32.mrb[0].mxu0
        %v2803 = vadd.f32 0.0, %v2802
        %v2804 = vpop.f32.mrb[0].mxu0
        %2805 = vmatprep.mubr.f32.mxu0 0.0
        %2806 = vmatmul.mubr.f32.gmra.mrb[0].mxu0 %v2704
        %v2807 = vpop.f32.mrb[0].mxu0
        %v2808 = vadd.f32 0.0, %v2807
        %v2809 = vpop.f32.mrb[0].mxu0
        %2810 = vdwg.mxu0
        %v2812 = vsel %vm1112, %v1623, 0
        %v2815 = vsel %vm1112, %v1628, 0
        %v2818 = vsel %vm1112, %v1704, 0
        %v2821 = vsel %vm1112, %v1709, 0
        %v2824 = vsel %vm1112, %v1785, 0
        %v2827 = vsel %vm1112, %v1790, 0
        %v2830 = vsel %vm1112, %v1866, 0
        %v2833 = vsel %vm1112, %v1871, 0
        %2835 = vmatprep.subr.mxu0 0.0
        %2836 = vmatpush1.msra.mxu0 %v323
        %2837 = vmatprep.subr.mxu0 0.0
        %2838 = vmatpush1.msra.mxu0 0.0
        %2839 = vmatprep.subr.mxu0 0.0
        %2840 = vmatpush1.msra.mxu0 0.0
        %2841 = vmatprep.subr.mxu0 0.0
        %2842 = vmatpush1.msra.mxu0 0.0
        %2843 = vmatprep.subr.mxu0 0.0
        %2844 = vmatpush1.msra.mxu0 0.0
        %2845 = vmatprep.subr.mxu0 0.0
        %2846 = vmatpush1.msra.mxu0 0.0
        %2847 = vmatprep.subr.mxu0 0.0
        %2848 = vmatpush1.msra.mxu0 0.0
        %2849 = vmatprep.subr.mxu0 0.0
        %2850 = vmatpush1.msra.mxu0 0.0
        %2851 = vmatprep.subr.mxu0 0.0
        %2852 = vmatpush1.msra.mxu0 0.0
        %2853 = vmatprep.subr.mxu0 0.0
        %2854 = vmatpush1.msra.mxu0 0.0
        %2855 = vmatprep.subr.mxu0 0.0
        %2856 = vmatpush1.msra.mxu0 0.0
        %2857 = vmatprep.subr.mxu0 0.0
        %2858 = vmatpush1.msra.mxu0 0.0
        %2859 = vmatprep.subr.mxu0 0.0
        %2860 = vmatpush1.msra.mxu0 0.0
        %2861 = vmatprep.subr.mxu0 0.0
        %2862 = vmatpush1.msra.mxu0 0.0
        %2863 = vmatprep.subr.mxu0 0.0
        %2864 = vmatpush1.msra.mxu0 0.0
        %2865 = vmatprep.subr.mxu0 0.0
        %2866 = vmatpush1.msra.mxu0 0.0
        %2867 = vmatprep.subr.mxu0 0.0
        %2868 = vmatpush1.msra.mxu0 0.0
        %2869 = vmatprep.subr.mxu0 0.0
        %2870 = vmatpush1.msra.mxu0 0.0
        %2871 = vmatprep.subr.mxu0 0.0
        %2872 = vmatpush1.msra.mxu0 0.0
        %2873 = vmatprep.subr.mxu0 0.0
        %2874 = vmatpush1.msra.mxu0 0.0
        %2875 = vmatprep.subr.mxu0 0.0
        %2876 = vmatpush1.msra.mxu0 0.0
        %2877 = vmatprep.subr.mxu0 0.0
        %2878 = vmatpush1.msra.mxu0 0.0
        %2879 = vmatprep.subr.mxu0 0.0
        %2880 = vmatpush1.msra.mxu0 0.0
        %2881 = vmatprep.subr.mxu0 0.0
        %2882 = vmatpush1.msra.mxu0 0.0
        %2883 = vmatprep.subr.mxu0 0.0
        %2884 = vmatpush1.msra.mxu0 0.0
        %2885 = vmatprep.subr.mxu0 0.0
        %2886 = vmatpush1.msra.mxu0 0.0
        %2887 = vmatprep.subr.mxu0 0.0
        %2888 = vmatpush1.msra.mxu0 0.0
        %2889 = vmatprep.subr.mxu0 0.0
        %2890 = vmatpush1.msra.mxu0 0.0
        %2891 = vmatprep.subr.mxu0 0.0
        %2892 = vmatpush1.msra.mxu0 0.0
        %2893 = vmatprep.subr.mxu0 0.0
        %2894 = vmatpush1.msra.mxu0 0.0
        %2895 = vmatprep.subr.mxu0 0.0
        %2896 = vmatpush1.msra.mxu0 0.0
        %2897 = vmatprep.subr.mxu0 0.0
        %2898 = vmatpush1.msra.mxu0 0.0
        %2899 = vmatprep.mubr.f32.mxu0 0.0
        %2900 = vmatmul.mubr.f32.gmra.mrb[0].mxu0 %v2812
        %v2901 = vpop.f32.mrb[0].mxu0
        %v2902 = vadd.f32 %v2773, %v2901
        %v2903 = vpop.f32.mrb[0].mxu0
        %2904 = vmatprep.mubr.f32.mxu0 0.0
        %2905 = vmatmul.mubr.f32.gmra.mrb[0].mxu0 %v2815
        %v2906 = vpop.f32.mrb[0].mxu0
        %v2907 = vadd.f32 %v2778, %v2906
        %v2908 = vpop.f32.mrb[0].mxu0
        %2909 = vmatprep.mubr.f32.mxu0 0.0
        %2910 = vmatmul.mubr.f32.gmra.mrb[0].mxu0 %v2818
        %v2911 = vpop.f32.mrb[0].mxu0
        %v2912 = vadd.f32 %v2783, %v2911
        %v2913 = vpop.f32.mrb[0].mxu0
        %2914 = vmatprep.mubr.f32.mxu0 0.0
        %2915 = vmatmul.mubr.f32.gmra.mrb[0].mxu0 %v2821
        %v2916 = vpop.f32.mrb[0].mxu0
        %v2917 = vadd.f32 %v2788, %v2916
        %v2918 = vpop.f32.mrb[0].mxu0
        %2919 = vmatprep.mubr.f32.mxu0 0.0
        %2920 = vmatmul.mubr.f32.gmra.mrb[0].mxu0 %v2824
        %v2921 = vpop.f32.mrb[0].mxu0
        %v2922 = vadd.f32 %v2793, %v2921
        %v2923 = vpop.f32.mrb[0].mxu0
        %2924 = vmatprep.mubr.f32.mxu0 0.0
        %2925 = vmatmul.mubr.f32.gmra.mrb[0].mxu0 %v2827
        %v2926 = vpop.f32.mrb[0].mxu0
        %v2927 = vadd.f32 %v2798, %v2926
        %v2928 = vpop.f32.mrb[0].mxu0
        %2929 = vmatprep.mubr.f32.mxu0 0.0
        %2930 = vmatmul.mubr.f32.gmra.mrb[0].mxu0 %v2830
        %v2931 = vpop.f32.mrb[0].mxu0
        %v2932 = vadd.f32 %v2803, %v2931
        %v2933 = vpop.f32.mrb[0].mxu0
        %2934 = vmatprep.mubr.f32.mxu0 0.0
        %2935 = vmatmul.mubr.f32.gmra.mrb[0].mxu0 %v2833
        %v2936 = vpop.f32.mrb[0].mxu0
        %v2937 = vadd.f32 %v2808, %v2936
        %v2938 = vpop.f32.mrb[0].mxu0
        %2939 = vdwg.mxu0
        %2940 = vrot.lane.b32.xlu0 %v838, 112
        %v2941 = vpop.permute.xlu0 %2940
        %2942 = vrot.lane.b32.xlu0 %v839, 112
        %v2943 = vpop.permute.xlu0 %2942
        %2944 = vrot.lane.b32.xlu0 %v941, 112
        %v2945 = vpop.permute.xlu0 %2944
        %2946 = vrot.lane.b32.xlu0 %v946, 112
        %v2947 = vpop.permute.xlu0 %2946
        %v2948 = vsel %vm1112, %v2941, 0
        %v2950 = vsel %vm1112, %v2943, 0
        %v2952 = vsel %vm1112, %v2945, 0
        %v2954 = vsel %vm1112, %v2947, 0
        %2956 = vmatprep.subr.mxu0 0.0
        %2957 = vmatpush1.xpose.msra.mxu0 %v2952
        %2958 = vmatprep.subr.mxu0 0.0
        %2959 = vmatpush1.xpose.msra.mxu0 %v2954
        %2960 = vmatprep.subr.mxu0 0.0
        %2961 = vmatpush1.xpose.msra.mxu0 0.0
        %2962 = vmatprep.subr.mxu0 0.0
        %2963 = vmatpush1.xpose.msra.mxu0 0.0
        %2964 = vmatprep.subr.mxu0 0.0
        %2965 = vmatpush1.xpose.msra.mxu0 0.0
        %2966 = vmatprep.subr.mxu0 0.0
        %2967 = vmatpush1.xpose.msra.mxu0 0.0
        %2968 = vmatprep.subr.mxu0 0.0
        %2969 = vmatpush1.xpose.msra.mxu0 0.0
        %2970 = vmatprep.subr.mxu0 0.0
        %2971 = vmatpush1.xpose.msra.mxu0 0.0
        %2972 = vmatprep.subr.mxu0 0.0
        %2973 = vmatpush1.xpose.msra.mxu0 0.0
        %2974 = vmatprep.subr.mxu0 0.0
        %2975 = vmatpush1.xpose.msra.mxu0 0.0
        %2976 = vmatprep.subr.mxu0 0.0
        %2977 = vmatpush1.xpose.msra.mxu0 0.0
        %2978 = vmatprep.subr.mxu0 0.0
        %2979 = vmatpush1.xpose.msra.mxu0 0.0
        %2980 = vmatprep.subr.mxu0 0.0
        %2981 = vmatpush1.xpose.msra.mxu0 0.0
        %2982 = vmatprep.subr.mxu0 0.0
        %2983 = vmatpush1.xpose.msra.mxu0 0.0
        %2984 = vmatprep.subr.mxu0 0.0
        %2985 = vmatpush1.xpose.msra.mxu0 0.0
        %2986 = vmatprep.subr.mxu0 0.0
        %2987 = vmatpush1.xpose.msra.mxu0 0.0
        %2988 = vmatprep.subr.mxu0 0.0
        %2989 = vmatpush1.xpose.msra.mxu0 0.0
        %2990 = vmatprep.subr.mxu0 0.0
        %2991 = vmatpush1.xpose.msra.mxu0 0.0
        %2992 = vmatprep.subr.mxu0 0.0
        %2993 = vmatpush1.xpose.msra.mxu0 0.0
        %2994 = vmatprep.subr.mxu0 0.0
        %2995 = vmatpush1.xpose.msra.mxu0 0.0
        %2996 = vmatprep.subr.mxu0 0.0
        %2997 = vmatpush1.xpose.msra.mxu0 0.0
        %2998 = vmatprep.subr.mxu0 0.0
        %2999 = vmatpush1.xpose.msra.mxu0 0.0
        %3000 = vmatprep.subr.mxu0 0.0
        %3001 = vmatpush1.xpose.msra.mxu0 0.0
        %3002 = vmatprep.subr.mxu0 0.0
        %3003 = vmatpush1.xpose.msra.mxu0 0.0
        %3004 = vmatprep.subr.mxu0 0.0
        %3005 = vmatpush1.xpose.msra.mxu0 0.0
        %3006 = vmatprep.subr.mxu0 0.0
        %3007 = vmatpush1.xpose.msra.mxu0 0.0
        %3008 = vmatprep.subr.mxu0 0.0
        %3009 = vmatpush1.xpose.msra.mxu0 0.0
        %3010 = vmatprep.subr.mxu0 0.0
        %3011 = vmatpush1.xpose.msra.mxu0 0.0
        %3012 = vmatprep.subr.mxu0 0.0
        %3013 = vmatpush1.xpose.msra.mxu0 0.0
        %3014 = vmatprep.subr.mxu0 0.0
        %3015 = vmatpush1.xpose.msra.mxu0 0.0
        %3016 = vmatprep.subr.mxu0 0.0
        %3017 = vmatpush1.xpose.msra.mxu0 0.0
        %3018 = vmatprep.subr.mxu0 0.0
        %3019 = vmatpush1.xpose.msra.mxu0 0.0
        %3020 = vmatprep.mubr.f32.mxu0 0.0
        %3021 = vmatmul.mubr.f32.gmra.mrb[0].mxu0 %v2948
        %v3022 = vpop.f32.mrb[0].mxu0
        %v3023 = vadd.f32 %v331, %v3022
        %v3024 = vpop.f32.mrb[0].mxu0
        %3025 = vmatprep.mubr.f32.mxu0 0.0
        %3026 = vmatmul.mubr.f32.gmra.mrb[0].mxu0 %v2950
        %v3027 = vpop.f32.mrb[0].mxu0
        %v3028 = vadd.f32 %v332, %v3027
        %v3029 = vpop.f32.mrb[0].mxu0
        %3030 = vdwg.mxu0
        %3031 = vrot.lane.b32.xlu0 %v840, 112
        %v3032 = vpop.permute.xlu0 %3031
        %3033 = vrot.lane.b32.xlu0 %v841, 112
        %v3034 = vpop.permute.xlu0 %3033
        %3035 = vrot.lane.b32.xlu0 %v951, 112
        %v3036 = vpop.permute.xlu0 %3035
        %3037 = vrot.lane.b32.xlu0 %v956, 112
        %v3038 = vpop.permute.xlu0 %3037
        %v3039 = vsel %vm1112, %v3032, 0
        %v3041 = vsel %vm1112, %v3034, 0
        %v3043 = vsel %vm1112, %v3036, 0
        %v3045 = vsel %vm1112, %v3038, 0
        %3047 = vmatprep.subr.mxu0 0.0
        %3048 = vmatpush1.xpose.msra.mxu0 %v3043
        %3049 = vmatprep.subr.mxu0 0.0
        %3050 = vmatpush1.xpose.msra.mxu0 %v3045
        %3051 = vmatprep.subr.mxu0 0.0
        %3052 = vmatpush1.xpose.msra.mxu0 0.0
        %3053 = vmatprep.subr.mxu0 0.0
        %3054 = vmatpush1.xpose.msra.mxu0 0.0
        %3055 = vmatprep.subr.mxu0 0.0
        %3056 = vmatpush1.xpose.msra.mxu0 0.0
        %3057 = vmatprep.subr.mxu0 0.0
        %3058 = vmatpush1.xpose.msra.mxu0 0.0
        %3059 = vmatprep.subr.mxu0 0.0
        %3060 = vmatpush1.xpose.msra.mxu0 0.0
        %3061 = vmatprep.subr.mxu0 0.0
        %3062 = vmatpush1.xpose.msra.mxu0 0.0
        %3063 = vmatprep.subr.mxu0 0.0
        %3064 = vmatpush1.xpose.msra.mxu0 0.0
        %3065 = vmatprep.subr.mxu0 0.0
        %3066 = vmatpush1.xpose.msra.mxu0 0.0
        %3067 = vmatprep.subr.mxu0 0.0
        %3068 = vmatpush1.xpose.msra.mxu0 0.0
        %3069 = vmatprep.subr.mxu0 0.0
        %3070 = vmatpush1.xpose.msra.mxu0 0.0
        %3071 = vmatprep.subr.mxu0 0.0
        %3072 = vmatpush1.xpose.msra.mxu0 0.0
        %3073 = vmatprep.subr.mxu0 0.0
        %3074 = vmatpush1.xpose.msra.mxu0 0.0
        %3075 = vmatprep.subr.mxu0 0.0
        %3076 = vmatpush1.xpose.msra.mxu0 0.0
        %3077 = vmatprep.subr.mxu0 0.0
        %3078 = vmatpush1.xpose.msra.mxu0 0.0
        %3079 = vmatprep.subr.mxu0 0.0
        %3080 = vmatpush1.xpose.msra.mxu0 0.0
        %3081 = vmatprep.subr.mxu0 0.0
        %3082 = vmatpush1.xpose.msra.mxu0 0.0
        %3083 = vmatprep.subr.mxu0 0.0
        %3084 = vmatpush1.xpose.msra.mxu0 0.0
        %3085 = vmatprep.subr.mxu0 0.0
        %3086 = vmatpush1.xpose.msra.mxu0 0.0
        %3087 = vmatprep.subr.mxu0 0.0
        %3088 = vmatpush1.xpose.msra.mxu0 0.0
        %3089 = vmatprep.subr.mxu0 0.0
        %3090 = vmatpush1.xpose.msra.mxu0 0.0
        %3091 = vmatprep.subr.mxu0 0.0
        %3092 = vmatpush1.xpose.msra.mxu0 0.0
        %3093 = vmatprep.subr.mxu0 0.0
        %3094 = vmatpush1.xpose.msra.mxu0 0.0
        %3095 = vmatprep.subr.mxu0 0.0
        %3096 = vmatpush1.xpose.msra.mxu0 0.0
        %3097 = vmatprep.subr.mxu0 0.0
        %3098 = vmatpush1.xpose.msra.mxu0 0.0
        %3099 = vmatprep.subr.mxu0 0.0
        %3100 = vmatpush1.xpose.msra.mxu0 0.0
        %3101 = vmatprep.subr.mxu0 0.0
        %3102 = vmatpush1.xpose.msra.mxu0 0.0
        %3103 = vmatprep.subr.mxu0 0.0
        %3104 = vmatpush1.xpose.msra.mxu0 0.0
        %3105 = vmatprep.subr.mxu0 0.0
        %3106 = vmatpush1.xpose.msra.mxu0 0.0
        %3107 = vmatprep.subr.mxu0 0.0
        %3108 = vmatpush1.xpose.msra.mxu0 0.0
        %3109 = vmatprep.subr.mxu0 0.0
        %3110 = vmatpush1.xpose.msra.mxu0 0.0
        %3111 = vmatprep.mubr.f32.mxu0 0.0
        %3112 = vmatmul.mubr.f32.gmra.mrb[0].mxu0 %v3039
        %v3113 = vpop.f32.mrb[0].mxu0
        %v3114 = vadd.f32 %v331, %v3113
        %v3115 = vpop.f32.mrb[0].mxu0
        %3116 = vmatprep.mubr.f32.mxu0 0.0
        %3117 = vmatmul.mubr.f32.gmra.mrb[0].mxu0 %v3041
        %v3118 = vpop.f32.mrb[0].mxu0
        %v3119 = vadd.f32 %v332, %v3118
        %v3120 = vpop.f32.mrb[0].mxu0
        %3121 = vdwg.mxu0
        %3122 = vrot.lane.b32.xlu0 %v842, 112
        %v3123 = vpop.permute.xlu0 %3122
        %3124 = vrot.lane.b32.xlu0 %v843, 112
        %v3125 = vpop.permute.xlu0 %3124
        %3126 = vrot.lane.b32.xlu0 %v961, 112
        %v3127 = vpop.permute.xlu0 %3126
        %3128 = vrot.lane.b32.xlu0 %v966, 112
        %v3129 = vpop.permute.xlu0 %3128
        %v3130 = vsel %vm1112, %v3123, 0
        %v3132 = vsel %vm1112, %v3125, 0
        %v3134 = vsel %vm1112, %v3127, 0
        %v3136 = vsel %vm1112, %v3129, 0
        %3138 = vmatprep.subr.mxu0 0.0
        %3139 = vmatpush1.xpose.msra.mxu0 %v3134
        %3140 = vmatprep.subr.mxu0 0.0
        %3141 = vmatpush1.xpose.msra.mxu0 %v3136
        %3142 = vmatprep.subr.mxu0 0.0
        %3143 = vmatpush1.xpose.msra.mxu0 0.0
        %3144 = vmatprep.subr.mxu0 0.0
        %3145 = vmatpush1.xpose.msra.mxu0 0.0
        %3146 = vmatprep.subr.mxu0 0.0
        %3147 = vmatpush1.xpose.msra.mxu0 0.0
        %3148 = vmatprep.subr.mxu0 0.0
        %3149 = vmatpush1.xpose.msra.mxu0 0.0
        %3150 = vmatprep.subr.mxu0 0.0
        %3151 = vmatpush1.xpose.msra.mxu0 0.0
        %3152 = vmatprep.subr.mxu0 0.0
        %3153 = vmatpush1.xpose.msra.mxu0 0.0
        %3154 = vmatprep.subr.mxu0 0.0
        %3155 = vmatpush1.xpose.msra.mxu0 0.0
        %3156 = vmatprep.subr.mxu0 0.0
        %3157 = vmatpush1.xpose.msra.mxu0 0.0
        %3158 = vmatprep.subr.mxu0 0.0
        %3159 = vmatpush1.xpose.msra.mxu0 0.0
        %3160 = vmatprep.subr.mxu0 0.0
        %3161 = vmatpush1.xpose.msra.mxu0 0.0
        %3162 = vmatprep.subr.mxu0 0.0
        %3163 = vmatpush1.xpose.msra.mxu0 0.0
        %3164 = vmatprep.subr.mxu0 0.0
        %3165 = vmatpush1.xpose.msra.mxu0 0.0
        %3166 = vmatprep.subr.mxu0 0.0
        %3167 = vmatpush1.xpose.msra.mxu0 0.0
        %3168 = vmatprep.subr.mxu0 0.0
        %3169 = vmatpush1.xpose.msra.mxu0 0.0
        %3170 = vmatprep.subr.mxu0 0.0
        %3171 = vmatpush1.xpose.msra.mxu0 0.0
        %3172 = vmatprep.subr.mxu0 0.0
        %3173 = vmatpush1.xpose.msra.mxu0 0.0
        %3174 = vmatprep.subr.mxu0 0.0
        %3175 = vmatpush1.xpose.msra.mxu0 0.0
        %3176 = vmatprep.subr.mxu0 0.0
        %3177 = vmatpush1.xpose.msra.mxu0 0.0
        %3178 = vmatprep.subr.mxu0 0.0
        %3179 = vmatpush1.xpose.msra.mxu0 0.0
        %3180 = vmatprep.subr.mxu0 0.0
        %3181 = vmatpush1.xpose.msra.mxu0 0.0
        %3182 = vmatprep.subr.mxu0 0.0
        %3183 = vmatpush1.xpose.msra.mxu0 0.0
        %3184 = vmatprep.subr.mxu0 0.0
        %3185 = vmatpush1.xpose.msra.mxu0 0.0
        %3186 = vmatprep.subr.mxu0 0.0
        %3187 = vmatpush1.xpose.msra.mxu0 0.0
        %3188 = vmatprep.subr.mxu0 0.0
        %3189 = vmatpush1.xpose.msra.mxu0 0.0
        %3190 = vmatprep.subr.mxu0 0.0
        %3191 = vmatpush1.xpose.msra.mxu0 0.0
        %3192 = vmatprep.subr.mxu0 0.0
        %3193 = vmatpush1.xpose.msra.mxu0 0.0
        %3194 = vmatprep.subr.mxu0 0.0
        %3195 = vmatpush1.xpose.msra.mxu0 0.0
        %3196 = vmatprep.subr.mxu0 0.0
        %3197 = vmatpush1.xpose.msra.mxu0 0.0
        %3198 = vmatprep.subr.mxu0 0.0
        %3199 = vmatpush1.xpose.msra.mxu0 0.0
        %3200 = vmatprep.subr.mxu0 0.0
        %3201 = vmatpush1.xpose.msra.mxu0 0.0
        %3202 = vmatprep.mubr.f32.mxu0 0.0
        %3203 = vmatmul.mubr.f32.gmra.mrb[0].mxu0 %v3130
        %v3204 = vpop.f32.mrb[0].mxu0
        %v3205 = vadd.f32 %v331, %v3204
        %v3206 = vpop.f32.mrb[0].mxu0
        %3207 = vmatprep.mubr.f32.mxu0 0.0
        %3208 = vmatmul.mubr.f32.gmra.mrb[0].mxu0 %v3132
        %v3209 = vpop.f32.mrb[0].mxu0
        %v3210 = vadd.f32 %v332, %v3209
        %v3211 = vpop.f32.mrb[0].mxu0
        %3212 = vdwg.mxu0
        %3213 = vrot.lane.b32.xlu0 %v844, 112
        %v3214 = vpop.permute.xlu0 %3213
        %3215 = vrot.lane.b32.xlu0 %v845, 112
        %v3216 = vpop.permute.xlu0 %3215
        %3217 = vrot.lane.b32.xlu0 %v971, 112
        %v3218 = vpop.permute.xlu0 %3217
        %3219 = vrot.lane.b32.xlu0 %v976, 112
        %v3220 = vpop.permute.xlu0 %3219
        %v3221 = vsel %vm1112, %v3214, 0
        %v3223 = vsel %vm1112, %v3216, 0
        %v3225 = vsel %vm1112, %v3218, 0
        %v3227 = vsel %vm1112, %v3220, 0
        %3229 = vmatprep.subr.mxu0 0.0
        %3230 = vmatpush1.xpose.msra.mxu0 %v3225
        %3231 = vmatprep.subr.mxu0 0.0
        %3232 = vmatpush1.xpose.msra.mxu0 %v3227
        %3233 = vmatprep.subr.mxu0 0.0
        %3234 = vmatpush1.xpose.msra.mxu0 0.0
        %3235 = vmatprep.subr.mxu0 0.0
        %3236 = vmatpush1.xpose.msra.mxu0 0.0
        %3237 = vmatprep.subr.mxu0 0.0
        %3238 = vmatpush1.xpose.msra.mxu0 0.0
        %3239 = vmatprep.subr.mxu0 0.0
        %3240 = vmatpush1.xpose.msra.mxu0 0.0
        %3241 = vmatprep.subr.mxu0 0.0
        %3242 = vmatpush1.xpose.msra.mxu0 0.0
        %3243 = vmatprep.subr.mxu0 0.0
        %3244 = vmatpush1.xpose.msra.mxu0 0.0
        %3245 = vmatprep.subr.mxu0 0.0
        %3246 = vmatpush1.xpose.msra.mxu0 0.0
        %3247 = vmatprep.subr.mxu0 0.0
        %3248 = vmatpush1.xpose.msra.mxu0 0.0
        %3249 = vmatprep.subr.mxu0 0.0
        %3250 = vmatpush1.xpose.msra.mxu0 0.0
        %3251 = vmatprep.subr.mxu0 0.0
        %3252 = vmatpush1.xpose.msra.mxu0 0.0
        %3253 = vmatprep.subr.mxu0 0.0
        %3254 = vmatpush1.xpose.msra.mxu0 0.0
        %3255 = vmatprep.subr.mxu0 0.0
        %3256 = vmatpush1.xpose.msra.mxu0 0.0
        %3257 = vmatprep.subr.mxu0 0.0
        %3258 = vmatpush1.xpose.msra.mxu0 0.0
        %3259 = vmatprep.subr.mxu0 0.0
        %3260 = vmatpush1.xpose.msra.mxu0 0.0
        %3261 = vmatprep.subr.mxu0 0.0
        %3262 = vmatpush1.xpose.msra.mxu0 0.0
        %3263 = vmatprep.subr.mxu0 0.0
        %3264 = vmatpush1.xpose.msra.mxu0 0.0
        %3265 = vmatprep.subr.mxu0 0.0
        %3266 = vmatpush1.xpose.msra.mxu0 0.0
        %3267 = vmatprep.subr.mxu0 0.0
        %3268 = vmatpush1.xpose.msra.mxu0 0.0
        %3269 = vmatprep.subr.mxu0 0.0
        %3270 = vmatpush1.xpose.msra.mxu0 0.0
        %3271 = vmatprep.subr.mxu0 0.0
        %3272 = vmatpush1.xpose.msra.mxu0 0.0
        %3273 = vmatprep.subr.mxu0 0.0
        %3274 = vmatpush1.xpose.msra.mxu0 0.0
        %3275 = vmatprep.subr.mxu0 0.0
        %3276 = vmatpush1.xpose.msra.mxu0 0.0
        %3277 = vmatprep.subr.mxu0 0.0
        %3278 = vmatpush1.xpose.msra.mxu0 0.0
        %3279 = vmatprep.subr.mxu0 0.0
        %3280 = vmatpush1.xpose.msra.mxu0 0.0
        %3281 = vmatprep.subr.mxu0 0.0
        %3282 = vmatpush1.xpose.msra.mxu0 0.0
        %3283 = vmatprep.subr.mxu0 0.0
        %3284 = vmatpush1.xpose.msra.mxu0 0.0
        %3285 = vmatprep.subr.mxu0 0.0
        %3286 = vmatpush1.xpose.msra.mxu0 0.0
        %3287 = vmatprep.subr.mxu0 0.0
        %3288 = vmatpush1.xpose.msra.mxu0 0.0
        %3289 = vmatprep.subr.mxu0 0.0
        %3290 = vmatpush1.xpose.msra.mxu0 0.0
        %3291 = vmatprep.subr.mxu0 0.0
        %3292 = vmatpush1.xpose.msra.mxu0 0.0
        %3293 = vmatprep.mubr.f32.mxu0 0.0
        %3294 = vmatmul.mubr.f32.gmra.mrb[0].mxu0 %v3221
        %v3295 = vpop.f32.mrb[0].mxu0
        %v3296 = vadd.f32 %v331, %v3295
        %v3297 = vpop.f32.mrb[0].mxu0
        %3298 = vmatprep.mubr.f32.mxu0 0.0
        %3299 = vmatmul.mubr.f32.gmra.mrb[0].mxu0 %v3223
        %v3300 = vpop.f32.mrb[0].mxu0
        %v3301 = vadd.f32 %v332, %v3300
        %v3302 = vpop.f32.mrb[0].mxu0
        %3303 = vdwg.mxu0
        %v3304 = vsel %vm1461, %v3023, -inf
        %3305 = vmax.xlane.f32.xlu0 %v3304
        %v3306 = vpop.xlane.xlu0 %3305
        %v3307 = vsel %vm1461, %v3028, -inf
        %3308 = vmax.xlane.f32.xlu0 %v3307
        %v3309 = vpop.xlane.xlu0 %3308
        %v3310 = vsel %vm1461, %v3114, -inf
        %3311 = vmax.xlane.f32.xlu0 %v3310
        %v3312 = vpop.xlane.xlu0 %3311
        %v3313 = vsel %vm1461, %v3119, -inf
        %3314 = vmax.xlane.f32.xlu0 %v3313
        %v3315 = vpop.xlane.xlu0 %3314
        %v3316 = vsel %vm1461, %v3205, -inf
        %3317 = vmax.xlane.f32.xlu0 %v3316
        %v3318 = vpop.xlane.xlu0 %3317
        %v3319 = vsel %vm1461, %v3210, -inf
        %3320 = vmax.xlane.f32.xlu0 %v3319
        %v3321 = vpop.xlane.xlu0 %3320
        %v3322 = vsel %vm1461, %v3296, -inf
        %3323 = vmax.xlane.f32.xlu0 %v3322
        %v3324 = vpop.xlane.xlu0 %3323
        %v3325 = vsel %vm1461, %v3301, -inf
        %3326 = vmax.xlane.f32.xlu0 %v3325
        %v3327 = vpop.xlane.xlu0 %3326
        %v3328 = vsub.f32 %v3023, %v3306
        %v3329 = vsub.f32 %v3028, %v3309
        %v3330 = vsub.f32 %v3114, %v3312
        %v3331 = vsub.f32 %v3119, %v3315
        %v3332 = vsub.f32 %v3205, %v3318
        %v3333 = vsub.f32 %v3210, %v3321
        %v3334 = vsub.f32 %v3296, %v3324
        %v3335 = vsub.f32 %v3301, %v3327
        %v3336 = vmul.f32 %v3328, 1.442695
        %v3337 = vpow.pop %v3336
        %v3338 = vmul.f32 %v3329, 1.442695
        %v3339 = vpow.pop %v3338
        %v3340 = vmul.f32 %v3330, 1.442695
        %v3341 = vpow.pop %v3340
        %v3342 = vmul.f32 %v3331, 1.442695
        %v3343 = vpow.pop %v3342
        %v3344 = vmul.f32 %v3332, 1.442695
        %v3345 = vpow.pop %v3344
        %v3346 = vmul.f32 %v3333, 1.442695
        %v3347 = vpow.pop %v3346
        %v3348 = vmul.f32 %v3334, 1.442695
        %v3349 = vpow.pop %v3348
        %v3350 = vmul.f32 %v3335, 1.442695
        %v3351 = vpow.pop %v3350
        %v3352 = vsel %vm1461, %v3337, 0.0
        %3353 = vadd.xlane.f32.xlu0 %v3352
        %v3354 = vpop.xlane.xlu0 %3353
        %v3355 = vsel %vm1461, %v3339, 0.0
        %3356 = vadd.xlane.f32.xlu0 %v3355
        %v3357 = vpop.xlane.xlu0 %3356
        %v3358 = vsel %vm1461, %v3341, 0.0
        %3359 = vadd.xlane.f32.xlu0 %v3358
        %v3360 = vpop.xlane.xlu0 %3359
        %v3361 = vsel %vm1461, %v3343, 0.0
        %3362 = vadd.xlane.f32.xlu0 %v3361
        %v3363 = vpop.xlane.xlu0 %3362
        %v3364 = vsel %vm1461, %v3345, 0.0
        %3365 = vadd.xlane.f32.xlu0 %v3364
        %v3366 = vpop.xlane.xlu0 %3365
        %v3367 = vsel %vm1461, %v3347, 0.0
        %3368 = vadd.xlane.f32.xlu0 %v3367
        %v3369 = vpop.xlane.xlu0 %3368
        %v3370 = vsel %vm1461, %v3349, 0.0
        %3371 = vadd.xlane.f32.xlu0 %v3370
        %v3372 = vpop.xlane.xlu0 %3371
        %v3373 = vsel %vm1461, %v3351, 0.0
        %3374 = vadd.xlane.f32.xlu0 %v3373
        %v3375 = vpop.xlane.xlu0 %3374
        %v3376 = vrcp.pop %v3354
        %v3377 = vrcp.pop %v3357
        %v3378 = vrcp.pop %v3360
        %v3379 = vrcp.pop %v3363
        %v3380 = vrcp.pop %v3366
        %v3381 = vrcp.pop %v3369
        %v3382 = vrcp.pop %v3372
        %v3383 = vrcp.pop %v3375
        %v3384 = vmul.f32 %v3337, %v3376
        %v3385 = vmul.f32 %v3339, %v3377
        %v3386 = vmul.f32 %v3341, %v3378
        %v3387 = vmul.f32 %v3343, %v3379
        %v3388 = vmul.f32 %v3345, %v3380
        %v3389 = vmul.f32 %v3347, %v3381
        %v3390 = vmul.f32 %v3349, %v3382
        %v3391 = vmul.f32 %v3351, %v3383
        %3392 = vrot.lane.b32.xlu0 %v1074, 112
        %v3393 = vpop.permute.xlu0 %3392
        %3394 = vrot.lane.b32.xlu0 %v1079, 112
        %v3395 = vpop.permute.xlu0 %3394
        %v3399 = vsel %vm1461, %v3384, 0
        %v3402 = vsel %vm1461, %v3385, 0
        %3404 = vmatprep.subr.mxu0 0.0
        %3405 = vmatpush1.msra.mxu0 %v3393
        %3406 = vmatprep.subr.mxu0 0.0
        %3407 = vmatpush1.msra.mxu0 %v3395
        %3408 = vmatprep.subr.mxu0 0.0
        %3409 = vmatpush1.msra.mxu0 0.0
        %3410 = vmatprep.subr.mxu0 0.0
        %3411 = vmatpush1.msra.mxu0 0.0
        %3412 = vmatprep.subr.mxu0 0.0
        %3413 = vmatpush1.msra.mxu0 0.0
        %3414 = vmatprep.subr.mxu0 0.0
        %3415 = vmatpush1.msra.mxu0 0.0
        %3416 = vmatprep.subr.mxu0 0.0
        %3417 = vmatpush1.msra.mxu0 0.0
        %3418 = vmatprep.subr.mxu0 0.0
        %3419 = vmatpush1.msra.mxu0 0.0
        %3420 = vmatprep.subr.mxu0 0.0
        %3421 = vmatpush1.msra.mxu0 0.0
        %3422 = vmatprep.subr.mxu0 0.0
        %3423 = vmatpush1.msra.mxu0 0.0
        %3424 = vmatprep.subr.mxu0 0.0
        %3425 = vmatpush1.msra.mxu0 0.0
        %3426 = vmatprep.subr.mxu0 0.0
        %3427 = vmatpush1.msra.mxu0 0.0
        %3428 = vmatprep.subr.mxu0 0.0
        %3429 = vmatpush1.msra.mxu0 0.0
        %3430 = vmatprep.subr.mxu0 0.0
        %3431 = vmatpush1.msra.mxu0 0.0
        %3432 = vmatprep.subr.mxu0 0.0
        %3433 = vmatpush1.msra.mxu0 0.0
        %3434 = vmatprep.subr.mxu0 0.0
        %3435 = vmatpush1.msra.mxu0 0.0
        %3436 = vmatprep.subr.mxu0 0.0
        %3437 = vmatpush1.msra.mxu0 0.0
        %3438 = vmatprep.subr.mxu0 0.0
        %3439 = vmatpush1.msra.mxu0 0.0
        %3440 = vmatprep.subr.mxu0 0.0
        %3441 = vmatpush1.msra.mxu0 0.0
        %3442 = vmatprep.subr.mxu0 0.0
        %3443 = vmatpush1.msra.mxu0 0.0
        %3444 = vmatprep.subr.mxu0 0.0
        %3445 = vmatpush1.msra.mxu0 0.0
        %3446 = vmatprep.subr.mxu0 0.0
        %3447 = vmatpush1.msra.mxu0 0.0
        %3448 = vmatprep.subr.mxu0 0.0
        %3449 = vmatpush1.msra.mxu0 0.0
        %3450 = vmatprep.subr.mxu0 0.0
        %3451 = vmatpush1.msra.mxu0 0.0
        %3452 = vmatprep.subr.mxu0 0.0
        %3453 = vmatpush1.msra.mxu0 0.0
        %3454 = vmatprep.subr.mxu0 0.0
        %3455 = vmatpush1.msra.mxu0 0.0
        %3456 = vmatprep.subr.mxu0 0.0
        %3457 = vmatpush1.msra.mxu0 0.0
        %3458 = vmatprep.subr.mxu0 0.0
        %3459 = vmatpush1.msra.mxu0 0.0
        %3460 = vmatprep.subr.mxu0 0.0
        %3461 = vmatpush1.msra.mxu0 0.0
        %3462 = vmatprep.subr.mxu0 0.0
        %3463 = vmatpush1.msra.mxu0 0.0
        %3464 = vmatprep.subr.mxu0 0.0
        %3465 = vmatpush1.msra.mxu0 0.0
        %3466 = vmatprep.subr.mxu0 0.0
        %3467 = vmatpush1.msra.mxu0 0.0
        %3468 = vmatprep.mubr.f32.mxu0 0.0
        %3469 = vmatmul.mubr.f32.gmra.mrb[0].mxu0 %v3399
        %v3470 = vpop.f32.mrb[0].mxu0
        %v3471 = vadd.f32 0.0, %v3470
        %v3472 = vpop.f32.mrb[0].mxu0
        %3473 = vmatprep.mubr.f32.mxu0 0.0
        %3474 = vmatmul.mubr.f32.gmra.mrb[0].mxu0 %v3402
        %v3475 = vpop.f32.mrb[0].mxu0
        %v3476 = vadd.f32 0.0, %v3475
        %v3477 = vpop.f32.mrb[0].mxu0
        %3478 = vdwg.mxu0
        %3479 = vrot.lane.b32.xlu0 %v1084, 112
        %v3480 = vpop.permute.xlu0 %3479
        %3481 = vrot.lane.b32.xlu0 %v1089, 112
        %v3482 = vpop.permute.xlu0 %3481
        %v3486 = vsel %vm1461, %v3386, 0
        %v3489 = vsel %vm1461, %v3387, 0
        %3491 = vmatprep.subr.mxu0 0.0
        %3492 = vmatpush1.msra.mxu0 %v3480
        %3493 = vmatprep.subr.mxu0 0.0
        %3494 = vmatpush1.msra.mxu0 %v3482
        %3495 = vmatprep.subr.mxu0 0.0
        %3496 = vmatpush1.msra.mxu0 0.0
        %3497 = vmatprep.subr.mxu0 0.0
        %3498 = vmatpush1.msra.mxu0 0.0
        %3499 = vmatprep.subr.mxu0 0.0
        %3500 = vmatpush1.msra.mxu0 0.0
        %3501 = vmatprep.subr.mxu0 0.0
        %3502 = vmatpush1.msra.mxu0 0.0
        %3503 = vmatprep.subr.mxu0 0.0
        %3504 = vmatpush1.msra.mxu0 0.0
        %3505 = vmatprep.subr.mxu0 0.0
        %3506 = vmatpush1.msra.mxu0 0.0
        %3507 = vmatprep.subr.mxu0 0.0
        %3508 = vmatpush1.msra.mxu0 0.0
        %3509 = vmatprep.subr.mxu0 0.0
        %3510 = vmatpush1.msra.mxu0 0.0
        %3511 = vmatprep.subr.mxu0 0.0
        %3512 = vmatpush1.msra.mxu0 0.0
        %3513 = vmatprep.subr.mxu0 0.0
        %3514 = vmatpush1.msra.mxu0 0.0
        %3515 = vmatprep.subr.mxu0 0.0
        %3516 = vmatpush1.msra.mxu0 0.0
        %3517 = vmatprep.subr.mxu0 0.0
        %3518 = vmatpush1.msra.mxu0 0.0
        %3519 = vmatprep.subr.mxu0 0.0
        %3520 = vmatpush1.msra.mxu0 0.0
        %3521 = vmatprep.subr.mxu0 0.0
        %3522 = vmatpush1.msra.mxu0 0.0
        %3523 = vmatprep.subr.mxu0 0.0
        %3524 = vmatpush1.msra.mxu0 0.0
        %3525 = vmatprep.subr.mxu0 0.0
        %3526 = vmatpush1.msra.mxu0 0.0
        %3527 = vmatprep.subr.mxu0 0.0
        %3528 = vmatpush1.msra.mxu0 0.0
        %3529 = vmatprep.subr.mxu0 0.0
        %3530 = vmatpush1.msra.mxu0 0.0
        %3531 = vmatprep.subr.mxu0 0.0
        %3532 = vmatpush1.msra.mxu0 0.0
        %3533 = vmatprep.subr.mxu0 0.0
        %3534 = vmatpush1.msra.mxu0 0.0
        %3535 = vmatprep.subr.mxu0 0.0
        %3536 = vmatpush1.msra.mxu0 0.0
        %3537 = vmatprep.subr.mxu0 0.0
        %3538 = vmatpush1.msra.mxu0 0.0
        %3539 = vmatprep.subr.mxu0 0.0
        %3540 = vmatpush1.msra.mxu0 0.0
        %3541 = vmatprep.subr.mxu0 0.0
        %3542 = vmatpush1.msra.mxu0 0.0
        %3543 = vmatprep.subr.mxu0 0.0
        %3544 = vmatpush1.msra.mxu0 0.0
        %3545 = vmatprep.subr.mxu0 0.0
        %3546 = vmatpush1.msra.mxu0 0.0
        %3547 = vmatprep.subr.mxu0 0.0
        %3548 = vmatpush1.msra.mxu0 0.0
        %3549 = vmatprep.subr.mxu0 0.0
        %3550 = vmatpush1.msra.mxu0 0.0
        %3551 = vmatprep.subr.mxu0 0.0
        %3552 = vmatpush1.msra.mxu0 0.0
        %3553 = vmatprep.subr.mxu0 0.0
        %3554 = vmatpush1.msra.mxu0 0.0
        %3555 = vmatprep.mubr.f32.mxu0 0.0
        %3556 = vmatmul.mubr.f32.gmra.mrb[0].mxu0 %v3486
        %v3557 = vpop.f32.mrb[0].mxu0
        %v3558 = vadd.f32 0.0, %v3557
        %v3559 = vpop.f32.mrb[0].mxu0
        %3560 = vmatprep.mubr.f32.mxu0 0.0
        %3561 = vmatmul.mubr.f32.gmra.mrb[0].mxu0 %v3489
        %v3562 = vpop.f32.mrb[0].mxu0
        %v3563 = vadd.f32 0.0, %v3562
        %v3564 = vpop.f32.mrb[0].mxu0
        %3565 = vdwg.mxu0
        %3566 = vrot.lane.b32.xlu0 %v1094, 112
        %v3567 = vpop.permute.xlu0 %3566
        %3568 = vrot.lane.b32.xlu0 %v1099, 112
        %v3569 = vpop.permute.xlu0 %3568
        %v3573 = vsel %vm1461, %v3388, 0
        %v3576 = vsel %vm1461, %v3389, 0
        %3578 = vmatprep.subr.mxu0 0.0
        %3579 = vmatpush1.msra.mxu0 %v3567
        %3580 = vmatprep.subr.mxu0 0.0
        %3581 = vmatpush1.msra.mxu0 %v3569
        %3582 = vmatprep.subr.mxu0 0.0
        %3583 = vmatpush1.msra.mxu0 0.0
        %3584 = vmatprep.subr.mxu0 0.0
        %3585 = vmatpush1.msra.mxu0 0.0
        %3586 = vmatprep.subr.mxu0 0.0
        %3587 = vmatpush1.msra.mxu0 0.0
        %3588 = vmatprep.subr.mxu0 0.0
        %3589 = vmatpush1.msra.mxu0 0.0
        %3590 = vmatprep.subr.mxu0 0.0
        %3591 = vmatpush1.msra.mxu0 0.0
        %3592 = vmatprep.subr.mxu0 0.0
        %3593 = vmatpush1.msra.mxu0 0.0
        %3594 = vmatprep.subr.mxu0 0.0
        %3595 = vmatpush1.msra.mxu0 0.0
        %3596 = vmatprep.subr.mxu0 0.0
        %3597 = vmatpush1.msra.mxu0 0.0
        %3598 = vmatprep.subr.mxu0 0.0
        %3599 = vmatpush1.msra.mxu0 0.0
        %3600 = vmatprep.subr.mxu0 0.0
        %3601 = vmatpush1.msra.mxu0 0.0
        %3602 = vmatprep.subr.mxu0 0.0
        %3603 = vmatpush1.msra.mxu0 0.0
        %3604 = vmatprep.subr.mxu0 0.0
        %3605 = vmatpush1.msra.mxu0 0.0
        %3606 = vmatprep.subr.mxu0 0.0
        %3607 = vmatpush1.msra.mxu0 0.0
        %3608 = vmatprep.subr.mxu0 0.0
        %3609 = vmatpush1.msra.mxu0 0.0
        %3610 = vmatprep.subr.mxu0 0.0
        %3611 = vmatpush1.msra.mxu0 0.0
        %3612 = vmatprep.subr.mxu0 0.0
        %3613 = vmatpush1.msra.mxu0 0.0
        %3614 = vmatprep.subr.mxu0 0.0
        %3615 = vmatpush1.msra.mxu0 0.0
        %3616 = vmatprep.subr.mxu0 0.0
        %3617 = vmatpush1.msra.mxu0 0.0
        %3618 = vmatprep.subr.mxu0 0.0
        %3619 = vmatpush1.msra.mxu0 0.0
        %3620 = vmatprep.subr.mxu0 0.0
        %3621 = vmatpush1.msra.mxu0 0.0
        %3622 = vmatprep.subr.mxu0 0.0
        %3623 = vmatpush1.msra.mxu0 0.0
        %3624 = vmatprep.subr.mxu0 0.0
        %3625 = vmatpush1.msra.mxu0 0.0
        %3626 = vmatprep.subr.mxu0 0.0
        %3627 = vmatpush1.msra.mxu0 0.0
        %3628 = vmatprep.subr.mxu0 0.0
        %3629 = vmatpush1.msra.mxu0 0.0
        %3630 = vmatprep.subr.mxu0 0.0
        %3631 = vmatpush1.msra.mxu0 0.0
        %3632 = vmatprep.subr.mxu0 0.0
        %3633 = vmatpush1.msra.mxu0 0.0
        %3634 = vmatprep.subr.mxu0 0.0
        %3635 = vmatpush1.msra.mxu0 0.0
        %3636 = vmatprep.subr.mxu0 0.0
        %3637 = vmatpush1.msra.mxu0 0.0
        %3638 = vmatprep.subr.mxu0 0.0
        %3639 = vmatpush1.msra.mxu0 0.0
        %3640 = vmatprep.subr.mxu0 0.0
        %3641 = vmatpush1.msra.mxu0 0.0
        %3642 = vmatprep.mubr.f32.mxu0 0.0
        %3643 = vmatmul.mubr.f32.gmra.mrb[0].mxu0 %v3573
        %v3644 = vpop.f32.mrb[0].mxu0
        %v3645 = vadd.f32 0.0, %v3644
        %v3646 = vpop.f32.mrb[0].mxu0
        %3647 = vmatprep.mubr.f32.mxu0 0.0
        %3648 = vmatmul.mubr.f32.gmra.mrb[0].mxu0 %v3576
        %v3649 = vpop.f32.mrb[0].mxu0
        %v3650 = vadd.f32 0.0, %v3649
        %v3651 = vpop.f32.mrb[0].mxu0
        %3652 = vdwg.mxu0
        %3653 = vrot.lane.b32.xlu0 %v1104, 112
        %v3654 = vpop.permute.xlu0 %3653
        %3655 = vrot.lane.b32.xlu0 %v1109, 112
        %v3656 = vpop.permute.xlu0 %3655
        %v3660 = vsel %vm1461, %v3390, 0
        %v3663 = vsel %vm1461, %v3391, 0
        %3665 = vmatprep.subr.mxu0 0.0
        %3666 = vmatpush1.msra.mxu0 %v3654
        %3667 = vmatprep.subr.mxu0 0.0
        %3668 = vmatpush1.msra.mxu0 %v3656
        %3669 = vmatprep.subr.mxu0 0.0
        %3670 = vmatpush1.msra.mxu0 0.0
        %3671 = vmatprep.subr.mxu0 0.0
        %3672 = vmatpush1.msra.mxu0 0.0
        %3673 = vmatprep.subr.mxu0 0.0
        %3674 = vmatpush1.msra.mxu0 0.0
        %3675 = vmatprep.subr.mxu0 0.0
        %3676 = vmatpush1.msra.mxu0 0.0
        %3677 = vmatprep.subr.mxu0 0.0
        %3678 = vmatpush1.msra.mxu0 0.0
        %3679 = vmatprep.subr.mxu0 0.0
        %3680 = vmatpush1.msra.mxu0 0.0
        %3681 = vmatprep.subr.mxu0 0.0
        %3682 = vmatpush1.msra.mxu0 0.0
        %3683 = vmatprep.subr.mxu0 0.0
        %3684 = vmatpush1.msra.mxu0 0.0
        %3685 = vmatprep.subr.mxu0 0.0
        %3686 = vmatpush1.msra.mxu0 0.0
        %3687 = vmatprep.subr.mxu0 0.0
        %3688 = vmatpush1.msra.mxu0 0.0
        %3689 = vmatprep.subr.mxu0 0.0
        %3690 = vmatpush1.msra.mxu0 0.0
        %3691 = vmatprep.subr.mxu0 0.0
        %3692 = vmatpush1.msra.mxu0 0.0
        %3693 = vmatprep.subr.mxu0 0.0
        %3694 = vmatpush1.msra.mxu0 0.0
        %3695 = vmatprep.subr.mxu0 0.0
        %3696 = vmatpush1.msra.mxu0 0.0
        %3697 = vmatprep.subr.mxu0 0.0
        %3698 = vmatpush1.msra.mxu0 0.0
        %3699 = vmatprep.subr.mxu0 0.0
        %3700 = vmatpush1.msra.mxu0 0.0
        %3701 = vmatprep.subr.mxu0 0.0
        %3702 = vmatpush1.msra.mxu0 0.0
        %3703 = vmatprep.subr.mxu0 0.0
        %3704 = vmatpush1.msra.mxu0 0.0
        %3705 = vmatprep.subr.mxu0 0.0
        %3706 = vmatpush1.msra.mxu0 0.0
        %3707 = vmatprep.subr.mxu0 0.0
        %3708 = vmatpush1.msra.mxu0 0.0
        %3709 = vmatprep.subr.mxu0 0.0
        %3710 = vmatpush1.msra.mxu0 0.0
        %3711 = vmatprep.subr.mxu0 0.0
        %3712 = vmatpush1.msra.mxu0 0.0
        %3713 = vmatprep.subr.mxu0 0.0
        %3714 = vmatpush1.msra.mxu0 0.0
        %3715 = vmatprep.subr.mxu0 0.0
        %3716 = vmatpush1.msra.mxu0 0.0
        %3717 = vmatprep.subr.mxu0 0.0
        %3718 = vmatpush1.msra.mxu0 0.0
        %3719 = vmatprep.subr.mxu0 0.0
        %3720 = vmatpush1.msra.mxu0 0.0
        %3721 = vmatprep.subr.mxu0 0.0
        %3722 = vmatpush1.msra.mxu0 0.0
        %3723 = vmatprep.subr.mxu0 0.0
        %3724 = vmatpush1.msra.mxu0 0.0
        %3725 = vmatprep.subr.mxu0 0.0
        %3726 = vmatpush1.msra.mxu0 0.0
        %3727 = vmatprep.subr.mxu0 0.0
        %3728 = vmatpush1.msra.mxu0 0.0
        %3729 = vmatprep.mubr.f32.mxu0 0.0
        %3730 = vmatmul.mubr.f32.gmra.mrb[0].mxu0 %v3660
        %v3731 = vpop.f32.mrb[0].mxu0
        %v3732 = vadd.f32 0.0, %v3731
        %v3733 = vpop.f32.mrb[0].mxu0
        %3734 = vmatprep.mubr.f32.mxu0 0.0
        %3735 = vmatmul.mubr.f32.gmra.mrb[0].mxu0 %v3663
        %v3736 = vpop.f32.mrb[0].mxu0
        %v3737 = vadd.f32 0.0, %v3736
        %v3738 = vpop.f32.mrb[0].mxu0
        %3739 = vdwg.mxu0
        %v3741 = vsel %vm1112, %v3471, 0
        %v3744 = vsel %vm1112, %v3476, 0
        %v3747 = vsel %vm1112, %v3558, 0
        %v3750 = vsel %vm1112, %v3563, 0
        %v3753 = vsel %vm1112, %v3645, 0
        %v3756 = vsel %vm1112, %v3650, 0
        %v3759 = vsel %vm1112, %v3732, 0
        %v3762 = vsel %vm1112, %v3737, 0
        %3764 = vmatprep.subr.mxu0 0.0
        %3765 = vmatpush1.msra.mxu0 %v325
        %3766 = vmatprep.subr.mxu0 0.0
        %3767 = vmatpush1.msra.mxu0 0.0
        %3768 = vmatprep.subr.mxu0 0.0
        %3769 = vmatpush1.msra.mxu0 0.0
        %3770 = vmatprep.subr.mxu0 0.0
        %3771 = vmatpush1.msra.mxu0 0.0
        %3772 = vmatprep.subr.mxu0 0.0
        %3773 = vmatpush1.msra.mxu0 0.0
        %3774 = vmatprep.subr.mxu0 0.0
        %3775 = vmatpush1.msra.mxu0 0.0
        %3776 = vmatprep.subr.mxu0 0.0
        %3777 = vmatpush1.msra.mxu0 0.0
        %3778 = vmatprep.subr.mxu0 0.0
        %3779 = vmatpush1.msra.mxu0 0.0
        %3780 = vmatprep.subr.mxu0 0.0
        %3781 = vmatpush1.msra.mxu0 0.0
        %3782 = vmatprep.subr.mxu0 0.0
        %3783 = vmatpush1.msra.mxu0 0.0
        %3784 = vmatprep.subr.mxu0 0.0
        %3785 = vmatpush1.msra.mxu0 0.0
        %3786 = vmatprep.subr.mxu0 0.0
        %3787 = vmatpush1.msra.mxu0 0.0
        %3788 = vmatprep.subr.mxu0 0.0
        %3789 = vmatpush1.msra.mxu0 0.0
        %3790 = vmatprep.subr.mxu0 0.0
        %3791 = vmatpush1.msra.mxu0 0.0
        %3792 = vmatprep.subr.mxu0 0.0
        %3793 = vmatpush1.msra.mxu0 0.0
        %3794 = vmatprep.subr.mxu0 0.0
        %3795 = vmatpush1.msra.mxu0 0.0
        %3796 = vmatprep.subr.mxu0 0.0
        %3797 = vmatpush1.msra.mxu0 0.0
        %3798 = vmatprep.subr.mxu0 0.0
        %3799 = vmatpush1.msra.mxu0 0.0
        %3800 = vmatprep.subr.mxu0 0.0
        %3801 = vmatpush1.msra.mxu0 0.0
        %3802 = vmatprep.subr.mxu0 0.0
        %3803 = vmatpush1.msra.mxu0 0.0
        %3804 = vmatprep.subr.mxu0 0.0
        %3805 = vmatpush1.msra.mxu0 0.0
        %3806 = vmatprep.subr.mxu0 0.0
        %3807 = vmatpush1.msra.mxu0 0.0
        %3808 = vmatprep.subr.mxu0 0.0
        %3809 = vmatpush1.msra.mxu0 0.0
        %3810 = vmatprep.subr.mxu0 0.0
        %3811 = vmatpush1.msra.mxu0 0.0
        %3812 = vmatprep.subr.mxu0 0.0
        %3813 = vmatpush1.msra.mxu0 0.0
        %3814 = vmatprep.subr.mxu0 0.0
        %3815 = vmatpush1.msra.mxu0 0.0
        %3816 = vmatprep.subr.mxu0 0.0
        %3817 = vmatpush1.msra.mxu0 0.0
        %3818 = vmatprep.subr.mxu0 0.0
        %3819 = vmatpush1.msra.mxu0 0.0
        %3820 = vmatprep.subr.mxu0 0.0
        %3821 = vmatpush1.msra.mxu0 0.0
        %3822 = vmatprep.subr.mxu0 0.0
        %3823 = vmatpush1.msra.mxu0 0.0
        %3824 = vmatprep.subr.mxu0 0.0
        %3825 = vmatpush1.msra.mxu0 0.0
        %3826 = vmatprep.subr.mxu0 0.0
        %3827 = vmatpush1.msra.mxu0 0.0
        %3828 = vmatprep.mubr.f32.mxu0 0.0
        %3829 = vmatmul.mubr.f32.gmra.mrb[0].mxu0 %v3741
        %v3830 = vpop.f32.mrb[0].mxu0
        %v3831 = vadd.f32 0.0, %v3830
        %v3832 = vpop.f32.mrb[0].mxu0
        %3833 = vmatprep.mubr.f32.mxu0 0.0
        %3834 = vmatmul.mubr.f32.gmra.mrb[0].mxu0 %v3744
        %v3835 = vpop.f32.mrb[0].mxu0
        %v3836 = vadd.f32 0.0, %v3835
        %v3837 = vpop.f32.mrb[0].mxu0
        %3838 = vmatprep.mubr.f32.mxu0 0.0
        %3839 = vmatmul.mubr.f32.gmra.mrb[0].mxu0 %v3747
        %v3840 = vpop.f32.mrb[0].mxu0
        %v3841 = vadd.f32 0.0, %v3840
        %v3842 = vpop.f32.mrb[0].mxu0
        %3843 = vmatprep.mubr.f32.mxu0 0.0
        %3844 = vmatmul.mubr.f32.gmra.mrb[0].mxu0 %v3750
        %v3845 = vpop.f32.mrb[0].mxu0
        %v3846 = vadd.f32 0.0, %v3845
        %v3847 = vpop.f32.mrb[0].mxu0
        %3848 = vmatprep.mubr.f32.mxu0 0.0
        %3849 = vmatmul.mubr.f32.gmra.mrb[0].mxu0 %v3753
        %v3850 = vpop.f32.mrb[0].mxu0
        %v3851 = vadd.f32 0.0, %v3850
        %v3852 = vpop.f32.mrb[0].mxu0
        %3853 = vmatprep.mubr.f32.mxu0 0.0
        %3854 = vmatmul.mubr.f32.gmra.mrb[0].mxu0 %v3756
        %v3855 = vpop.f32.mrb[0].mxu0
        %v3856 = vadd.f32 0.0, %v3855
        %v3857 = vpop.f32.mrb[0].mxu0
        %3858 = vmatprep.mubr.f32.mxu0 0.0
        %3859 = vmatmul.mubr.f32.gmra.mrb[0].mxu0 %v3759
        %v3860 = vpop.f32.mrb[0].mxu0
        %v3861 = vadd.f32 0.0, %v3860
        %v3862 = vpop.f32.mrb[0].mxu0
        %3863 = vmatprep.mubr.f32.mxu0 0.0
        %3864 = vmatmul.mubr.f32.gmra.mrb[0].mxu0 %v3762
        %v3865 = vpop.f32.mrb[0].mxu0
        %v3866 = vadd.f32 0.0, %v3865
        %v3867 = vpop.f32.mrb[0].mxu0
        %3868 = vdwg.mxu0
        %v3869 = vadd.f32 %v2902, %v3831
        %v3870 = vadd.f32 %v2907, %v3836
        %v3871 = vadd.f32 %v2912, %v3841
        %v3872 = vadd.f32 %v2917, %v3846
        %v3873 = vadd.f32 %v2922, %v3851
        %v3874 = vadd.f32 %v2927, %v3856
        %v3875 = vadd.f32 %v2932, %v3861
        %v3876 = vadd.f32 %v2937, %v3866
        %3877 = vrot.lane.b32.xlu0 %v838, 104
        %v3878 = vpop.permute.xlu0 %3877
        %3879 = vrot.lane.b32.xlu0 %v839, 104
        %v3880 = vpop.permute.xlu0 %3879
        %3881 = vrot.lane.b32.xlu0 %v941, 104
        %v3882 = vpop.permute.xlu0 %3881
        %3883 = vrot.lane.b32.xlu0 %v946, 104
        %v3884 = vpop.permute.xlu0 %3883
        %v3885 = vsel %vm1112, %v3878, 0
        %v3887 = vsel %vm1112, %v3880, 0
        %v3889 = vsel %vm1112, %v3882, 0
        %v3891 = vsel %vm1112, %v3884, 0
        %3893 = vmatprep.subr.mxu0 0.0
        %3894 = vmatpush1.xpose.msra.mxu0 %v3889
        %3895 = vmatprep.subr.mxu0 0.0
        %3896 = vmatpush1.xpose.msra.mxu0 %v3891
        %3897 = vmatprep.subr.mxu0 0.0
        %3898 = vmatpush1.xpose.msra.mxu0 0.0
        %3899 = vmatprep.subr.mxu0 0.0
        %3900 = vmatpush1.xpose.msra.mxu0 0.0
        %3901 = vmatprep.subr.mxu0 0.0
        %3902 = vmatpush1.xpose.msra.mxu0 0.0
        %3903 = vmatprep.subr.mxu0 0.0
        %3904 = vmatpush1.xpose.msra.mxu0 0.0
        %3905 = vmatprep.subr.mxu0 0.0
        %3906 = vmatpush1.xpose.msra.mxu0 0.0
        %3907 = vmatprep.subr.mxu0 0.0
        %3908 = vmatpush1.xpose.msra.mxu0 0.0
        %3909 = vmatprep.subr.mxu0 0.0
        %3910 = vmatpush1.xpose.msra.mxu0 0.0
        %3911 = vmatprep.subr.mxu0 0.0
        %3912 = vmatpush1.xpose.msra.mxu0 0.0
        %3913 = vmatprep.subr.mxu0 0.0
        %3914 = vmatpush1.xpose.msra.mxu0 0.0
        %3915 = vmatprep.subr.mxu0 0.0
        %3916 = vmatpush1.xpose.msra.mxu0 0.0
        %3917 = vmatprep.subr.mxu0 0.0
        %3918 = vmatpush1.xpose.msra.mxu0 0.0
        %3919 = vmatprep.subr.mxu0 0.0
        %3920 = vmatpush1.xpose.msra.mxu0 0.0
        %3921 = vmatprep.subr.mxu0 0.0
        %3922 = vmatpush1.xpose.msra.mxu0 0.0
        %3923 = vmatprep.subr.mxu0 0.0
        %3924 = vmatpush1.xpose.msra.mxu0 0.0
        %3925 = vmatprep.subr.mxu0 0.0
        %3926 = vmatpush1.xpose.msra.mxu0 0.0
        %3927 = vmatprep.subr.mxu0 0.0
        %3928 = vmatpush1.xpose.msra.mxu0 0.0
        %3929 = vmatprep.subr.mxu0 0.0
        %3930 = vmatpush1.xpose.msra.mxu0 0.0
        %3931 = vmatprep.subr.mxu0 0.0
        %3932 = vmatpush1.xpose.msra.mxu0 0.0
        %3933 = vmatprep.subr.mxu0 0.0
        %3934 = vmatpush1.xpose.msra.mxu0 0.0
        %3935 = vmatprep.subr.mxu0 0.0
        %3936 = vmatpush1.xpose.msra.mxu0 0.0
        %3937 = vmatprep.subr.mxu0 0.0
        %3938 = vmatpush1.xpose.msra.mxu0 0.0
        %3939 = vmatprep.subr.mxu0 0.0
        %3940 = vmatpush1.xpose.msra.mxu0 0.0
        %3941 = vmatprep.subr.mxu0 0.0
        %3942 = vmatpush1.xpose.msra.mxu0 0.0
        %3943 = vmatprep.subr.mxu0 0.0
        %3944 = vmatpush1.xpose.msra.mxu0 0.0
        %3945 = vmatprep.subr.mxu0 0.0
        %3946 = vmatpush1.xpose.msra.mxu0 0.0
        %3947 = vmatprep.subr.mxu0 0.0
        %3948 = vmatpush1.xpose.msra.mxu0 0.0
        %3949 = vmatprep.subr.mxu0 0.0
        %3950 = vmatpush1.xpose.msra.mxu0 0.0
        %3951 = vmatprep.subr.mxu0 0.0
        %3952 = vmatpush1.xpose.msra.mxu0 0.0
        %3953 = vmatprep.subr.mxu0 0.0
        %3954 = vmatpush1.xpose.msra.mxu0 0.0
        %3955 = vmatprep.subr.mxu0 0.0
        %3956 = vmatpush1.xpose.msra.mxu0 0.0
        %3957 = vmatprep.mubr.f32.mxu0 0.0
        %3958 = vmatmul.mubr.f32.gmra.mrb[0].mxu0 %v3885
        %v3959 = vpop.f32.mrb[0].mxu0
        %v3960 = vadd.f32 %v333, %v3959
        %v3961 = vpop.f32.mrb[0].mxu0
        %3962 = vmatprep.mubr.f32.mxu0 0.0
        %3963 = vmatmul.mubr.f32.gmra.mrb[0].mxu0 %v3887
        %v3964 = vpop.f32.mrb[0].mxu0
        %v3965 = vadd.f32 %v334, %v3964
        %v3966 = vpop.f32.mrb[0].mxu0
        %3967 = vdwg.mxu0
        %3968 = vrot.lane.b32.xlu0 %v840, 104
        %v3969 = vpop.permute.xlu0 %3968
        %3970 = vrot.lane.b32.xlu0 %v841, 104
        %v3971 = vpop.permute.xlu0 %3970
        %3972 = vrot.lane.b32.xlu0 %v951, 104
        %v3973 = vpop.permute.xlu0 %3972
        %3974 = vrot.lane.b32.xlu0 %v956, 104
        %v3975 = vpop.permute.xlu0 %3974
        %v3976 = vsel %vm1112, %v3969, 0
        %v3978 = vsel %vm1112, %v3971, 0
        %v3980 = vsel %vm1112, %v3973, 0
        %v3982 = vsel %vm1112, %v3975, 0
        %3984 = vmatprep.subr.mxu0 0.0
        %3985 = vmatpush1.xpose.msra.mxu0 %v3980
        %3986 = vmatprep.subr.mxu0 0.0
        %3987 = vmatpush1.xpose.msra.mxu0 %v3982
        %3988 = vmatprep.subr.mxu0 0.0
        %3989 = vmatpush1.xpose.msra.mxu0 0.0
        %3990 = vmatprep.subr.mxu0 0.0
        %3991 = vmatpush1.xpose.msra.mxu0 0.0
        %3992 = vmatprep.subr.mxu0 0.0
        %3993 = vmatpush1.xpose.msra.mxu0 0.0
        %3994 = vmatprep.subr.mxu0 0.0
        %3995 = vmatpush1.xpose.msra.mxu0 0.0
        %3996 = vmatprep.subr.mxu0 0.0
        %3997 = vmatpush1.xpose.msra.mxu0 0.0
        %3998 = vmatprep.subr.mxu0 0.0
        %3999 = vmatpush1.xpose.msra.mxu0 0.0
        %4000 = vmatprep.subr.mxu0 0.0
        %4001 = vmatpush1.xpose.msra.mxu0 0.0
        %4002 = vmatprep.subr.mxu0 0.0
        %4003 = vmatpush1.xpose.msra.mxu0 0.0
        %4004 = vmatprep.subr.mxu0 0.0
        %4005 = vmatpush1.xpose.msra.mxu0 0.0
        %4006 = vmatprep.subr.mxu0 0.0
        %4007 = vmatpush1.xpose.msra.mxu0 0.0
        %4008 = vmatprep.subr.mxu0 0.0
        %4009 = vmatpush1.xpose.msra.mxu0 0.0
        %4010 = vmatprep.subr.mxu0 0.0
        %4011 = vmatpush1.xpose.msra.mxu0 0.0
        %4012 = vmatprep.subr.mxu0 0.0
        %4013 = vmatpush1.xpose.msra.mxu0 0.0
        %4014 = vmatprep.subr.mxu0 0.0
        %4015 = vmatpush1.xpose.msra.mxu0 0.0
        %4016 = vmatprep.subr.mxu0 0.0
        %4017 = vmatpush1.xpose.msra.mxu0 0.0
        %4018 = vmatprep.subr.mxu0 0.0
        %4019 = vmatpush1.xpose.msra.mxu0 0.0
        %4020 = vmatprep.subr.mxu0 0.0
        %4021 = vmatpush1.xpose.msra.mxu0 0.0
        %4022 = vmatprep.subr.mxu0 0.0
        %4023 = vmatpush1.xpose.msra.mxu0 0.0
        %4024 = vmatprep.subr.mxu0 0.0
        %4025 = vmatpush1.xpose.msra.mxu0 0.0
        %4026 = vmatprep.subr.mxu0 0.0
        %4027 = vmatpush1.xpose.msra.mxu0 0.0
        %4028 = vmatprep.subr.mxu0 0.0
        %4029 = vmatpush1.xpose.msra.mxu0 0.0
        %4030 = vmatprep.subr.mxu0 0.0
        %4031 = vmatpush1.xpose.msra.mxu0 0.0
        %4032 = vmatprep.subr.mxu0 0.0
        %4033 = vmatpush1.xpose.msra.mxu0 0.0
        %4034 = vmatprep.subr.mxu0 0.0
        %4035 = vmatpush1.xpose.msra.mxu0 0.0
        %4036 = vmatprep.subr.mxu0 0.0
        %4037 = vmatpush1.xpose.msra.mxu0 0.0
        %4038 = vmatprep.subr.mxu0 0.0
        %4039 = vmatpush1.xpose.msra.mxu0 0.0
        %4040 = vmatprep.subr.mxu0 0.0
        %4041 = vmatpush1.xpose.msra.mxu0 0.0
        %4042 = vmatprep.subr.mxu0 0.0
        %4043 = vmatpush1.xpose.msra.mxu0 0.0
        %4044 = vmatprep.subr.mxu0 0.0
        %4045 = vmatpush1.xpose.msra.mxu0 0.0
        %4046 = vmatprep.subr.mxu0 0.0
        %4047 = vmatpush1.xpose.msra.mxu0 0.0
        %4048 = vmatprep.mubr.f32.mxu0 0.0
        %4049 = vmatmul.mubr.f32.gmra.mrb[0].mxu0 %v3976
        %v4050 = vpop.f32.mrb[0].mxu0
        %v4051 = vadd.f32 %v333, %v4050
        %v4052 = vpop.f32.mrb[0].mxu0
        %4053 = vmatprep.mubr.f32.mxu0 0.0
        %4054 = vmatmul.mubr.f32.gmra.mrb[0].mxu0 %v3978
        %v4055 = vpop.f32.mrb[0].mxu0
        %v4056 = vadd.f32 %v334, %v4055
        %v4057 = vpop.f32.mrb[0].mxu0
        %4058 = vdwg.mxu0
        %4059 = vrot.lane.b32.xlu0 %v842, 104
        %v4060 = vpop.permute.xlu0 %4059
        %4061 = vrot.lane.b32.xlu0 %v843, 104
        %v4062 = vpop.permute.xlu0 %4061
        %4063 = vrot.lane.b32.xlu0 %v961, 104
        %v4064 = vpop.permute.xlu0 %4063
        %4065 = vrot.lane.b32.xlu0 %v966, 104
        %v4066 = vpop.permute.xlu0 %4065
        %v4067 = vsel %vm1112, %v4060, 0
        %v4069 = vsel %vm1112, %v4062, 0
        %v4071 = vsel %vm1112, %v4064, 0
        %v4073 = vsel %vm1112, %v4066, 0
        %4075 = vmatprep.subr.mxu0 0.0
        %4076 = vmatpush1.xpose.msra.mxu0 %v4071
        %4077 = vmatprep.subr.mxu0 0.0
        %4078 = vmatpush1.xpose.msra.mxu0 %v4073
        %4079 = vmatprep.subr.mxu0 0.0
        %4080 = vmatpush1.xpose.msra.mxu0 0.0
        %4081 = vmatprep.subr.mxu0 0.0
        %4082 = vmatpush1.xpose.msra.mxu0 0.0
        %4083 = vmatprep.subr.mxu0 0.0
        %4084 = vmatpush1.xpose.msra.mxu0 0.0
        %4085 = vmatprep.subr.mxu0 0.0
        %4086 = vmatpush1.xpose.msra.mxu0 0.0
        %4087 = vmatprep.subr.mxu0 0.0
        %4088 = vmatpush1.xpose.msra.mxu0 0.0
        %4089 = vmatprep.subr.mxu0 0.0
        %4090 = vmatpush1.xpose.msra.mxu0 0.0
        %4091 = vmatprep.subr.mxu0 0.0
        %4092 = vmatpush1.xpose.msra.mxu0 0.0
        %4093 = vmatprep.subr.mxu0 0.0
        %4094 = vmatpush1.xpose.msra.mxu0 0.0
        %4095 = vmatprep.subr.mxu0 0.0
        %4096 = vmatpush1.xpose.msra.mxu0 0.0
        %4097 = vmatprep.subr.mxu0 0.0
        %4098 = vmatpush1.xpose.msra.mxu0 0.0
        %4099 = vmatprep.subr.mxu0 0.0
        %4100 = vmatpush1.xpose.msra.mxu0 0.0
        %4101 = vmatprep.subr.mxu0 0.0
        %4102 = vmatpush1.xpose.msra.mxu0 0.0
        %4103 = vmatprep.subr.mxu0 0.0
        %4104 = vmatpush1.xpose.msra.mxu0 0.0
        %4105 = vmatprep.subr.mxu0 0.0
        %4106 = vmatpush1.xpose.msra.mxu0 0.0
        %4107 = vmatprep.subr.mxu0 0.0
        %4108 = vmatpush1.xpose.msra.mxu0 0.0
        %4109 = vmatprep.subr.mxu0 0.0
        %4110 = vmatpush1.xpose.msra.mxu0 0.0
        %4111 = vmatprep.subr.mxu0 0.0
        %4112 = vmatpush1.xpose.msra.mxu0 0.0
        %4113 = vmatprep.subr.mxu0 0.0
        %4114 = vmatpush1.xpose.msra.mxu0 0.0
        %4115 = vmatprep.subr.mxu0 0.0
        %4116 = vmatpush1.xpose.msra.mxu0 0.0
        %4117 = vmatprep.subr.mxu0 0.0
        %4118 = vmatpush1.xpose.msra.mxu0 0.0
        %4119 = vmatprep.subr.mxu0 0.0
        %4120 = vmatpush1.xpose.msra.mxu0 0.0
        %4121 = vmatprep.subr.mxu0 0.0
        %4122 = vmatpush1.xpose.msra.mxu0 0.0
        %4123 = vmatprep.subr.mxu0 0.0
        %4124 = vmatpush1.xpose.msra.mxu0 0.0
        %4125 = vmatprep.subr.mxu0 0.0
        %4126 = vmatpush1.xpose.msra.mxu0 0.0
        %4127 = vmatprep.subr.mxu0 0.0
        %4128 = vmatpush1.xpose.msra.mxu0 0.0
        %4129 = vmatprep.subr.mxu0 0.0
        %4130 = vmatpush1.xpose.msra.mxu0 0.0
        %4131 = vmatprep.subr.mxu0 0.0
        %4132 = vmatpush1.xpose.msra.mxu0 0.0
        %4133 = vmatprep.subr.mxu0 0.0
        %4134 = vmatpush1.xpose.msra.mxu0 0.0
        %4135 = vmatprep.subr.mxu0 0.0
        %4136 = vmatpush1.xpose.msra.mxu0 0.0
        %4137 = vmatprep.subr.mxu0 0.0
        %4138 = vmatpush1.xpose.msra.mxu0 0.0
        %4139 = vmatprep.mubr.f32.mxu0 0.0
        %4140 = vmatmul.mubr.f32.gmra.mrb[0].mxu0 %v4067
        %v4141 = vpop.f32.mrb[0].mxu0
        %v4142 = vadd.f32 %v333, %v4141
        %v4143 = vpop.f32.mrb[0].mxu0
        %4144 = vmatprep.mubr.f32.mxu0 0.0
        %4145 = vmatmul.mubr.f32.gmra.mrb[0].mxu0 %v4069
        %v4146 = vpop.f32.mrb[0].mxu0
        %v4147 = vadd.f32 %v334, %v4146
        %v4148 = vpop.f32.mrb[0].mxu0
        %4149 = vdwg.mxu0
        %4150 = vrot.lane.b32.xlu0 %v844, 104
        %v4151 = vpop.permute.xlu0 %4150
        %4152 = vrot.lane.b32.xlu0 %v845, 104
        %v4153 = vpop.permute.xlu0 %4152
        %4154 = vrot.lane.b32.xlu0 %v971, 104
        %v4155 = vpop.permute.xlu0 %4154
        %4156 = vrot.lane.b32.xlu0 %v976, 104
        %v4157 = vpop.permute.xlu0 %4156
        %v4158 = vsel %vm1112, %v4151, 0
        %v4160 = vsel %vm1112, %v4153, 0
        %v4162 = vsel %vm1112, %v4155, 0
        %v4164 = vsel %vm1112, %v4157, 0
        %4166 = vmatprep.subr.mxu0 0.0
        %4167 = vmatpush1.xpose.msra.mxu0 %v4162
        %4168 = vmatprep.subr.mxu0 0.0
        %4169 = vmatpush1.xpose.msra.mxu0 %v4164
        %4170 = vmatprep.subr.mxu0 0.0
        %4171 = vmatpush1.xpose.msra.mxu0 0.0
        %4172 = vmatprep.subr.mxu0 0.0
        %4173 = vmatpush1.xpose.msra.mxu0 0.0
        %4174 = vmatprep.subr.mxu0 0.0
        %4175 = vmatpush1.xpose.msra.mxu0 0.0
        %4176 = vmatprep.subr.mxu0 0.0
        %4177 = vmatpush1.xpose.msra.mxu0 0.0
        %4178 = vmatprep.subr.mxu0 0.0
        %4179 = vmatpush1.xpose.msra.mxu0 0.0
        %4180 = vmatprep.subr.mxu0 0.0
        %4181 = vmatpush1.xpose.msra.mxu0 0.0
        %4182 = vmatprep.subr.mxu0 0.0
        %4183 = vmatpush1.xpose.msra.mxu0 0.0
        %4184 = vmatprep.subr.mxu0 0.0
        %4185 = vmatpush1.xpose.msra.mxu0 0.0
        %4186 = vmatprep.subr.mxu0 0.0
        %4187 = vmatpush1.xpose.msra.mxu0 0.0
        %4188 = vmatprep.subr.mxu0 0.0
        %4189 = vmatpush1.xpose.msra.mxu0 0.0
        %4190 = vmatprep.subr.mxu0 0.0
        %4191 = vmatpush1.xpose.msra.mxu0 0.0
        %4192 = vmatprep.subr.mxu0 0.0
        %4193 = vmatpush1.xpose.msra.mxu0 0.0
        %4194 = vmatprep.subr.mxu0 0.0
        %4195 = vmatpush1.xpose.msra.mxu0 0.0
        %4196 = vmatprep.subr.mxu0 0.0
        %4197 = vmatpush1.xpose.msra.mxu0 0.0
        %4198 = vmatprep.subr.mxu0 0.0
        %4199 = vmatpush1.xpose.msra.mxu0 0.0
        %4200 = vmatprep.subr.mxu0 0.0
        %4201 = vmatpush1.xpose.msra.mxu0 0.0
        %4202 = vmatprep.subr.mxu0 0.0
        %4203 = vmatpush1.xpose.msra.mxu0 0.0
        %4204 = vmatprep.subr.mxu0 0.0
        %4205 = vmatpush1.xpose.msra.mxu0 0.0
        %4206 = vmatprep.subr.mxu0 0.0
        %4207 = vmatpush1.xpose.msra.mxu0 0.0
        %4208 = vmatprep.subr.mxu0 0.0
        %4209 = vmatpush1.xpose.msra.mxu0 0.0
        %4210 = vmatprep.subr.mxu0 0.0
        %4211 = vmatpush1.xpose.msra.mxu0 0.0
        %4212 = vmatprep.subr.mxu0 0.0
        %4213 = vmatpush1.xpose.msra.mxu0 0.0
        %4214 = vmatprep.subr.mxu0 0.0
        %4215 = vmatpush1.xpose.msra.mxu0 0.0
        %4216 = vmatprep.subr.mxu0 0.0
        %4217 = vmatpush1.xpose.msra.mxu0 0.0
        %4218 = vmatprep.subr.mxu0 0.0
        %4219 = vmatpush1.xpose.msra.mxu0 0.0
        %4220 = vmatprep.subr.mxu0 0.0
        %4221 = vmatpush1.xpose.msra.mxu0 0.0
        %4222 = vmatprep.subr.mxu0 0.0
        %4223 = vmatpush1.xpose.msra.mxu0 0.0
        %4224 = vmatprep.subr.mxu0 0.0
        %4225 = vmatpush1.xpose.msra.mxu0 0.0
        %4226 = vmatprep.subr.mxu0 0.0
        %4227 = vmatpush1.xpose.msra.mxu0 0.0
        %4228 = vmatprep.subr.mxu0 0.0
        %4229 = vmatpush1.xpose.msra.mxu0 0.0
        %4230 = vmatprep.mubr.f32.mxu0 0.0
        %4231 = vmatmul.mubr.f32.gmra.mrb[0].mxu0 %v4158
        %v4232 = vpop.f32.mrb[0].mxu0
        %v4233 = vadd.f32 %v333, %v4232
        %v4234 = vpop.f32.mrb[0].mxu0
        %4235 = vmatprep.mubr.f32.mxu0 0.0
        %4236 = vmatmul.mubr.f32.gmra.mrb[0].mxu0 %v4160
        %v4237 = vpop.f32.mrb[0].mxu0
        %v4238 = vadd.f32 %v334, %v4237
        %v4239 = vpop.f32.mrb[0].mxu0
        %4240 = vdwg.mxu0
        %v4241 = vsel %vm1461, %v3960, -inf
        %4242 = vmax.xlane.f32.xlu0 %v4241
        %v4243 = vpop.xlane.xlu0 %4242
        %v4244 = vsel %vm1461, %v3965, -inf
        %4245 = vmax.xlane.f32.xlu0 %v4244
        %v4246 = vpop.xlane.xlu0 %4245
        %v4247 = vsel %vm1461, %v4051, -inf
        %4248 = vmax.xlane.f32.xlu0 %v4247
        %v4249 = vpop.xlane.xlu0 %4248
        %v4250 = vsel %vm1461, %v4056, -inf
        %4251 = vmax.xlane.f32.xlu0 %v4250
        %v4252 = vpop.xlane.xlu0 %4251
        %v4253 = vsel %vm1461, %v4142, -inf
        %4254 = vmax.xlane.f32.xlu0 %v4253
        %v4255 = vpop.xlane.xlu0 %4254
        %v4256 = vsel %vm1461, %v4147, -inf
        %4257 = vmax.xlane.f32.xlu0 %v4256
        %v4258 = vpop.xlane.xlu0 %4257
        %v4259 = vsel %vm1461, %v4233, -inf
        %4260 = vmax.xlane.f32.xlu0 %v4259
        %v4261 = vpop.xlane.xlu0 %4260
        %v4262 = vsel %vm1461, %v4238, -inf
        %4263 = vmax.xlane.f32.xlu0 %v4262
        %v4264 = vpop.xlane.xlu0 %4263
        %v4265 = vsub.f32 %v3960, %v4243
        %v4266 = vsub.f32 %v3965, %v4246
        %v4267 = vsub.f32 %v4051, %v4249
        %v4268 = vsub.f32 %v4056, %v4252
        %v4269 = vsub.f32 %v4142, %v4255
        %v4270 = vsub.f32 %v4147, %v4258
        %v4271 = vsub.f32 %v4233, %v4261
        %v4272 = vsub.f32 %v4238, %v4264
        %v4273 = vmul.f32 %v4265, 1.442695
        %v4274 = vpow.pop %v4273
        %v4275 = vmul.f32 %v4266, 1.442695
        %v4276 = vpow.pop %v4275
        %v4277 = vmul.f32 %v4267, 1.442695
        %v4278 = vpow.pop %v4277
        %v4279 = vmul.f32 %v4268, 1.442695
        %v4280 = vpow.pop %v4279
        %v4281 = vmul.f32 %v4269, 1.442695
        %v4282 = vpow.pop %v4281
        %v4283 = vmul.f32 %v4270, 1.442695
        %v4284 = vpow.pop %v4283
        %v4285 = vmul.f32 %v4271, 1.442695
        %v4286 = vpow.pop %v4285
        %v4287 = vmul.f32 %v4272, 1.442695
        %v4288 = vpow.pop %v4287
        %v4289 = vsel %vm1461, %v4274, 0.0
        %4290 = vadd.xlane.f32.xlu0 %v4289
        %v4291 = vpop.xlane.xlu0 %4290
        %v4292 = vsel %vm1461, %v4276, 0.0
        %4293 = vadd.xlane.f32.xlu0 %v4292
        %v4294 = vpop.xlane.xlu0 %4293
        %v4295 = vsel %vm1461, %v4278, 0.0
        %4296 = vadd.xlane.f32.xlu0 %v4295
        %v4297 = vpop.xlane.xlu0 %4296
        %v4298 = vsel %vm1461, %v4280, 0.0
        %4299 = vadd.xlane.f32.xlu0 %v4298
        %v4300 = vpop.xlane.xlu0 %4299
        %v4301 = vsel %vm1461, %v4282, 0.0
        %4302 = vadd.xlane.f32.xlu0 %v4301
        %v4303 = vpop.xlane.xlu0 %4302
        %v4304 = vsel %vm1461, %v4284, 0.0
        %4305 = vadd.xlane.f32.xlu0 %v4304
        %v4306 = vpop.xlane.xlu0 %4305
        %v4307 = vsel %vm1461, %v4286, 0.0
        %4308 = vadd.xlane.f32.xlu0 %v4307
        %v4309 = vpop.xlane.xlu0 %4308
        %v4310 = vsel %vm1461, %v4288, 0.0
        %4311 = vadd.xlane.f32.xlu0 %v4310
        %v4312 = vpop.xlane.xlu0 %4311
        %v4313 = vrcp.pop %v4291
        %v4314 = vrcp.pop %v4294
        %v4315 = vrcp.pop %v4297
        %v4316 = vrcp.pop %v4300
        %v4317 = vrcp.pop %v4303
        %v4318 = vrcp.pop %v4306
        %v4319 = vrcp.pop %v4309
        %v4320 = vrcp.pop %v4312
        %v4321 = vmul.f32 %v4274, %v4313
        %v4322 = vmul.f32 %v4276, %v4314
        %v4323 = vmul.f32 %v4278, %v4315
        %v4324 = vmul.f32 %v4280, %v4316
        %v4325 = vmul.f32 %v4282, %v4317
        %v4326 = vmul.f32 %v4284, %v4318
        %v4327 = vmul.f32 %v4286, %v4319
        %v4328 = vmul.f32 %v4288, %v4320
        %4329 = vrot.lane.b32.xlu0 %v1074, 104
        %v4330 = vpop.permute.xlu0 %4329
        %4331 = vrot.lane.b32.xlu0 %v1079, 104
        %v4332 = vpop.permute.xlu0 %4331
        %v4336 = vsel %vm1461, %v4321, 0
        %v4339 = vsel %vm1461, %v4322, 0
        %4341 = vmatprep.subr.mxu0 0.0
        %4342 = vmatpush1.msra.mxu0 %v4330
        %4343 = vmatprep.subr.mxu0 0.0
        %4344 = vmatpush1.msra.mxu0 %v4332
        %4345 = vmatprep.subr.mxu0 0.0
        %4346 = vmatpush1.msra.mxu0 0.0
        %4347 = vmatprep.subr.mxu0 0.0
        %4348 = vmatpush1.msra.mxu0 0.0
        %4349 = vmatprep.subr.mxu0 0.0
        %4350 = vmatpush1.msra.mxu0 0.0
        %4351 = vmatprep.subr.mxu0 0.0
        %4352 = vmatpush1.msra.mxu0 0.0
        %4353 = vmatprep.subr.mxu0 0.0
        %4354 = vmatpush1.msra.mxu0 0.0
        %4355 = vmatprep.subr.mxu0 0.0
        %4356 = vmatpush1.msra.mxu0 0.0
        %4357 = vmatprep.subr.mxu0 0.0
        %4358 = vmatpush1.msra.mxu0 0.0
        %4359 = vmatprep.subr.mxu0 0.0
        %4360 = vmatpush1.msra.mxu0 0.0
        %4361 = vmatprep.subr.mxu0 0.0
        %4362 = vmatpush1.msra.mxu0 0.0
        %4363 = vmatprep.subr.mxu0 0.0
        %4364 = vmatpush1.msra.mxu0 0.0
        %4365 = vmatprep.subr.mxu0 0.0
        %4366 = vmatpush1.msra.mxu0 0.0
        %4367 = vmatprep.subr.mxu0 0.0
        %4368 = vmatpush1.msra.mxu0 0.0
        %4369 = vmatprep.subr.mxu0 0.0
        %4370 = vmatpush1.msra.mxu0 0.0
        %4371 = vmatprep.subr.mxu0 0.0
        %4372 = vmatpush1.msra.mxu0 0.0
        %4373 = vmatprep.subr.mxu0 0.0
        %4374 = vmatpush1.msra.mxu0 0.0
        %4375 = vmatprep.subr.mxu0 0.0
        %4376 = vmatpush1.msra.mxu0 0.0
        %4377 = vmatprep.subr.mxu0 0.0
        %4378 = vmatpush1.msra.mxu0 0.0
        %4379 = vmatprep.subr.mxu0 0.0
        %4380 = vmatpush1.msra.mxu0 0.0
        %4381 = vmatprep.subr.mxu0 0.0
        %4382 = vmatpush1.msra.mxu0 0.0
        %4383 = vmatprep.subr.mxu0 0.0
        %4384 = vmatpush1.msra.mxu0 0.0
        %4385 = vmatprep.subr.mxu0 0.0
        %4386 = vmatpush1.msra.mxu0 0.0
        %4387 = vmatprep.subr.mxu0 0.0
        %4388 = vmatpush1.msra.mxu0 0.0
        %4389 = vmatprep.subr.mxu0 0.0
        %4390 = vmatpush1.msra.mxu0 0.0
        %4391 = vmatprep.subr.mxu0 0.0
        %4392 = vmatpush1.msra.mxu0 0.0
        %4393 = vmatprep.subr.mxu0 0.0
        %4394 = vmatpush1.msra.mxu0 0.0
        %4395 = vmatprep.subr.mxu0 0.0
        %4396 = vmatpush1.msra.mxu0 0.0
        %4397 = vmatprep.subr.mxu0 0.0
        %4398 = vmatpush1.msra.mxu0 0.0
        %4399 = vmatprep.subr.mxu0 0.0
        %4400 = vmatpush1.msra.mxu0 0.0
        %4401 = vmatprep.subr.mxu0 0.0
        %4402 = vmatpush1.msra.mxu0 0.0
        %4403 = vmatprep.subr.mxu0 0.0
        %4404 = vmatpush1.msra.mxu0 0.0
        %4405 = vmatprep.mubr.f32.mxu0 0.0
        %4406 = vmatmul.mubr.f32.gmra.mrb[0].mxu0 %v4336
        %v4407 = vpop.f32.mrb[0].mxu0
        %v4408 = vadd.f32 0.0, %v4407
        %v4409 = vpop.f32.mrb[0].mxu0
        %4410 = vmatprep.mubr.f32.mxu0 0.0
        %4411 = vmatmul.mubr.f32.gmra.mrb[0].mxu0 %v4339
        %v4412 = vpop.f32.mrb[0].mxu0
        %v4413 = vadd.f32 0.0, %v4412
        %v4414 = vpop.f32.mrb[0].mxu0
        %4415 = vdwg.mxu0
        %4416 = vrot.lane.b32.xlu0 %v1084, 104
        %v4417 = vpop.permute.xlu0 %4416
        %4418 = vrot.lane.b32.xlu0 %v1089, 104
        %v4419 = vpop.permute.xlu0 %4418
        %v4423 = vsel %vm1461, %v4323, 0
        %v4426 = vsel %vm1461, %v4324, 0
        %4428 = vmatprep.subr.mxu0 0.0
        %4429 = vmatpush1.msra.mxu0 %v4417
        %4430 = vmatprep.subr.mxu0 0.0
        %4431 = vmatpush1.msra.mxu0 %v4419
        %4432 = vmatprep.subr.mxu0 0.0
        %4433 = vmatpush1.msra.mxu0 0.0
        %4434 = vmatprep.subr.mxu0 0.0
        %4435 = vmatpush1.msra.mxu0 0.0
        %4436 = vmatprep.subr.mxu0 0.0
        %4437 = vmatpush1.msra.mxu0 0.0
        %4438 = vmatprep.subr.mxu0 0.0
        %4439 = vmatpush1.msra.mxu0 0.0
        %4440 = vmatprep.subr.mxu0 0.0
        %4441 = vmatpush1.msra.mxu0 0.0
        %4442 = vmatprep.subr.mxu0 0.0
        %4443 = vmatpush1.msra.mxu0 0.0
        %4444 = vmatprep.subr.mxu0 0.0
        %4445 = vmatpush1.msra.mxu0 0.0
        %4446 = vmatprep.subr.mxu0 0.0
        %4447 = vmatpush1.msra.mxu0 0.0
        %4448 = vmatprep.subr.mxu0 0.0
        %4449 = vmatpush1.msra.mxu0 0.0
        %4450 = vmatprep.subr.mxu0 0.0
        %4451 = vmatpush1.msra.mxu0 0.0
        %4452 = vmatprep.subr.mxu0 0.0
        %4453 = vmatpush1.msra.mxu0 0.0
        %4454 = vmatprep.subr.mxu0 0.0
        %4455 = vmatpush1.msra.mxu0 0.0
        %4456 = vmatprep.subr.mxu0 0.0
        %4457 = vmatpush1.msra.mxu0 0.0
        %4458 = vmatprep.subr.mxu0 0.0
        %4459 = vmatpush1.msra.mxu0 0.0
        %4460 = vmatprep.subr.mxu0 0.0
        %4461 = vmatpush1.msra.mxu0 0.0
        %4462 = vmatprep.subr.mxu0 0.0
        %4463 = vmatpush1.msra.mxu0 0.0
        %4464 = vmatprep.subr.mxu0 0.0
        %4465 = vmatpush1.msra.mxu0 0.0
        %4466 = vmatprep.subr.mxu0 0.0
        %4467 = vmatpush1.msra.mxu0 0.0
        %4468 = vmatprep.subr.mxu0 0.0
        %4469 = vmatpush1.msra.mxu0 0.0
        %4470 = vmatprep.subr.mxu0 0.0
        %4471 = vmatpush1.msra.mxu0 0.0
        %4472 = vmatprep.subr.mxu0 0.0
        %4473 = vmatpush1.msra.mxu0 0.0
        %4474 = vmatprep.subr.mxu0 0.0
        %4475 = vmatpush1.msra.mxu0 0.0
        %4476 = vmatprep.subr.mxu0 0.0
        %4477 = vmatpush1.msra.mxu0 0.0
        %4478 = vmatprep.subr.mxu0 0.0
        %4479 = vmatpush1.msra.mxu0 0.0
        %4480 = vmatprep.subr.mxu0 0.0
        %4481 = vmatpush1.msra.mxu0 0.0
        %4482 = vmatprep.subr.mxu0 0.0
        %4483 = vmatpush1.msra.mxu0 0.0
        %4484 = vmatprep.subr.mxu0 0.0
        %4485 = vmatpush1.msra.mxu0 0.0
        %4486 = vmatprep.subr.mxu0 0.0
        %4487 = vmatpush1.msra.mxu0 0.0
        %4488 = vmatprep.subr.mxu0 0.0
        %4489 = vmatpush1.msra.mxu0 0.0
        %4490 = vmatprep.subr.mxu0 0.0
        %4491 = vmatpush1.msra.mxu0 0.0
        %4492 = vmatprep.mubr.f32.mxu0 0.0
        %4493 = vmatmul.mubr.f32.gmra.mrb[0].mxu0 %v4423
        %v4494 = vpop.f32.mrb[0].mxu0
        %v4495 = vadd.f32 0.0, %v4494
        %v4496 = vpop.f32.mrb[0].mxu0
        %4497 = vmatprep.mubr.f32.mxu0 0.0
        %4498 = vmatmul.mubr.f32.gmra.mrb[0].mxu0 %v4426
        %v4499 = vpop.f32.mrb[0].mxu0
        %v4500 = vadd.f32 0.0, %v4499
        %v4501 = vpop.f32.mrb[0].mxu0
        %4502 = vdwg.mxu0
        %4503 = vrot.lane.b32.xlu0 %v1094, 104
        %v4504 = vpop.permute.xlu0 %4503
        %4505 = vrot.lane.b32.xlu0 %v1099, 104
        %v4506 = vpop.permute.xlu0 %4505
        %v4510 = vsel %vm1461, %v4325, 0
        %v4513 = vsel %vm1461, %v4326, 0
        %4515 = vmatprep.subr.mxu0 0.0
        %4516 = vmatpush1.msra.mxu0 %v4504
        %4517 = vmatprep.subr.mxu0 0.0
        %4518 = vmatpush1.msra.mxu0 %v4506
        %4519 = vmatprep.subr.mxu0 0.0
        %4520 = vmatpush1.msra.mxu0 0.0
        %4521 = vmatprep.subr.mxu0 0.0
        %4522 = vmatpush1.msra.mxu0 0.0
        %4523 = vmatprep.subr.mxu0 0.0
        %4524 = vmatpush1.msra.mxu0 0.0
        %4525 = vmatprep.subr.mxu0 0.0
        %4526 = vmatpush1.msra.mxu0 0.0
        %4527 = vmatprep.subr.mxu0 0.0
        %4528 = vmatpush1.msra.mxu0 0.0
        %4529 = vmatprep.subr.mxu0 0.0
        %4530 = vmatpush1.msra.mxu0 0.0
        %4531 = vmatprep.subr.mxu0 0.0
        %4532 = vmatpush1.msra.mxu0 0.0
        %4533 = vmatprep.subr.mxu0 0.0
        %4534 = vmatpush1.msra.mxu0 0.0
        %4535 = vmatprep.subr.mxu0 0.0
        %4536 = vmatpush1.msra.mxu0 0.0
        %4537 = vmatprep.subr.mxu0 0.0
        %4538 = vmatpush1.msra.mxu0 0.0
        %4539 = vmatprep.subr.mxu0 0.0
        %4540 = vmatpush1.msra.mxu0 0.0
        %4541 = vmatprep.subr.mxu0 0.0
        %4542 = vmatpush1.msra.mxu0 0.0
        %4543 = vmatprep.subr.mxu0 0.0
        %4544 = vmatpush1.msra.mxu0 0.0
        %4545 = vmatprep.subr.mxu0 0.0
        %4546 = vmatpush1.msra.mxu0 0.0
        %4547 = vmatprep.subr.mxu0 0.0
        %4548 = vmatpush1.msra.mxu0 0.0
        %4549 = vmatprep.subr.mxu0 0.0
        %4550 = vmatpush1.msra.mxu0 0.0
        %4551 = vmatprep.subr.mxu0 0.0
        %4552 = vmatpush1.msra.mxu0 0.0
        %4553 = vmatprep.subr.mxu0 0.0
        %4554 = vmatpush1.msra.mxu0 0.0
        %4555 = vmatprep.subr.mxu0 0.0
        %4556 = vmatpush1.msra.mxu0 0.0
        %4557 = vmatprep.subr.mxu0 0.0
        %4558 = vmatpush1.msra.mxu0 0.0
        %4559 = vmatprep.subr.mxu0 0.0
        %4560 = vmatpush1.msra.mxu0 0.0
        %4561 = vmatprep.subr.mxu0 0.0
        %4562 = vmatpush1.msra.mxu0 0.0
        %4563 = vmatprep.subr.mxu0 0.0
        %4564 = vmatpush1.msra.mxu0 0.0
        %4565 = vmatprep.subr.mxu0 0.0
        %4566 = vmatpush1.msra.mxu0 0.0
        %4567 = vmatprep.subr.mxu0 0.0
        %4568 = vmatpush1.msra.mxu0 0.0
        %4569 = vmatprep.subr.mxu0 0.0
        %4570 = vmatpush1.msra.mxu0 0.0
        %4571 = vmatprep.subr.mxu0 0.0
        %4572 = vmatpush1.msra.mxu0 0.0
        %4573 = vmatprep.subr.mxu0 0.0
        %4574 = vmatpush1.msra.mxu0 0.0
        %4575 = vmatprep.subr.mxu0 0.0
        %4576 = vmatpush1.msra.mxu0 0.0
        %4577 = vmatprep.subr.mxu0 0.0
        %4578 = vmatpush1.msra.mxu0 0.0
        %4579 = vmatprep.mubr.f32.mxu0 0.0
        %4580 = vmatmul.mubr.f32.gmra.mrb[0].mxu0 %v4510
        %v4581 = vpop.f32.mrb[0].mxu0
        %v4582 = vadd.f32 0.0, %v4581
        %v4583 = vpop.f32.mrb[0].mxu0
        %4584 = vmatprep.mubr.f32.mxu0 0.0
        %4585 = vmatmul.mubr.f32.gmra.mrb[0].mxu0 %v4513
        %v4586 = vpop.f32.mrb[0].mxu0
        %v4587 = vadd.f32 0.0, %v4586
        %v4588 = vpop.f32.mrb[0].mxu0
        %4589 = vdwg.mxu0
        %4590 = vrot.lane.b32.xlu0 %v1104, 104
        %v4591 = vpop.permute.xlu0 %4590
        %4592 = vrot.lane.b32.xlu0 %v1109, 104
        %v4593 = vpop.permute.xlu0 %4592
        %v4597 = vsel %vm1461, %v4327, 0
        %v4600 = vsel %vm1461, %v4328, 0
        %4602 = vmatprep.subr.mxu0 0.0
        %4603 = vmatpush1.msra.mxu0 %v4591
        %4604 = vmatprep.subr.mxu0 0.0
        %4605 = vmatpush1.msra.mxu0 %v4593
        %4606 = vmatprep.subr.mxu0 0.0
        %4607 = vmatpush1.msra.mxu0 0.0
        %4608 = vmatprep.subr.mxu0 0.0
        %4609 = vmatpush1.msra.mxu0 0.0
        %4610 = vmatprep.subr.mxu0 0.0
        %4611 = vmatpush1.msra.mxu0 0.0
        %4612 = vmatprep.subr.mxu0 0.0
        %4613 = vmatpush1.msra.mxu0 0.0
        %4614 = vmatprep.subr.mxu0 0.0
        %4615 = vmatpush1.msra.mxu0 0.0
        %4616 = vmatprep.subr.mxu0 0.0
        %4617 = vmatpush1.msra.mxu0 0.0
        %4618 = vmatprep.subr.mxu0 0.0
        %4619 = vmatpush1.msra.mxu0 0.0
        %4620 = vmatprep.subr.mxu0 0.0
        %4621 = vmatpush1.msra.mxu0 0.0
        %4622 = vmatprep.subr.mxu0 0.0
        %4623 = vmatpush1.msra.mxu0 0.0
        %4624 = vmatprep.subr.mxu0 0.0
        %4625 = vmatpush1.msra.mxu0 0.0
        %4626 = vmatprep.subr.mxu0 0.0
        %4627 = vmatpush1.msra.mxu0 0.0
        %4628 = vmatprep.subr.mxu0 0.0
        %4629 = vmatpush1.msra.mxu0 0.0
        %4630 = vmatprep.subr.mxu0 0.0
        %4631 = vmatpush1.msra.mxu0 0.0
        %4632 = vmatprep.subr.mxu0 0.0
        %4633 = vmatpush1.msra.mxu0 0.0
        %4634 = vmatprep.subr.mxu0 0.0
        %4635 = vmatpush1.msra.mxu0 0.0
        %4636 = vmatprep.subr.mxu0 0.0
        %4637 = vmatpush1.msra.mxu0 0.0
        %4638 = vmatprep.subr.mxu0 0.0
        %4639 = vmatpush1.msra.mxu0 0.0
        %4640 = vmatprep.subr.mxu0 0.0
        %4641 = vmatpush1.msra.mxu0 0.0
        %4642 = vmatprep.subr.mxu0 0.0
        %4643 = vmatpush1.msra.mxu0 0.0
        %4644 = vmatprep.subr.mxu0 0.0
        %4645 = vmatpush1.msra.mxu0 0.0
        %4646 = vmatprep.subr.mxu0 0.0
        %4647 = vmatpush1.msra.mxu0 0.0
        %4648 = vmatprep.subr.mxu0 0.0
        %4649 = vmatpush1.msra.mxu0 0.0
        %4650 = vmatprep.subr.mxu0 0.0
        %4651 = vmatpush1.msra.mxu0 0.0
        %4652 = vmatprep.subr.mxu0 0.0
        %4653 = vmatpush1.msra.mxu0 0.0
        %4654 = vmatprep.subr.mxu0 0.0
        %4655 = vmatpush1.msra.mxu0 0.0
        %4656 = vmatprep.subr.mxu0 0.0
        %4657 = vmatpush1.msra.mxu0 0.0
        %4658 = vmatprep.subr.mxu0 0.0
        %4659 = vmatpush1.msra.mxu0 0.0
        %4660 = vmatprep.subr.mxu0 0.0
        %4661 = vmatpush1.msra.mxu0 0.0
        %4662 = vmatprep.subr.mxu0 0.0
        %4663 = vmatpush1.msra.mxu0 0.0
        %4664 = vmatprep.subr.mxu0 0.0
        %4665 = vmatpush1.msra.mxu0 0.0
        %4666 = vmatprep.mubr.f32.mxu0 0.0
        %4667 = vmatmul.mubr.f32.gmra.mrb[0].mxu0 %v4597
        %v4668 = vpop.f32.mrb[0].mxu0
        %v4669 = vadd.f32 0.0, %v4668
        %v4670 = vpop.f32.mrb[0].mxu0
        %4671 = vmatprep.mubr.f32.mxu0 0.0
        %4672 = vmatmul.mubr.f32.gmra.mrb[0].mxu0 %v4600
        %v4673 = vpop.f32.mrb[0].mxu0
        %v4674 = vadd.f32 0.0, %v4673
        %v4675 = vpop.f32.mrb[0].mxu0
        %4676 = vdwg.mxu0
        %v4678 = vsel %vm1112, %v4408, 0
        %v4681 = vsel %vm1112, %v4413, 0
        %v4684 = vsel %vm1112, %v4495, 0
        %v4687 = vsel %vm1112, %v4500, 0
        %v4690 = vsel %vm1112, %v4582, 0
        %v4693 = vsel %vm1112, %v4587, 0
        %v4696 = vsel %vm1112, %v4669, 0
        %v4699 = vsel %vm1112, %v4674, 0
        %4701 = vmatprep.subr.mxu0 0.0
        %4702 = vmatpush1.msra.mxu0 %v326
        %4703 = vmatprep.subr.mxu0 0.0
        %4704 = vmatpush1.msra.mxu0 0.0
        %4705 = vmatprep.subr.mxu0 0.0
        %4706 = vmatpush1.msra.mxu0 0.0
        %4707 = vmatprep.subr.mxu0 0.0
        %4708 = vmatpush1.msra.mxu0 0.0
        %4709 = vmatprep.subr.mxu0 0.0
        %4710 = vmatpush1.msra.mxu0 0.0
        %4711 = vmatprep.subr.mxu0 0.0
        %4712 = vmatpush1.msra.mxu0 0.0
        %4713 = vmatprep.subr.mxu0 0.0
        %4714 = vmatpush1.msra.mxu0 0.0
        %4715 = vmatprep.subr.mxu0 0.0
        %4716 = vmatpush1.msra.mxu0 0.0
        %4717 = vmatprep.subr.mxu0 0.0
        %4718 = vmatpush1.msra.mxu0 0.0
        %4719 = vmatprep.subr.mxu0 0.0
        %4720 = vmatpush1.msra.mxu0 0.0
        %4721 = vmatprep.subr.mxu0 0.0
        %4722 = vmatpush1.msra.mxu0 0.0
        %4723 = vmatprep.subr.mxu0 0.0
        %4724 = vmatpush1.msra.mxu0 0.0
        %4725 = vmatprep.subr.mxu0 0.0
        %4726 = vmatpush1.msra.mxu0 0.0
        %4727 = vmatprep.subr.mxu0 0.0
        %4728 = vmatpush1.msra.mxu0 0.0
        %4729 = vmatprep.subr.mxu0 0.0
        %4730 = vmatpush1.msra.mxu0 0.0
        %4731 = vmatprep.subr.mxu0 0.0
        %4732 = vmatpush1.msra.mxu0 0.0
        %4733 = vmatprep.subr.mxu0 0.0
        %4734 = vmatpush1.msra.mxu0 0.0
        %4735 = vmatprep.subr.mxu0 0.0
        %4736 = vmatpush1.msra.mxu0 0.0
        %4737 = vmatprep.subr.mxu0 0.0
        %4738 = vmatpush1.msra.mxu0 0.0
        %4739 = vmatprep.subr.mxu0 0.0
        %4740 = vmatpush1.msra.mxu0 0.0
        %4741 = vmatprep.subr.mxu0 0.0
        %4742 = vmatpush1.msra.mxu0 0.0
        %4743 = vmatprep.subr.mxu0 0.0
        %4744 = vmatpush1.msra.mxu0 0.0
        %4745 = vmatprep.subr.mxu0 0.0
        %4746 = vmatpush1.msra.mxu0 0.0
        %4747 = vmatprep.subr.mxu0 0.0
        %4748 = vmatpush1.msra.mxu0 0.0
        %4749 = vmatprep.subr.mxu0 0.0
        %4750 = vmatpush1.msra.mxu0 0.0
        %4751 = vmatprep.subr.mxu0 0.0
        %4752 = vmatpush1.msra.mxu0 0.0
        %4753 = vmatprep.subr.mxu0 0.0
        %4754 = vmatpush1.msra.mxu0 0.0
        %4755 = vmatprep.subr.mxu0 0.0
        %4756 = vmatpush1.msra.mxu0 0.0
        %4757 = vmatprep.subr.mxu0 0.0
        %4758 = vmatpush1.msra.mxu0 0.0
        %4759 = vmatprep.subr.mxu0 0.0
        %4760 = vmatpush1.msra.mxu0 0.0
        %4761 = vmatprep.subr.mxu0 0.0
        %4762 = vmatpush1.msra.mxu0 0.0
        %4763 = vmatprep.subr.mxu0 0.0
        %4764 = vmatpush1.msra.mxu0 0.0
        %4765 = vmatprep.mubr.f32.mxu0 0.0
        %4766 = vmatmul.mubr.f32.gmra.mrb[0].mxu0 %v4678
        %v4767 = vpop.f32.mrb[0].mxu0
        %v4768 = vadd.f32 0.0, %v4767
        %v4769 = vpop.f32.mrb[0].mxu0
        %4770 = vmatprep.mubr.f32.mxu0 0.0
        %4771 = vmatmul.mubr.f32.gmra.mrb[0].mxu0 %v4681
        %v4772 = vpop.f32.mrb[0].mxu0
        %v4773 = vadd.f32 0.0, %v4772
        %v4774 = vpop.f32.mrb[0].mxu0
        %4775 = vmatprep.mubr.f32.mxu0 0.0
        %4776 = vmatmul.mubr.f32.gmra.mrb[0].mxu0 %v4684
        %v4777 = vpop.f32.mrb[0].mxu0
        %v4778 = vadd.f32 0.0, %v4777
        %v4779 = vpop.f32.mrb[0].mxu0
        %4780 = vmatprep.mubr.f32.mxu0 0.0
        %4781 = vmatmul.mubr.f32.gmra.mrb[0].mxu0 %v4687
        %v4782 = vpop.f32.mrb[0].mxu0
        %v4783 = vadd.f32 0.0, %v4782
        %v4784 = vpop.f32.mrb[0].mxu0
        %4785 = vmatprep.mubr.f32.mxu0 0.0
        %4786 = vmatmul.mubr.f32.gmra.mrb[0].mxu0 %v4690
        %v4787 = vpop.f32.mrb[0].mxu0
        %v4788 = vadd.f32 0.0, %v4787
        %v4789 = vpop.f32.mrb[0].mxu0
        %4790 = vmatprep.mubr.f32.mxu0 0.0
        %4791 = vmatmul.mubr.f32.gmra.mrb[0].mxu0 %v4693
        %v4792 = vpop.f32.mrb[0].mxu0
        %v4793 = vadd.f32 0.0, %v4792
        %v4794 = vpop.f32.mrb[0].mxu0
        %4795 = vmatprep.mubr.f32.mxu0 0.0
        %4796 = vmatmul.mubr.f32.gmra.mrb[0].mxu0 %v4696
        %v4797 = vpop.f32.mrb[0].mxu0
        %v4798 = vadd.f32 0.0, %v4797
        %v4799 = vpop.f32.mrb[0].mxu0
        %4800 = vmatprep.mubr.f32.mxu0 0.0
        %4801 = vmatmul.mubr.f32.gmra.mrb[0].mxu0 %v4699
        %v4802 = vpop.f32.mrb[0].mxu0
        %v4803 = vadd.f32 0.0, %v4802
        %v4804 = vpop.f32.mrb[0].mxu0
        %4805 = vdwg.mxu0
        %v4806 = vadd.f32 %v3869, %v4768
        %v4807 = vadd.f32 %v3870, %v4773
        %v4808 = vadd.f32 %v3871, %v4778
        %v4809 = vadd.f32 %v3872, %v4783
        %v4810 = vadd.f32 %v3873, %v4788
        %v4811 = vadd.f32 %v3874, %v4793
        %v4812 = vadd.f32 %v3875, %v4798
        %v4813 = vadd.f32 %v3876, %v4803
        %v4814 = vlaneseq
        %v4815 = vshrl.u32 %v4814, 7
        %v4816 = vsub.s32 5, %v4815
        %v4817 = vrot.slane %v310, %v4816
        %v4818 = vadd.f32 %v4806, %v4817
        %v4819 = vadd.f32 %v4807, %v4817
        %v4820 = vadd.f32 %v4808, %v4817
        %v4821 = vadd.f32 %v4809, %v4817
        %v4822 = vadd.f32 %v4810, %v4817
        %v4823 = vadd.f32 %v4811, %v4817
        %v4824 = vadd.f32 %v4812, %v4817
        %v4825 = vadd.f32 %v4813, %v4817
        %v4826 = vadd.f32 %v4818, %v286
        %v4827 = vadd.f32 %v4819, %v287
        %v4828 = vadd.f32 %v4820, %v288
        %v4829 = vadd.f32 %v4821, %v289
        %v4830 = vadd.f32 %v4822, %v290
        %v4831 = vadd.f32 %v4823, %v291
        %v4832 = vadd.f32 %v4824, %v292
        %v4833 = vadd.f32 %v4825, %v293
        %4834 = vst.msk [vmem:[%s283] sm:$0xff] %vm335, %v4826
        %4835 = vst.msk [vmem:[%s283 + $0x8] sm:$0xff] %vm335, %v4827
        %4836 = vst.msk [vmem:[%s283 + $0x10] sm:$0xff] %vm335, %v4828
        %4837 = vst.msk [vmem:[%s283 + $0x18] sm:$0xff] %vm335, %v4829
        %4838 = vst.msk [vmem:[%s283 + $0x20] sm:$0xff] %vm335, %v4830
        %4839 = vst.msk [vmem:[%s283 + $0x28] sm:$0xff] %vm335, %v4831
        %4840 = vst.msk [vmem:[%s283 + $0x30] sm:$0xff] %vm335, %v4832
        %4841 = vst.msk [vmem:[%s283 + $0x38] sm:$0xff] %vm335, %v4833
        %s4842 = sand.u32 %s120, 1
        %s4843 = scalar_lea.sflag [#allocation4], %s4842
        %s4844 = sand.u32 %s120, 1
        %s4845 = smul.addr %s4844, 64
        %s4846 = scalar_lea.vmem [#allocation10], %s4845
        // Predicated region
        $region53: #{tpu_custom_call.1} parent=35 // pred_check
          %p4847 = pneg %p130
        $region54: #{tpu_custom_call.1} parent=35 // pred_check_branch
          %4849 = sbr.rel (%p4847) target = $region56
        $region55: #{tpu_custom_call.1} parent=35 // pred_region
          %s4850 = smul.u32 4, %s23
          %s4852 = ssub.s32 1024, 1024
          %4853 = vsyncadd %s4843, %s4852
          %s4854 = smul.addr %s4850, 2
          %s4855 = smul.addr %s4854, 128
          %s4856 = scalar_lea.hbm %s4, %s4855
          %s4857 = sshll.u32 %s4846, 4
          %s4858 = int_to_ptr.vmem [resolvable:$true] %s4857
          %4863 = dma.vmem_to_hbm [thread:$0]  %s4858, 1024, %s4856, %s4843, 128, 128, 8
        $region56: #{tpu_custom_call.1} parent=35 // pred_fallthru
          _
      $region36: #{tpu_custom_call.1} parent=5 // pred_fallthru
        _
      %p4864 = scmp.le.s32.totalorder 2, %s18
      // Predicated region
      $region57: #{tpu_custom_call.1} parent=5 // pred_check
        %p4865 = pneg %p4864
      $region58: #{tpu_custom_call.1} parent=5 // pred_check_branch
        %4867 = sbr.rel (%p4865) target = $region60
      $region59: #{tpu_custom_call.1} parent=5 // pred_region
        %s4868 = ssub.s32 %s18, 2
        // Predicated region
        $region61: #{tpu_custom_call.1} parent=59 // pred_check
          %p4869 = pneg %p136
        $region62: #{tpu_custom_call.1} parent=59 // pred_check_branch
          %4871 = sbr.rel (%p4869) target = $region64
        $region63: #{tpu_custom_call.1} parent=59 // pred_region
          %s4872 = sand.u32 %s121, 1
          %s4873 = scalar_lea.sflag [#allocation4], %s4872
          %s4874 = sand.u32 %s121, 1
          %s4875 = smul.addr %s4874, 64
          %s4876 = scalar_lea.vmem [#allocation10], %s4875
          %4877 = dma.done %s4873, 1024
        $region64: #{tpu_custom_call.1} parent=59 // pred_fallthru
          _
      $region60: #{tpu_custom_call.1} parent=5 // pred_fallthru
        _
    $region6: #{tpu_custom_call.1} parent=1 // loop_footer
      %s22 = sadd.s32 1, %s18
    $region7: #{tpu_custom_call.1} parent=1 // loop_footer_branch
      %17 = sbr.rel target = $region3
    $region8: #{tpu_custom_call.1} parent=1 // loop_exit
      _
    %4878 = vsyncpa [#allocation3], 1
    %s4879 = scalar_lea.sflag [#allocation3], 1
    %4880 = vsyncpa %s4879, 1
    %4881 = vsyncpa [#allocation6], 1
    %4882 = vsyncpa [#allocation9], 1
    %4883 = vsyncpa [#allocation4], 1
    %s4884 = scalar_lea.sflag [#allocation4], 1
    %4885 = vsyncpa %s4884, 1

</llo_original>
